<compile_context>
chip_gen: v6e
topology: v6e:2x2x1
jax: 0.10.0
libtpu: 0.0.40
codegen_flags: <defaults>
</compile_context>

<pallas_src>
import functools

import jax
import jax.numpy as jnp
from jax.experimental import pallas as pl
from jax.experimental.pallas import tpu as pltpu


def _fused_conv_block_kernel(relu_slope, cat_ref, w1_ref, b1_ref, w2_ref,
                             b2_ref, wid_ref, bid_ref, out_ref,
                             catp_ref, midp_ref):
    """Fused UNetConvBlock (no downsample / HIN / csff) on one batch element.

    cat_ref : (1, Hp, Wp, Ccat)     bf16  concat([up, bridge]) activation
    w1_ref  : (3, 3*Ccat, Cout)     bf16  conv_1 weight packed (ky, kx*Ccat+c, o)
    b1_ref  : (1, Cout)             f32
    w2_ref  : (3, 3*Cout, Cout)     bf16  conv_2 weight packed (ky, kx*Cout+c, o)
    b2_ref  : (1, Cout)             f32
    wid_ref : (Ccat, Cout)          bf16  identity 1x1 conv weight
    bid_ref : (1, Cout)             f32
    out_ref : (1, Hp, Wp, Cout)     f32
    catp_ref: (Hp+2, Wp+3, Ccat)    bf16 VMEM scratch (zero-padded conv_1 input)
    midp_ref: (Hp+2, Wp+3, Cout)    bf16 VMEM scratch (zero-padded conv_2 input)
    """
    Hp = out_ref.shape[1]
    Wp = out_ref.shape[2]
    Cout = out_ref.shape[3]
    Ccat = cat_ref.shape[3]
    LP = 2  # left zero-pad along W (even => pair-aligned packed-bf16 stores)

    cat = cat_ref[0]                                   # (Hp, Wp, Ccat) bf16

    # --- in-kernel zero padding into bf16 VMEM scratch (no padded HBM copies).
    # Scratch persists across grid steps but is re-zeroed every step, so the
    # kernel stays correct when the "parallel" batch axis is split across cores.
    catp_ref[...] = jnp.zeros(catp_ref.shape, catp_ref.dtype)
    midp_ref[...] = jnp.zeros(midp_ref.shape, midp_ref.dtype)
    catp_ref[1:Hp + 1, LP:LP + Wp, :] = cat.astype(catp_ref.dtype)

    def leaky(v):                                      # f32 epilogue on the VPU
        # valid because 0 <= relu_slope <= 1
        return jnp.maximum(v, relu_slope * v)

    def conv3x3(pad_ref, w_ref, b_row, cin):
        # pad_ref: (Hp+2, Wp+3, cin) bf16, interior at [1:Hp+1, LP:LP+Wp, :]
        # w_ref  : (3, 3*cin, Cout)  bf16, packed as (ky, kx*cin + c, o)
        xp = pad_ref[...]
        # Bias folded into the accumulator init.
        acc = jnp.broadcast_to(b_row.astype(jnp.float32), (Hp * Wp, Cout))
        for ky in range(3):                            # 3 fat matmuls, K = 3*cin
            rows = xp[ky:ky + Hp]                      # (Hp, Wp+3, cin)
            patch = jnp.concatenate(
                [rows[:, LP - 1:LP - 1 + Wp],          # kx = 0
                 rows[:, LP:LP + Wp],                  # kx = 1
                 rows[:, LP + 1:LP + 1 + Wp]],         # kx = 2
                axis=-1)                               # (Hp, Wp, 3*cin) bf16
            acc = acc + jnp.dot(patch.reshape(Hp * Wp, 3 * cin), w_ref[ky],
                                preferred_element_type=jnp.float32)
        return acc                                     # (Hp*Wp, Cout) f32

    # conv_1 + LeakyReLU
    mid = leaky(conv3x3(catp_ref, w1_ref, b1_ref[...], Ccat))

    # intermediate never leaves VMEM: zero-padded (bf16) input for conv_2
    midp_ref[1:Hp + 1, LP:LP + Wp, :] = (
        mid.reshape(Hp, Wp, Cout).astype(midp_ref.dtype))

    # conv_2 + LeakyReLU
    y = leaky(conv3x3(midp_ref, w2_ref, b2_ref[...], Cout))

    # identity 1x1 conv on the block input (the concat tensor) + skip add
    ident = jnp.dot(cat.reshape(Hp * Wp, Ccat), wid_ref[...],
                    preferred_element_type=jnp.float32)
    ident = ident + bid_ref[...].astype(jnp.float32)

    out_ref[0] = (y + ident).reshape(Hp, Wp, Cout).astype(out_ref.dtype)


def unet_up_block(x_nchw, bridge_nchw, params, relu_slope=0.2):
    """UNetUpBlock forward.
    x: (N, in_size, H, W), bridge: (N, in_size-out_size, 2H, 2W)
    -> (N, out_size, 2H, 2W)."""
    N, Cin, H, W = x_nchw.shape
    Cout = params["w_up"].shape[1]
    Hp, Wp = 2 * H, 2 * W
    Cbr = bridge_nchw.shape[1]
    Ccat = Cout + Cbr
    assert Ccat == params["w1"].shape[1], "cat channels must match conv_1 in_channels"
    assert bridge_nchw.shape == (N, Cbr, Hp, Wp), bridge_nchw.shape

    x = jnp.transpose(x_nchw, (0, 2, 3, 1))            # NCHW -> NHWC
    bridge = jnp.transpose(bridge_nchw, (0, 2, 3, 1))

    # --- ConvTranspose2d(k=2, s=2): non-overlapping 2x2 expansion (XLA prologue) ---
    # out[2i+dy, 2j+dx, o] = sum_c x[i, j, c] * w_up[c, o, dy, dx] + b_up[o]
    wup = jnp.transpose(params["w_up"], (0, 2, 3, 1))  # (Cin, 2, 2, Cout)
    up = jnp.einsum("nhwc,cyxo->nhywxo", x, wup).reshape(N, Hp, Wp, Cout)
    up = up + params["b_up"]
    cat = jnp.concatenate([up, bridge], axis=-1)       # (N, Hp, Wp, Ccat)
    cat_bf = cat.astype(jnp.bfloat16)                  # bf16 operand into the kernel

    # --- pack weights for fat-K taps: (ky, kx*Cin + cin, cout), bf16 -----------
    w1p = jnp.transpose(params["w1"], (2, 3, 1, 0)).reshape(3, 3 * Ccat, Cout)
    w1p = w1p.astype(jnp.bfloat16)
    w2p = jnp.transpose(params["w2"], (2, 3, 1, 0)).reshape(3, 3 * Cout, Cout)
    w2p = w2p.astype(jnp.bfloat16)
    wid = jnp.transpose(params["w_id"].reshape(Cout, Ccat), (1, 0)).astype(jnp.bfloat16)
    b1 = params["b1"].reshape(1, Cout).astype(jnp.float32)
    b2 = params["b2"].reshape(1, Cout).astype(jnp.float32)
    bid = params["b_id"].reshape(1, Cout).astype(jnp.float32)

    kernel = functools.partial(_fused_conv_block_kernel, float(relu_slope))

    flops = 2 * N * Hp * Wp * Cout * (9 * Ccat + 9 * Cout + Ccat)
    bytes_accessed = (N * Hp * Wp * Ccat * 2 + N * Hp * Wp * Cout * 4
                      + (9 * Ccat * Cout + 9 * Cout * Cout + Ccat * Cout) * 2
                      + 3 * Cout * 4)

    out = pl.pallas_call(
        kernel,
        out_shape=jax.ShapeDtypeStruct((N, Hp, Wp, Cout), jnp.float32),
        grid_spec=pltpu.PrefetchScalarGridSpec(
            num_scalar_prefetch=0,
            grid=(N,),
            in_specs=[
                pl.BlockSpec((1, Hp, Wp, Ccat), lambda n: (n, 0, 0, 0)),
                pl.BlockSpec((3, 3 * Ccat, Cout), lambda n: (0, 0, 0)),
                pl.BlockSpec((1, Cout), lambda n: (0, 0)),
                pl.BlockSpec((3, 3 * Cout, Cout), lambda n: (0, 0, 0)),
                pl.BlockSpec((1, Cout), lambda n: (0, 0)),
                pl.BlockSpec((Ccat, Cout), lambda n: (0, 0)),
                pl.BlockSpec((1, Cout), lambda n: (0, 0)),
            ],
            out_specs=pl.BlockSpec((1, Hp, Wp, Cout), lambda n: (n, 0, 0, 0)),
            scratch_shapes=[
                pltpu.VMEM((Hp + 2, Wp + 3, Ccat), jnp.bfloat16),
                pltpu.VMEM((Hp + 2, Wp + 3, Cout), jnp.bfloat16),
            ],
        ),
        compiler_params=pltpu.CompilerParams(
            dimension_semantics=("parallel",)),
        cost_estimate=pl.CostEstimate(
            flops=int(flops), transcendentals=0,
            bytes_accessed=int(bytes_accessed)),
    )(cat_bf, w1p, b1, w2p, b2, wid, bid)

    return jnp.transpose(out, (0, 3, 1, 2))            # NHWC -> NCHW


def _reference_forward(x_nchw, bridge_nchw, params, relu_slope=0.2):
    """Pure-JAX NCHW reference mirroring the PyTorch module (f32 math)."""
    N, Cin, H, W = x_nchw.shape
    Cout = params["w_up"].shape[1]
    up = jnp.einsum("nchw,coyx->nohywx", x_nchw,
                    params["w_up"]).reshape(N, Cout, 2 * H, 2 * W)
    up = up + params["b_up"][None, :, None, None]
    cat = jnp.concatenate([up, bridge_nchw], axis=1)

    def conv3x3(v, w, b):
        y = jax.lax.conv_general_dilated(
            v, w, (1, 1), ((1, 1), (1, 1)),
            dimension_numbers=("NCHW", "OIHW", "NCHW"))
        return y + b[None, :, None, None]

    def leaky(v):
        return jnp.where(v >= 0, v, relu_slope * v)

    out = leaky(conv3x3(cat, params["w1"], params["b1"]))
    out = leaky(conv3x3(out, params["w2"], params["b2"]))
    ident = jnp.einsum("nchw,oc->nohw", cat, params["w_id"].reshape(Cout, -1))
    ident = ident + params["b_id"][None, :, None, None]
    return out + ident


def init_params(key, in_size, out_size):
    """Deterministic synthetic init; shapes match the PyTorch module."""
    ks = jax.random.split(key, 8)

    def u(k, shape, fan_in):
        lim = 1.0 / jnp.sqrt(float(fan_in))
        return jax.random.uniform(k, shape, jnp.float32, -lim, lim)

    return {
        # ConvTranspose2d(in_size, out_size, 2, stride=2, bias=True): (in, out, 2, 2)
        "w_up": u(ks[0], (in_size, out_size, 2, 2), in_size * 4),
        "b_up": u(ks[1], (out_size,), in_size * 4),
        # conv_1: Conv2d(in_size, out_size, 3, padding=1, bias=True)
        "w1": u(ks[2], (out_size, in_size, 3, 3), in_size * 9),
        "b1": u(ks[3], (out_size,), in_size * 9),
        # conv_2: Conv2d(out_size, out_size, 3, padding=1, bias=True)
        "w2": u(ks[4], (out_size, out_size, 3, 3), out_size * 9),
        "b2": u(ks[5], (out_size,), out_size * 9),
        # identity: Conv2d(in_size, out_size, 1, 1, 0)
        "w_id": u(ks[6], (out_size, in_size, 1, 1), in_size),
        "b_id": u(ks[7], (out_size,), in_size),
    }


if __name__ == "__main__":
    key = jax.random.PRNGKey(0)
    kx, kb, kp = jax.random.split(key, 3)

    N, in_size, out_size, H, W = 2, 8, 4, 8, 8
    x = jax.random.normal(kx, (N, in_size, H, W), jnp.float32)
    bridge = jax.random.normal(kb, (N, in_size - out_size, 2 * H, 2 * W), jnp.float32)
    params = init_params(kp, in_size, out_size)

    y = jax.jit(unet_up_block)(x, bridge, params)
    y = jax.block_until_ready(y)

    assert y.shape == (N, out_size, 2 * H, 2 * W), y.shape
    assert bool(jnp.all(jnp.isfinite(y)))

    # Numerical check vs a pure-JAX reference (bf16 MXU operands -> loose atol).
    y_ref = _reference_forward(x, bridge, params)
    max_err = float(jnp.max(jnp.abs(y - y_ref)))
    assert max_err < 1e-1, f"max abs error vs reference: {max_err}"

    print("KERNEL_OK")
</pallas_src>

<mosaic_0001>
module attributes {stable_mosaic.version = 11 : i64} {
  func.func @_fused_conv_block_kernel(%arg0: i32, %arg1: memref<1x16x16x8xbf16, #tpu.memory_space<vmem>>, %arg2: memref<3x24x4xbf16, #tpu.memory_space<vmem>>, %arg3: memref<1x4xf32, #tpu.memory_space<vmem>>, %arg4: memref<3x12x4xbf16, #tpu.memory_space<vmem>>, %arg5: memref<1x4xf32, #tpu.memory_space<vmem>>, %arg6: memref<8x4xbf16, #tpu.memory_space<vmem>>, %arg7: memref<1x4xf32, #tpu.memory_space<vmem>>, %arg8: memref<1x16x16x4xf32, #tpu.memory_space<vmem>>, %arg9: memref<18x19x8xbf16, #tpu.memory_space<vmem>>, %arg10: memref<18x19x4xbf16, #tpu.memory_space<vmem>>) attributes {dimension_semantics = [#tpu.dimension_semantics<parallel>], iteration_bounds = array<i64: 2>, scalar_prefetch = 0 : i64, scratch_operands = 2 : i64, tpu.core_type = #tpu.core_type<tc>, window_params = [{transform_indices = @transform_0, window_bounds = array<i64: 1, 16, 16, 8>}, {pipeline_mode = #tpu.pipeline_mode<synchronous>, transform_indices = @transform_1, window_bounds = array<i64: 3, 24, 4>}, {pipeline_mode = #tpu.pipeline_mode<synchronous>, transform_indices = @transform_2, window_bounds = array<i64: 1, 4>}, {pipeline_mode = #tpu.pipeline_mode<synchronous>, transform_indices = @transform_3, window_bounds = array<i64: 3, 12, 4>}, {pipeline_mode = #tpu.pipeline_mode<synchronous>, transform_indices = @transform_4, window_bounds = array<i64: 1, 4>}, {pipeline_mode = #tpu.pipeline_mode<synchronous>, transform_indices = @transform_5, window_bounds = array<i64: 8, 4>}, {pipeline_mode = #tpu.pipeline_mode<synchronous>, transform_indices = @transform_6, window_bounds = array<i64: 1, 4>}, {transform_indices = @transform_7, window_bounds = array<i64: 1, 16, 16, 4>}]} {
    %c0 = arith.constant 0 : index
    %c0_0 = arith.constant 0 : index
    %c0_1 = arith.constant 0 : index
    %c0_2 = arith.constant 0 : index
    %0 = vector.load %arg1[%c0, %c0_0, %c0_1, %c0_2] : memref<1x16x16x8xbf16, #tpu.memory_space<vmem>>, vector<1x16x16x8xbf16>
    %1 = vector.shape_cast %0 : vector<1x16x16x8xbf16> to vector<16x16x8xbf16>
    %cst = arith.constant 0.000000e+00 : bf16
    %2 = vector.broadcast %cst : bf16 to vector<18x19x8xbf16>
    %c0_3 = arith.constant 0 : index
    %c0_4 = arith.constant 0 : index
    %c0_5 = arith.constant 0 : index
    %3 = vector.load %arg9[%c0_3, %c0_4, %c0_5] : memref<18x19x8xbf16, #tpu.memory_space<vmem>>, vector<18x19x8xbf16>
    tpu.vector_store %arg9[%c0_3, %c0_4, %c0_5], %2 {strides = array<i32>} : memref<18x19x8xbf16, #tpu.memory_space<vmem>>, vector<18x19x8xbf16>,
    %cst_6 = arith.constant 0.000000e+00 : bf16
    %4 = vector.broadcast %cst_6 : bf16 to vector<18x19x4xbf16>
    %c0_7 = arith.constant 0 : index
    %c0_8 = arith.constant 0 : index
    %c0_9 = arith.constant 0 : index
    %5 = vector.load %arg10[%c0_7, %c0_8, %c0_9] : memref<18x19x4xbf16, #tpu.memory_space<vmem>>, vector<18x19x4xbf16>
    tpu.vector_store %arg10[%c0_7, %c0_8, %c0_9], %4 {strides = array<i32>} : memref<18x19x4xbf16, #tpu.memory_space<vmem>>, vector<18x19x4xbf16>,
    %c1 = arith.constant 1 : index
    %c2 = arith.constant 2 : index
    %c0_10 = arith.constant 0 : index
    %6 = vector.load %arg9[%c1, %c2, %c0_10] : memref<18x19x8xbf16, #tpu.memory_space<vmem>>, vector<16x16x8xbf16>
    tpu.vector_store %arg9[%c1, %c2, %c0_10], %1 {strides = array<i32>} : memref<18x19x8xbf16, #tpu.memory_space<vmem>>, vector<16x16x8xbf16>,
    %c0_11 = arith.constant 0 : index
    %c0_12 = arith.constant 0 : index
    %7 = vector.load %arg3[%c0_11, %c0_12] : memref<1x4xf32, #tpu.memory_space<vmem>>, vector<1x4xf32>
    %c0_13 = arith.constant 0 : index
    %c0_14 = arith.constant 0 : index
    %c0_15 = arith.constant 0 : index
    %8 = vector.load %arg9[%c0_13, %c0_14, %c0_15] : memref<18x19x8xbf16, #tpu.memory_space<vmem>>, vector<18x19x8xbf16>
    %9 = vector.shape_cast %7 : vector<1x4xf32> to vector<1x4xf32>
    %10 = vector.broadcast %9 : vector<1x4xf32> to vector<256x4xf32>
    %11 = vector.extract_strided_slice %8 {offsets = [0, 0, 0], sizes = [16, 19, 8], strides = [1, 1, 1]} : vector<18x19x8xbf16> to vector<16x19x8xbf16>
    %12 = vector.extract_strided_slice %11 {offsets = [0, 1, 0], sizes = [16, 16, 8], strides = [1, 1, 1]} : vector<16x19x8xbf16> to vector<16x16x8xbf16>
    %13 = vector.extract_strided_slice %11 {offsets = [0, 2, 0], sizes = [16, 16, 8], strides = [1, 1, 1]} : vector<16x19x8xbf16> to vector<16x16x8xbf16>
    %14 = vector.extract_strided_slice %11 {offsets = [0, 3, 0], sizes = [16, 16, 8], strides = [1, 1, 1]} : vector<16x19x8xbf16> to vector<16x16x8xbf16>
    %15 = tpu.concatenate %12, %13, %14 in 2 : vector<16x16x8xbf16>, vector<16x16x8xbf16>, vector<16x16x8xbf16> -> vector<16x16x24xbf16>
    %16 = vector.shape_cast %15 : vector<16x16x24xbf16> to vector<256x24xbf16>
    %c0_16 = arith.constant 0 : index
    %c0_17 = arith.constant 0 : index
    %c0_18 = arith.constant 0 : index
    %17 = vector.load %arg2[%c0_16, %c0_17, %c0_18] : memref<3x24x4xbf16, #tpu.memory_space<vmem>>, vector<1x24x4xbf16>
    %18 = vector.shape_cast %17 : vector<1x24x4xbf16> to vector<24x4xbf16>
    %cst_19 = arith.constant dense<0.000000e+00> : vector<256x4xf32>
    %19 = tpu.matmul %16, %18, %cst_19 {dimension_numbers = #tpu.dot_dimension_numbers<[1], [0], [0], [1], [0, 0, 1, 1], [], []>} : vector<256x24xbf16>, vector<24x4xbf16>, vector<256x4xf32> -> vector<256x4xf32>
    %20 = arith.addf %10, %19 : vector<256x4xf32>
    %21 = vector.extract_strided_slice %8 {offsets = [1, 0, 0], sizes = [16, 19, 8], strides = [1, 1, 1]} : vector<18x19x8xbf16> to vector<16x19x8xbf16>
    %22 = vector.extract_strided_slice %21 {offsets = [0, 1, 0], sizes = [16, 16, 8], strides = [1, 1, 1]} : vector<16x19x8xbf16> to vector<16x16x8xbf16>
    %23 = vector.extract_strided_slice %21 {offsets = [0, 2, 0], sizes = [16, 16, 8], strides = [1, 1, 1]} : vector<16x19x8xbf16> to vector<16x16x8xbf16>
    %24 = vector.extract_strided_slice %21 {offsets = [0, 3, 0], sizes = [16, 16, 8], strides = [1, 1, 1]} : vector<16x19x8xbf16> to vector<16x16x8xbf16>
    %25 = tpu.concatenate %22, %23, %24 in 2 : vector<16x16x8xbf16>, vector<16x16x8xbf16>, vector<16x16x8xbf16> -> vector<16x16x24xbf16>
    %26 = vector.shape_cast %25 : vector<16x16x24xbf16> to vector<256x24xbf16>
    %c1_20 = arith.constant 1 : index
    %c0_21 = arith.constant 0 : index
    %c0_22 = arith.constant 0 : index
    %27 = vector.load %arg2[%c1_20, %c0_21, %c0_22] : memref<3x24x4xbf16, #tpu.memory_space<vmem>>, vector<1x24x4xbf16>
    %28 = vector.shape_cast %27 : vector<1x24x4xbf16> to vector<24x4xbf16>
    %cst_23 = arith.constant dense<0.000000e+00> : vector<256x4xf32>
    %29 = tpu.matmul %26, %28, %cst_23 {dimension_numbers = #tpu.dot_dimension_numbers<[1], [0], [0], [1], [0, 0, 1, 1], [], []>} : vector<256x24xbf16>, vector<24x4xbf16>, vector<256x4xf32> -> vector<256x4xf32>
    %30 = arith.addf %20, %29 : vector<256x4xf32>
    %31 = vector.extract_strided_slice %8 {offsets = [2, 0, 0], sizes = [16, 19, 8], strides = [1, 1, 1]} : vector<18x19x8xbf16> to vector<16x19x8xbf16>
    %32 = vector.extract_strided_slice %31 {offsets = [0, 1, 0], sizes = [16, 16, 8], strides = [1, 1, 1]} : vector<16x19x8xbf16> to vector<16x16x8xbf16>
    %33 = vector.extract_strided_slice %31 {offsets = [0, 2, 0], sizes = [16, 16, 8], strides = [1, 1, 1]} : vector<16x19x8xbf16> to vector<16x16x8xbf16>
    %34 = vector.extract_strided_slice %31 {offsets = [0, 3, 0], sizes = [16, 16, 8], strides = [1, 1, 1]} : vector<16x19x8xbf16> to vector<16x16x8xbf16>
    %35 = tpu.concatenate %32, %33, %34 in 2 : vector<16x16x8xbf16>, vector<16x16x8xbf16>, vector<16x16x8xbf16> -> vector<16x16x24xbf16>
    %36 = vector.shape_cast %35 : vector<16x16x24xbf16> to vector<256x24xbf16>
    %c2_24 = arith.constant 2 : index
    %c0_25 = arith.constant 0 : index
    %c0_26 = arith.constant 0 : index
    %37 = vector.load %arg2[%c2_24, %c0_25, %c0_26] : memref<3x24x4xbf16, #tpu.memory_space<vmem>>, vector<1x24x4xbf16>
    %38 = vector.shape_cast %37 : vector<1x24x4xbf16> to vector<24x4xbf16>
    %cst_27 = arith.constant dense<0.000000e+00> : vector<256x4xf32>
    %39 = tpu.matmul %36, %38, %cst_27 {dimension_numbers = #tpu.dot_dimension_numbers<[1], [0], [0], [1], [0, 0, 1, 1], [], []>} : vector<256x24xbf16>, vector<24x4xbf16>, vector<256x4xf32> -> vector<256x4xf32>
    %40 = arith.addf %30, %39 : vector<256x4xf32>
    %cst_28 = arith.constant 2.000000e-01 : f32
    %41 = vector.broadcast %cst_28 : f32 to vector<256x4xf32>
    %42 = arith.mulf %41, %40 : vector<256x4xf32>
    %43 = arith.maximumf %40, %42 : vector<256x4xf32>
    %44 = vector.shape_cast %43 : vector<256x4xf32> to vector<16x16x4xf32>
    %45 = arith.truncf %44 : vector<16x16x4xf32> to vector<16x16x4xbf16>
    %c1_29 = arith.constant 1 : index
    %c2_30 = arith.constant 2 : index
    %c0_31 = arith.constant 0 : index
    %46 = vector.load %arg10[%c1_29, %c2_30, %c0_31] : memref<18x19x4xbf16, #tpu.memory_space<vmem>>, vector<16x16x4xbf16>
    tpu.vector_store %arg10[%c1_29, %c2_30, %c0_31], %45 {strides = array<i32>} : memref<18x19x4xbf16, #tpu.memory_space<vmem>>, vector<16x16x4xbf16>,
    %c0_32 = arith.constant 0 : index
    %c0_33 = arith.constant 0 : index
    %47 = vector.load %arg5[%c0_32, %c0_33] : memref<1x4xf32, #tpu.memory_space<vmem>>, vector<1x4xf32>
    %c0_34 = arith.constant 0 : index
    %c0_35 = arith.constant 0 : index
    %c0_36 = arith.constant 0 : index
    %48 = vector.load %arg10[%c0_34, %c0_35, %c0_36] : memref<18x19x4xbf16, #tpu.memory_space<vmem>>, vector<18x19x4xbf16>
    %49 = vector.shape_cast %47 : vector<1x4xf32> to vector<1x4xf32>
    %50 = vector.broadcast %49 : vector<1x4xf32> to vector<256x4xf32>
    %51 = vector.extract_strided_slice %48 {offsets = [0, 0, 0], sizes = [16, 19, 4], strides = [1, 1, 1]} : vector<18x19x4xbf16> to vector<16x19x4xbf16>
    %52 = vector.extract_strided_slice %51 {offsets = [0, 1, 0], sizes = [16, 16, 4], strides = [1, 1, 1]} : vector<16x19x4xbf16> to vector<16x16x4xbf16>
    %53 = vector.extract_strided_slice %51 {offsets = [0, 2, 0], sizes = [16, 16, 4], strides = [1, 1, 1]} : vector<16x19x4xbf16> to vector<16x16x4xbf16>
    %54 = vector.extract_strided_slice %51 {offsets = [0, 3, 0], sizes = [16, 16, 4], strides = [1, 1, 1]} : vector<16x19x4xbf16> to vector<16x16x4xbf16>
    %55 = tpu.concatenate %52, %53, %54 in 2 : vector<16x16x4xbf16>, vector<16x16x4xbf16>, vector<16x16x4xbf16> -> vector<16x16x12xbf16>
    %56 = vector.shape_cast %55 : vector<16x16x12xbf16> to vector<256x12xbf16>
    %c0_37 = arith.constant 0 : index
    %c0_38 = arith.constant 0 : index
    %c0_39 = arith.constant 0 : index
    %57 = vector.load %arg4[%c0_37, %c0_38, %c0_39] : memref<3x12x4xbf16, #tpu.memory_space<vmem>>, vector<1x12x4xbf16>
    %58 = vector.shape_cast %57 : vector<1x12x4xbf16> to vector<12x4xbf16>
    %cst_40 = arith.constant dense<0.000000e+00> : vector<256x4xf32>
    %59 = tpu.matmul %56, %58, %cst_40 {dimension_numbers = #tpu.dot_dimension_numbers<[1], [0], [0], [1], [0, 0, 1, 1], [], []>} : vector<256x12xbf16>, vector<12x4xbf16>, vector<256x4xf32> -> vector<256x4xf32>
    %60 = arith.addf %50, %59 : vector<256x4xf32>
    %61 = vector.extract_strided_slice %48 {offsets = [1, 0, 0], sizes = [16, 19, 4], strides = [1, 1, 1]} : vector<18x19x4xbf16> to vector<16x19x4xbf16>
    %62 = vector.extract_strided_slice %61 {offsets = [0, 1, 0], sizes = [16, 16, 4], strides = [1, 1, 1]} : vector<16x19x4xbf16> to vector<16x16x4xbf16>
    %63 = vector.extract_strided_slice %61 {offsets = [0, 2, 0], sizes = [16, 16, 4], strides = [1, 1, 1]} : vector<16x19x4xbf16> to vector<16x16x4xbf16>
    %64 = vector.extract_strided_slice %61 {offsets = [0, 3, 0], sizes = [16, 16, 4], strides = [1, 1, 1]} : vector<16x19x4xbf16> to vector<16x16x4xbf16>
    %65 = tpu.concatenate %62, %63, %64 in 2 : vector<16x16x4xbf16>, vector<16x16x4xbf16>, vector<16x16x4xbf16> -> vector<16x16x12xbf16>
    %66 = vector.shape_cast %65 : vector<16x16x12xbf16> to vector<256x12xbf16>
    %c1_41 = arith.constant 1 : index
    %c0_42 = arith.constant 0 : index
    %c0_43 = arith.constant 0 : index
    %67 = vector.load %arg4[%c1_41, %c0_42, %c0_43] : memref<3x12x4xbf16, #tpu.memory_space<vmem>>, vector<1x12x4xbf16>
    %68 = vector.shape_cast %67 : vector<1x12x4xbf16> to vector<12x4xbf16>
    %cst_44 = arith.constant dense<0.000000e+00> : vector<256x4xf32>
    %69 = tpu.matmul %66, %68, %cst_44 {dimension_numbers = #tpu.dot_dimension_numbers<[1], [0], [0], [1], [0, 0, 1, 1], [], []>} : vector<256x12xbf16>, vector<12x4xbf16>, vector<256x4xf32> -> vector<256x4xf32>
    %70 = arith.addf %60, %69 : vector<256x4xf32>
    %71 = vector.extract_strided_slice %48 {offsets = [2, 0, 0], sizes = [16, 19, 4], strides = [1, 1, 1]} : vector<18x19x4xbf16> to vector<16x19x4xbf16>
    %72 = vector.extract_strided_slice %71 {offsets = [0, 1, 0], sizes = [16, 16, 4], strides = [1, 1, 1]} : vector<16x19x4xbf16> to vector<16x16x4xbf16>
    %73 = vector.extract_strided_slice %71 {offsets = [0, 2, 0], sizes = [16, 16, 4], strides = [1, 1, 1]} : vector<16x19x4xbf16> to vector<16x16x4xbf16>
    %74 = vector.extract_strided_slice %71 {offsets = [0, 3, 0], sizes = [16, 16, 4], strides = [1, 1, 1]} : vector<16x19x4xbf16> to vector<16x16x4xbf16>
    %75 = tpu.concatenate %72, %73, %74 in 2 : vector<16x16x4xbf16>, vector<16x16x4xbf16>, vector<16x16x4xbf16> -> vector<16x16x12xbf16>
    %76 = vector.shape_cast %75 : vector<16x16x12xbf16> to vector<256x12xbf16>
    %c2_45 = arith.constant 2 : index
    %c0_46 = arith.constant 0 : index
    %c0_47 = arith.constant 0 : index
    %77 = vector.load %arg4[%c2_45, %c0_46, %c0_47] : memref<3x12x4xbf16, #tpu.memory_space<vmem>>, vector<1x12x4xbf16>
    %78 = vector.shape_cast %77 : vector<1x12x4xbf16> to vector<12x4xbf16>
    %cst_48 = arith.constant dense<0.000000e+00> : vector<256x4xf32>
    %79 = tpu.matmul %76, %78, %cst_48 {dimension_numbers = #tpu.dot_dimension_numbers<[1], [0], [0], [1], [0, 0, 1, 1], [], []>} : vector<256x12xbf16>, vector<12x4xbf16>, vector<256x4xf32> -> vector<256x4xf32>
    %80 = arith.addf %70, %79 : vector<256x4xf32>
    %cst_49 = arith.constant 2.000000e-01 : f32
    %81 = vector.broadcast %cst_49 : f32 to vector<256x4xf32>
    %82 = arith.mulf %81, %80 : vector<256x4xf32>
    %83 = arith.maximumf %80, %82 : vector<256x4xf32>
    %84 = vector.shape_cast %1 : vector<16x16x8xbf16> to vector<256x8xbf16>
    %c0_50 = arith.constant 0 : index
    %c0_51 = arith.constant 0 : index
    %85 = vector.load %arg6[%c0_50, %c0_51] : memref<8x4xbf16, #tpu.memory_space<vmem>>, vector<8x4xbf16>
    %cst_52 = arith.constant dense<0.000000e+00> : vector<256x4xf32>
    %86 = tpu.matmul %84, %85, %cst_52 {dimension_numbers = #tpu.dot_dimension_numbers<[1], [0], [0], [1], [0, 0, 1, 1], [], []>} : vector<256x8xbf16>, vector<8x4xbf16>, vector<256x4xf32> -> vector<256x4xf32>
    %c0_53 = arith.constant 0 : index
    %c0_54 = arith.constant 0 : index
    %87 = vector.load %arg7[%c0_53, %c0_54] : memref<1x4xf32, #tpu.memory_space<vmem>>, vector<1x4xf32>
    %88 = vector.broadcast %87 : vector<1x4xf32> to vector<256x4xf32>
    %89 = arith.addf %86, %88 : vector<256x4xf32>
    %90 = arith.addf %83, %89 : vector<256x4xf32>
    %91 = vector.shape_cast %90 : vector<256x4xf32> to vector<16x16x4xf32>
    %c0_55 = arith.constant 0 : index
    %c0_56 = arith.constant 0 : index
    %c0_57 = arith.constant 0 : index
    %c0_58 = arith.constant 0 : index
    %92 = vector.load %arg8[%c0_55, %c0_56, %c0_57, %c0_58] : memref<1x16x16x4xf32, #tpu.memory_space<vmem>>, vector<1x16x16x4xf32>
    %93 = vector.shape_cast %92 : vector<1x16x16x4xf32> to vector<16x16x4xf32>
    %94 = vector.shape_cast %91 : vector<16x16x4xf32> to vector<1x16x16x4xf32>
    tpu.vector_store %arg8[%c0_55, %c0_56, %c0_57, %c0_58], %94 {strides = array<i32>} : memref<1x16x16x4xf32, #tpu.memory_space<vmem>>, vector<1x16x16x4xf32>,
    return
  }
  func.func @transform_0(%arg0: i32) -> (i32, i32, i32, i32) {
    %c0_i32 = arith.constant 0 : i32
    %c0_i32_0 = arith.constant 0 : i32
    %c0_i32_1 = arith.constant 0 : i32
    %c0_i32_2 = arith.constant 0 : i32
    return %arg0, %c0_i32, %c0_i32_0, %c0_i32_1 : i32, i32, i32, i32
  }
  func.func @transform_1(%arg0: i32) -> (i32, i32, i32) {
    %c0_i32 = arith.constant 0 : i32
    %c0_i32_0 = arith.constant 0 : i32
    %c0_i32_1 = arith.constant 0 : i32
    %c0_i32_2 = arith.constant 0 : i32
    return %c0_i32, %c0_i32_0, %c0_i32_1 : i32, i32, i32
  }
  func.func @transform_2(%arg0: i32) -> (i32, i32) {
    %c0_i32 = arith.constant 0 : i32
    %c0_i32_0 = arith.constant 0 : i32
    %c0_i32_1 = arith.constant 0 : i32
    return %c0_i32, %c0_i32_0 : i32, i32
  }
  func.func @transform_3(%arg0: i32) -> (i32, i32, i32) {
    %c0_i32 = arith.constant 0 : i32
    %c0_i32_0 = arith.constant 0 : i32
    %c0_i32_1 = arith.constant 0 : i32
    %c0_i32_2 = arith.constant 0 : i32
    return %c0_i32, %c0_i32_0, %c0_i32_1 : i32, i32, i32
  }
  func.func @transform_4(%arg0: i32) -> (i32, i32) {
    %c0_i32 = arith.constant 0 : i32
    %c0_i32_0 = arith.constant 0 : i32
    %c0_i32_1 = arith.constant 0 : i32
    return %c0_i32, %c0_i32_0 : i32, i32
  }
  func.func @transform_5(%arg0: i32) -> (i32, i32) {
    %c0_i32 = arith.constant 0 : i32
    %c0_i32_0 = arith.constant 0 : i32
    %c0_i32_1 = arith.constant 0 : i32
    return %c0_i32, %c0_i32_0 : i32, i32
  }
  func.func @transform_6(%arg0: i32) -> (i32, i32) {
    %c0_i32 = arith.constant 0 : i32
    %c0_i32_0 = arith.constant 0 : i32
    %c0_i32_1 = arith.constant 0 : i32
    return %c0_i32, %c0_i32_0 : i32, i32
  }
  func.func @transform_7(%arg0: i32) -> (i32, i32, i32, i32) {
    %c0_i32 = arith.constant 0 : i32
    %c0_i32_0 = arith.constant 0 : i32
    %c0_i32_1 = arith.constant 0 : i32
    %c0_i32_2 = arith.constant 0 : i32
    return %arg0, %c0_i32, %c0_i32_0, %c0_i32_1 : i32, i32, i32, i32
  }
}

</mosaic_0001>

<llo_original>
// kernel: unet_up_block.1
$region0: #{unet_up_block.1}
  #allocation0 [shape = 'u32[]', space=smem, size = 0x4, offset = 0x4, fixed_abs, tag = 'smem constant byte address 0x4 - core index']
  #allocation1 [shape = 'u32[144,128]{1,0:T(1,128)}', space=vmem, size = 0x12000, scoped, tag = 'internal scratch']
  #allocation2 [shape = 'bf16[18,19,8]{2,1,0:T(8,128)(2,1)}', space=vmem, size = 0x1b000, scoped, tag = 'scratch operand']
  #allocation3 [shape = 'bf16[18,19,4]{2,1,0:T(8,128)(2,1)}', space=vmem, size = 0x1b000, scoped, tag = 'scratch operand']
  %s0 = inlined_call_operand.vmem [shape: bf16[2,16,16,8], index: 0, kind: input, shape index: {}]
  %s1 = inlined_call_operand.vmem [shape: bf16[3,24,4], index: 1, kind: input, shape index: {}]
  %s2 = inlined_call_operand.vmem [shape: f32[1,4], index: 2, kind: input, shape index: {}]
  %s3 = inlined_call_operand.vmem [shape: bf16[3,12,4], index: 3, kind: input, shape index: {}]
  %s4 = inlined_call_operand.vmem [shape: f32[1,4], index: 4, kind: input, shape index: {}]
  %s5 = inlined_call_operand.vmem [shape: bf16[8,4], index: 5, kind: input, shape index: {}]
  %s6 = inlined_call_operand.vmem [shape: f32[1,4], index: 6, kind: input, shape index: {}]
  %s7 = inlined_call_operand.vmem [shape: f32[2,16,16,4], index: 7, kind: output, shape index: {}]
  %s8 = sld [smem:[#allocation0]]
  $region61: #{unet_up_block.1} parent=0
    _
  %s10 = ssub.s32 1, %s8
  %s11 = scalar_select 0, %s10, %s8
  loop: start=0, step=1, limit=4
  $region2: #{unet_up_block.1} parent=0 // loop_pre_header
    _
  $region3: #{unet_up_block.1} parent=0 // loop_header
    %s13 = sphi 0, %s17
    %p14 = scmp.ge.s32.totalorder %s13, 4
    %s23 = sphi 0, %s25
    %s26 = sphi 0, %s23
    %s27 = sphi 0, %s26
    %s43 = sphi 0, %s27
    %s47 = sphi 0, %s47
    %s49 = sphi 0, %s47
    %s50 = sphi 0, %s49
    %s64 = sphi 0, %s50
    %s68 = sphi 0, %s68
    %s70 = sphi 0, %s68
    %s71 = sphi 0, %s70
    %s85 = sphi 0, %s71
    %s89 = sphi 0, %s89
    %s91 = sphi 0, %s89
    %s92 = sphi 0, %s91
    %s106 = sphi 0, %s92
    %s110 = sphi 0, %s110
    %s112 = sphi 0, %s110
    %s113 = sphi 0, %s112
    %s127 = sphi 0, %s113
    %s131 = sphi 0, %s131
    %s133 = sphi 0, %s131
    %s134 = sphi 0, %s133
    %s148 = sphi 0, %s134
    %s152 = sphi 0, %s152
    %s154 = sphi 0, %s152
    %s155 = sphi 0, %s154
    %s169 = sphi 0, %s155
    %s175 = sphi 0, %s177
    %s178 = sphi 0, %s175
    %s179 = sphi 0, %s178
    %s195 = sphi 0, %s179
  $region4: #{unet_up_block.1} parent=0 // loop_header_branch
    %16 = sbr.rel (%p14) target = $region8
  $region5: #{unet_up_block.1} parent=0 // loop_body
    %s18 = ssub.s32 %s13, 1
    %s19 = ssub.s32 %s13, 2
    %s20 = sadd.s32 %s13, 1
    %s21 = ssub.s32 %s13, %s20
    %p22 = scmp.eq.s32.totalorder %s21, 0
    %s24 = sadd.s32 %s23, 1
    %s25 = scalar_select %p22, %s23, %s24
    %p28 = pneg %p22
    %p29 = scmp.eq.s32.totalorder %s13, 1
    %p30 = por %p28, %p29
    %p31 = scmp.ne.s32.totalorder %s23, %s26
    %p32 = scmp.eq.s32.totalorder %s13, 0
    %p33 = por %p31, %p32
    %p34 = scmp.ne.s32.totalorder %s23, %s26
    %p35 = scmp.eq.s32.totalorder %s18, 1
    %p36 = por %p34, %p35
    %p37 = scmp.ne.s32.totalorder %s26, %s27
    %p38 = scmp.eq.s32.totalorder %s18, 0
    %p39 = por %p37, %p38
    %p40 = scmp.ne.s32.totalorder %s26, %s27
    %p41 = scmp.eq.s32.totalorder %s19, 1
    %p42 = por %p40, %p41
    %p44 = scmp.ne.s32.totalorder %s27, %s43
    %p45 = scmp.eq.s32.totalorder %s19, 0
    %p46 = por %p44, %p45
    %s48 = sadd.s32 %s47, 1
    %p51 = scmp.eq.s32.totalorder %s13, 1
    %p52 = scmp.ne.s32.totalorder %s47, %s49
    %p53 = scmp.eq.s32.totalorder %s13, 0
    %p54 = por %p52, %p53
    %p55 = scmp.ne.s32.totalorder %s47, %s49
    %p56 = scmp.eq.s32.totalorder %s18, 1
    %p57 = por %p55, %p56
    %p58 = scmp.ne.s32.totalorder %s49, %s50
    %p59 = scmp.eq.s32.totalorder %s18, 0
    %p60 = por %p58, %p59
    %p61 = scmp.ne.s32.totalorder %s49, %s50
    %p62 = scmp.eq.s32.totalorder %s19, 1
    %p63 = por %p61, %p62
    %p65 = scmp.ne.s32.totalorder %s50, %s64
    %p66 = scmp.eq.s32.totalorder %s19, 0
    %p67 = por %p65, %p66
    %s69 = sadd.s32 %s68, 1
    %p72 = scmp.eq.s32.totalorder %s13, 1
    %p73 = scmp.ne.s32.totalorder %s68, %s70
    %p74 = scmp.eq.s32.totalorder %s13, 0
    %p75 = por %p73, %p74
    %p76 = scmp.ne.s32.totalorder %s68, %s70
    %p77 = scmp.eq.s32.totalorder %s18, 1
    %p78 = por %p76, %p77
    %p79 = scmp.ne.s32.totalorder %s70, %s71
    %p80 = scmp.eq.s32.totalorder %s18, 0
    %p81 = por %p79, %p80
    %p82 = scmp.ne.s32.totalorder %s70, %s71
    %p83 = scmp.eq.s32.totalorder %s19, 1
    %p84 = por %p82, %p83
    %p86 = scmp.ne.s32.totalorder %s71, %s85
    %p87 = scmp.eq.s32.totalorder %s19, 0
    %p88 = por %p86, %p87
    %s90 = sadd.s32 %s89, 1
    %p93 = scmp.eq.s32.totalorder %s13, 1
    %p94 = scmp.ne.s32.totalorder %s89, %s91
    %p95 = scmp.eq.s32.totalorder %s13, 0
    %p96 = por %p94, %p95
    %p97 = scmp.ne.s32.totalorder %s89, %s91
    %p98 = scmp.eq.s32.totalorder %s18, 1
    %p99 = por %p97, %p98
    %p100 = scmp.ne.s32.totalorder %s91, %s92
    %p101 = scmp.eq.s32.totalorder %s18, 0
    %p102 = por %p100, %p101
    %p103 = scmp.ne.s32.totalorder %s91, %s92
    %p104 = scmp.eq.s32.totalorder %s19, 1
    %p105 = por %p103, %p104
    %p107 = scmp.ne.s32.totalorder %s92, %s106
    %p108 = scmp.eq.s32.totalorder %s19, 0
    %p109 = por %p107, %p108
    %s111 = sadd.s32 %s110, 1
    %p114 = scmp.eq.s32.totalorder %s13, 1
    %p115 = scmp.ne.s32.totalorder %s110, %s112
    %p116 = scmp.eq.s32.totalorder %s13, 0
    %p117 = por %p115, %p116
    %p118 = scmp.ne.s32.totalorder %s110, %s112
    %p119 = scmp.eq.s32.totalorder %s18, 1
    %p120 = por %p118, %p119
    %p121 = scmp.ne.s32.totalorder %s112, %s113
    %p122 = scmp.eq.s32.totalorder %s18, 0
    %p123 = por %p121, %p122
    %p124 = scmp.ne.s32.totalorder %s112, %s113
    %p125 = scmp.eq.s32.totalorder %s19, 1
    %p126 = por %p124, %p125
    %p128 = scmp.ne.s32.totalorder %s113, %s127
    %p129 = scmp.eq.s32.totalorder %s19, 0
    %p130 = por %p128, %p129
    %s132 = sadd.s32 %s131, 1
    %p135 = scmp.eq.s32.totalorder %s13, 1
    %p136 = scmp.ne.s32.totalorder %s131, %s133
    %p137 = scmp.eq.s32.totalorder %s13, 0
    %p138 = por %p136, %p137
    %p139 = scmp.ne.s32.totalorder %s131, %s133
    %p140 = scmp.eq.s32.totalorder %s18, 1
    %p141 = por %p139, %p140
    %p142 = scmp.ne.s32.totalorder %s133, %s134
    %p143 = scmp.eq.s32.totalorder %s18, 0
    %p144 = por %p142, %p143
    %p145 = scmp.ne.s32.totalorder %s133, %s134
    %p146 = scmp.eq.s32.totalorder %s19, 1
    %p147 = por %p145, %p146
    %p149 = scmp.ne.s32.totalorder %s134, %s148
    %p150 = scmp.eq.s32.totalorder %s19, 0
    %p151 = por %p149, %p150
    %s153 = sadd.s32 %s152, 1
    %p156 = scmp.eq.s32.totalorder %s13, 1
    %p157 = scmp.ne.s32.totalorder %s152, %s154
    %p158 = scmp.eq.s32.totalorder %s13, 0
    %p159 = por %p157, %p158
    %p160 = scmp.ne.s32.totalorder %s152, %s154
    %p161 = scmp.eq.s32.totalorder %s18, 1
    %p162 = por %p160, %p161
    %p163 = scmp.ne.s32.totalorder %s154, %s155
    %p164 = scmp.eq.s32.totalorder %s18, 0
    %p165 = por %p163, %p164
    %p166 = scmp.ne.s32.totalorder %s154, %s155
    %p167 = scmp.eq.s32.totalorder %s19, 1
    %p168 = por %p166, %p167
    %p170 = scmp.ne.s32.totalorder %s155, %s169
    %p171 = scmp.eq.s32.totalorder %s19, 0
    %p172 = por %p170, %p171
    %s173 = ssub.s32 %s13, %s20
    %p174 = scmp.eq.s32.totalorder %s173, 0
    %s176 = sadd.s32 %s175, 1
    %s177 = scalar_select %p174, %s175, %s176
    %p180 = pneg %p174
    %p181 = scmp.eq.s32.totalorder %s13, 1
    %p182 = por %p180, %p181
    %p183 = scmp.ne.s32.totalorder %s175, %s178
    %p184 = scmp.eq.s32.totalorder %s13, 0
    %p185 = por %p183, %p184
    %p186 = scmp.ne.s32.totalorder %s175, %s178
    %p187 = scmp.eq.s32.totalorder %s18, 1
    %p188 = por %p186, %p187
    %p189 = scmp.ne.s32.totalorder %s178, %s179
    %p190 = scmp.eq.s32.totalorder %s18, 0
    %p191 = por %p189, %p190
    %p192 = scmp.ne.s32.totalorder %s178, %s179
    %p193 = scmp.eq.s32.totalorder %s19, 1
    %p194 = por %p192, %p193
    %p196 = scmp.ne.s32.totalorder %s179, %s195
    %p197 = scmp.eq.s32.totalorder %s19, 0
    %p198 = por %p196, %p197
    %p199 = scmp.le.s32.totalorder 1, %s13
    %p200 = scmp.lt.s32.totalorder %s13, 3
    %p201 = pnand %p199, %p200
    %p202 = pneg %p201
    // Predicated region
    $region9: #{unet_up_block.1} parent=5 // pred_check
      _
    $region10: #{unet_up_block.1} parent=5 // pred_check_branch
      %204 = sbr.rel (%p201) target = $region12
    $region11: #{unet_up_block.1} parent=5 // pred_region
      %s205 = ssub.s32 %s13, 1
      // Predicated region
      $region13: #{unet_up_block.1} parent=11 // pred_check
        %p206 = pneg %p60
      $region14: #{unet_up_block.1} parent=11 // pred_check_branch
        %208 = sbr.rel (%p206) target = $region16
      $region15: #{unet_up_block.1} parent=11 // pred_region
        _
      $region16: #{unet_up_block.1} parent=11 // pred_fallthru
        _
      // Predicated region
      $region17: #{unet_up_block.1} parent=11 // pred_check
        %p209 = pneg %p81
      $region18: #{unet_up_block.1} parent=11 // pred_check_branch
        %211 = sbr.rel (%p209) target = $region20
      $region19: #{unet_up_block.1} parent=11 // pred_region
        _
      $region20: #{unet_up_block.1} parent=11 // pred_fallthru
        _
      // Predicated region
      $region21: #{unet_up_block.1} parent=11 // pred_check
        %p212 = pneg %p102
      $region22: #{unet_up_block.1} parent=11 // pred_check_branch
        %214 = sbr.rel (%p212) target = $region24
      $region23: #{unet_up_block.1} parent=11 // pred_region
        _
      $region24: #{unet_up_block.1} parent=11 // pred_fallthru
        _
      // Predicated region
      $region25: #{unet_up_block.1} parent=11 // pred_check
        %p215 = pneg %p123
      $region26: #{unet_up_block.1} parent=11 // pred_check_branch
        %217 = sbr.rel (%p215) target = $region28
      $region27: #{unet_up_block.1} parent=11 // pred_region
        _
      $region28: #{unet_up_block.1} parent=11 // pred_fallthru
        _
      // Predicated region
      $region29: #{unet_up_block.1} parent=11 // pred_check
        %p218 = pneg %p144
      $region30: #{unet_up_block.1} parent=11 // pred_check_branch
        %220 = sbr.rel (%p218) target = $region32
      $region31: #{unet_up_block.1} parent=11 // pred_region
        _
      $region32: #{unet_up_block.1} parent=11 // pred_fallthru
        _
      // Predicated region
      $region33: #{unet_up_block.1} parent=11 // pred_check
        %p221 = pneg %p165
      $region34: #{unet_up_block.1} parent=11 // pred_check_branch
        %223 = sbr.rel (%p221) target = $region36
      $region35: #{unet_up_block.1} parent=11 // pred_region
        _
      $region36: #{unet_up_block.1} parent=11 // pred_fallthru
        _
    $region12: #{unet_up_block.1} parent=5 // pred_fallthru
      _
    %p224 = scmp.lt.s32.totalorder %s13, 2
    // Predicated region
    $region37: #{unet_up_block.1} parent=5 // pred_check
      %p225 = pneg %p224
    $region38: #{unet_up_block.1} parent=5 // pred_check_branch
      %227 = sbr.rel (%p225) target = $region40
    $region39: #{unet_up_block.1} parent=5 // pred_region
      // Predicated region
      $region41: #{unet_up_block.1} parent=39 // pred_check
        %p228 = pneg %p33
      $region42: #{unet_up_block.1} parent=39 // pred_check_branch
        %230 = sbr.rel (%p228) target = $region44
      $region43: #{unet_up_block.1} parent=39 // pred_region
        %p231 = scmp.lt.s32.totalorder %s13, 1
        %s232 = scalar_select %p231, %s13, 1
        %s233 = smul.addr %s232, 32
        %s234 = smul.addr %s233, 4
        %s235 = scalar_lea.vmem %s0, %s234
      $region44: #{unet_up_block.1} parent=39 // pred_fallthru
        _
    $region40: #{unet_up_block.1} parent=5 // pred_fallthru
      _
    %p236 = scmp.le.s32.totalorder 1, %s13
    %p237 = scmp.lt.s32.totalorder %s13, 3
    %p238 = pnand %p236, %p237
    %p239 = pneg %p238
    // Predicated region
    $region45: #{unet_up_block.1} parent=5 // pred_check
      _
    $region46: #{unet_up_block.1} parent=5 // pred_check_branch
      %241 = sbr.rel (%p238) target = $region48
    $region47: #{unet_up_block.1} parent=5 // pred_region
      %s242 = ssub.s32 %s13, 1
      %p243 = scmp.lt.s32.totalorder %s18, 1
      %s244 = scalar_select %p243, %s18, 1
      %s245 = smul.addr %s244, 32
      %s246 = smul.addr %s245, 4
      %s247 = scalar_lea.vmem %s0, %s246
      %p248 = pneg %p39
      %p249 = pneg %p36
      %p250 = pneg %p60
      %p251 = pneg %p57
      %p252 = pneg %p81
      %p253 = pneg %p78
      %p254 = pneg %p102
      %p255 = pneg %p99
      %p256 = pneg %p123
      %p257 = pneg %p120
      %p258 = pneg %p144
      %p259 = pneg %p141
      %p260 = pneg %p165
      %p261 = pneg %p162
      %p262 = pneg %p191
      %p263 = pneg %p188
      %p264 = scmp.lt.s32.totalorder %s18, 1
      %s265 = scalar_select %p264, %s18, 1
      %s266 = smul.addr %s265, 32
      %s267 = smul.addr %s266, 8
      %s268 = scalar_lea.vmem %s7, %s267
      %p269 = scmp.lt.s32.totalorder %s18, 1
      %s270 = scalar_select %p269, %s18, 1
      %s271 = smul.addr %s270, 32
      %s272 = smul.addr %s271, 4
      %s273 = scalar_lea.vmem %s0, %s272
      %p274 = scmp.lt.s32.totalorder %s18, 1
      %s275 = scalar_select %p274, %s18, 1
      %s276 = smul.addr %s275, 32
      %s277 = smul.addr %s276, 8
      %s278 = scalar_lea.vmem %s7, %s277
      %v280 = vld [vmem:[%s273] sm:$0xf]
      %v281 = vld [vmem:[%s273 + $0x4] sm:$0xf]
      %v282 = vld [vmem:[%s273 + $0x8] sm:$0xf]
      %v283 = vld [vmem:[%s273 + $0xc] sm:$0xf]
      %v284 = vld [vmem:[%s273 + $0x10] sm:$0xf]
      %v285 = vld [vmem:[%s273 + $0x14] sm:$0xf]
      %v286 = vld [vmem:[%s273 + $0x18] sm:$0xf]
      %v287 = vld [vmem:[%s273 + $0x1c] sm:$0xf]
      %v288 = vld [vmem:[%s273 + $0x20] sm:$0xf]
      %v289 = vld [vmem:[%s273 + $0x24] sm:$0xf]
      %v290 = vld [vmem:[%s273 + $0x28] sm:$0xf]
      %v291 = vld [vmem:[%s273 + $0x2c] sm:$0xf]
      %v292 = vld [vmem:[%s273 + $0x30] sm:$0xf]
      %v293 = vld [vmem:[%s273 + $0x34] sm:$0xf]
      %v294 = vld [vmem:[%s273 + $0x38] sm:$0xf]
      %v295 = vld [vmem:[%s273 + $0x3c] sm:$0xf]
      %v296 = vld [vmem:[%s273 + $0x40] sm:$0xf]
      %v297 = vld [vmem:[%s273 + $0x44] sm:$0xf]
      %v298 = vld [vmem:[%s273 + $0x48] sm:$0xf]
      %v299 = vld [vmem:[%s273 + $0x4c] sm:$0xf]
      %v300 = vld [vmem:[%s273 + $0x50] sm:$0xf]
      %v301 = vld [vmem:[%s273 + $0x54] sm:$0xf]
      %v302 = vld [vmem:[%s273 + $0x58] sm:$0xf]
      %v303 = vld [vmem:[%s273 + $0x5c] sm:$0xf]
      %v304 = vld [vmem:[%s273 + $0x60] sm:$0xf]
      %v305 = vld [vmem:[%s273 + $0x64] sm:$0xf]
      %v306 = vld [vmem:[%s273 + $0x68] sm:$0xf]
      %v307 = vld [vmem:[%s273 + $0x6c] sm:$0xf]
      %v308 = vld [vmem:[%s273 + $0x70] sm:$0xf]
      %v309 = vld [vmem:[%s273 + $0x74] sm:$0xf]
      %v310 = vld [vmem:[%s273 + $0x78] sm:$0xf]
      %v311 = vld [vmem:[%s273 + $0x7c] sm:$0xf]
      %vm312 = vcmask 60416
      %313 = vst.msk [vmem:[#allocation2] sm:$0xf] %vm312, 0
      %314 = vst.msk [vmem:[#allocation2 + $0x4] sm:$0xf] %vm312, 0
      %vm315 = vcmask 58368
      %vm316 = vsmask.f32 1280
      %vm317 = vmand %vm315, %vm316
      %v318 = vld [vmem:[#allocation2 + $0x8] sm:$0x3]
      %v319 = vsel %vm317, 0, %v318
      %320 = vst [vmem:[#allocation2 + $0x8] sm:$0x3] %v319
      %321 = vst.msk [vmem:[#allocation2 + $0xc] sm:$0xf] %vm312, 0
      %322 = vst.msk [vmem:[#allocation2 + $0x10] sm:$0xf] %vm312, 0
      %v323 = vld [vmem:[#allocation2 + $0x14] sm:$0x3]
      %v324 = vsel %vm317, 0, %v323
      %325 = vst [vmem:[#allocation2 + $0x14] sm:$0x3] %v324
      %326 = vst.msk [vmem:[#allocation2 + $0x18] sm:$0xf] %vm312, 0
      %327 = vst.msk [vmem:[#allocation2 + $0x1c] sm:$0xf] %vm312, 0
      %v328 = vld [vmem:[#allocation2 + $0x20] sm:$0x3]
      %v329 = vsel %vm317, 0, %v328
      %330 = vst [vmem:[#allocation2 + $0x20] sm:$0x3] %v329
      %331 = vst.msk [vmem:[#allocation2 + $0x24] sm:$0xf] %vm312, 0
      %332 = vst.msk [vmem:[#allocation2 + $0x28] sm:$0xf] %vm312, 0
      %v333 = vld [vmem:[#allocation2 + $0x2c] sm:$0x3]
      %v334 = vsel %vm317, 0, %v333
      %335 = vst [vmem:[#allocation2 + $0x2c] sm:$0x3] %v334
      %336 = vst.msk [vmem:[#allocation2 + $0x30] sm:$0xf] %vm312, 0
      %337 = vst.msk [vmem:[#allocation2 + $0x34] sm:$0xf] %vm312, 0
      %v338 = vld [vmem:[#allocation2 + $0x38] sm:$0x3]
      %v339 = vsel %vm317, 0, %v338
      %340 = vst [vmem:[#allocation2 + $0x38] sm:$0x3] %v339
      %341 = vst.msk [vmem:[#allocation2 + $0x3c] sm:$0xf] %vm312, 0
      %342 = vst.msk [vmem:[#allocation2 + $0x40] sm:$0xf] %vm312, 0
      %v343 = vld [vmem:[#allocation2 + $0x44] sm:$0x3]
      %v344 = vsel %vm317, 0, %v343
      %345 = vst [vmem:[#allocation2 + $0x44] sm:$0x3] %v344
      %346 = vst.msk [vmem:[#allocation2 + $0x48] sm:$0xf] %vm312, 0
      %347 = vst.msk [vmem:[#allocation2 + $0x4c] sm:$0xf] %vm312, 0
      %v348 = vld [vmem:[#allocation2 + $0x50] sm:$0x3]
      %v349 = vsel %vm317, 0, %v348
      %350 = vst [vmem:[#allocation2 + $0x50] sm:$0x3] %v349
      %351 = vst.msk [vmem:[#allocation2 + $0x54] sm:$0xf] %vm312, 0
      %352 = vst.msk [vmem:[#allocation2 + $0x58] sm:$0xf] %vm312, 0
      %v353 = vld [vmem:[#allocation2 + $0x5c] sm:$0x3]
      %v354 = vsel %vm317, 0, %v353
      %355 = vst [vmem:[#allocation2 + $0x5c] sm:$0x3] %v354
      %356 = vst.msk [vmem:[#allocation2 + $0x60] sm:$0xf] %vm312, 0
      %357 = vst.msk [vmem:[#allocation2 + $0x64] sm:$0xf] %vm312, 0
      %v358 = vld [vmem:[#allocation2 + $0x68] sm:$0x3]
      %v359 = vsel %vm317, 0, %v358
      %360 = vst [vmem:[#allocation2 + $0x68] sm:$0x3] %v359
      %361 = vst.msk [vmem:[#allocation2 + $0x6c] sm:$0xf] %vm312, 0
      %362 = vst.msk [vmem:[#allocation2 + $0x70] sm:$0xf] %vm312, 0
      %v363 = vld [vmem:[#allocation2 + $0x74] sm:$0x3]
      %v364 = vsel %vm317, 0, %v363
      %365 = vst [vmem:[#allocation2 + $0x74] sm:$0x3] %v364
      %366 = vst.msk [vmem:[#allocation2 + $0x78] sm:$0xf] %vm312, 0
      %367 = vst.msk [vmem:[#allocation2 + $0x7c] sm:$0xf] %vm312, 0
      %v368 = vld [vmem:[#allocation2 + $0x80] sm:$0x3]
      %v369 = vsel %vm317, 0, %v368
      %370 = vst [vmem:[#allocation2 + $0x80] sm:$0x3] %v369
      %371 = vst.msk [vmem:[#allocation2 + $0x84] sm:$0xf] %vm312, 0
      %372 = vst.msk [vmem:[#allocation2 + $0x88] sm:$0xf] %vm312, 0
      %v373 = vld [vmem:[#allocation2 + $0x8c] sm:$0x3]
      %v374 = vsel %vm317, 0, %v373
      %375 = vst [vmem:[#allocation2 + $0x8c] sm:$0x3] %v374
      %376 = vst.msk [vmem:[#allocation2 + $0x90] sm:$0xf] %vm312, 0
      %377 = vst.msk [vmem:[#allocation2 + $0x94] sm:$0xf] %vm312, 0
      %v378 = vld [vmem:[#allocation2 + $0x98] sm:$0x3]
      %v379 = vsel %vm317, 0, %v378
      %380 = vst [vmem:[#allocation2 + $0x98] sm:$0x3] %v379
      %381 = vst.msk [vmem:[#allocation2 + $0x9c] sm:$0xf] %vm312, 0
      %382 = vst.msk [vmem:[#allocation2 + $0xa0] sm:$0xf] %vm312, 0
      %v383 = vld [vmem:[#allocation2 + $0xa4] sm:$0x3]
      %v384 = vsel %vm317, 0, %v383
      %385 = vst [vmem:[#allocation2 + $0xa4] sm:$0x3] %v384
      %386 = vst.msk [vmem:[#allocation2 + $0xa8] sm:$0xf] %vm312, 0
      %387 = vst.msk [vmem:[#allocation2 + $0xac] sm:$0xf] %vm312, 0
      %v388 = vld [vmem:[#allocation2 + $0xb0] sm:$0x3]
      %v389 = vsel %vm317, 0, %v388
      %390 = vst [vmem:[#allocation2 + $0xb0] sm:$0x3] %v389
      %391 = vst.msk [vmem:[#allocation2 + $0xb4] sm:$0xf] %vm312, 0
      %392 = vst.msk [vmem:[#allocation2 + $0xb8] sm:$0xf] %vm312, 0
      %v393 = vld [vmem:[#allocation2 + $0xbc] sm:$0x3]
      %v394 = vsel %vm317, 0, %v393
      %395 = vst [vmem:[#allocation2 + $0xbc] sm:$0x3] %v394
      %396 = vst.msk [vmem:[#allocation2 + $0xc0] sm:$0xf] %vm312, 0
      %397 = vst.msk [vmem:[#allocation2 + $0xc4] sm:$0xf] %vm312, 0
      %v398 = vld [vmem:[#allocation2 + $0xc8] sm:$0x3]
      %v399 = vsel %vm317, 0, %v398
      %400 = vst [vmem:[#allocation2 + $0xc8] sm:$0x3] %v399
      %401 = vst.msk [vmem:[#allocation2 + $0xcc] sm:$0xf] %vm312, 0
      %402 = vst.msk [vmem:[#allocation2 + $0xd0] sm:$0xf] %vm312, 0
      %v403 = vld [vmem:[#allocation2 + $0xd4] sm:$0x3]
      %v404 = vsel %vm317, 0, %v403
      %405 = vst [vmem:[#allocation2 + $0xd4] sm:$0x3] %v404
      %vm406 = vcmask 27648
      %407 = vst.msk [vmem:[#allocation3] sm:$0xf] %vm406, 0
      %408 = vst.msk [vmem:[#allocation3 + $0x4] sm:$0xf] %vm406, 0
      %vm409 = vcmask 25600
      %vm410 = vmand %vm409, %vm316
      %v411 = vld [vmem:[#allocation3 + $0x8] sm:$0x3]
      %v412 = vsel %vm410, 0, %v411
      %413 = vst [vmem:[#allocation3 + $0x8] sm:$0x3] %v412
      %414 = vst.msk [vmem:[#allocation3 + $0xc] sm:$0xf] %vm406, 0
      %415 = vst.msk [vmem:[#allocation3 + $0x10] sm:$0xf] %vm406, 0
      %v416 = vld [vmem:[#allocation3 + $0x14] sm:$0x3]
      %v417 = vsel %vm410, 0, %v416
      %418 = vst [vmem:[#allocation3 + $0x14] sm:$0x3] %v417
      %419 = vst.msk [vmem:[#allocation3 + $0x18] sm:$0xf] %vm406, 0
      %420 = vst.msk [vmem:[#allocation3 + $0x1c] sm:$0xf] %vm406, 0
      %v421 = vld [vmem:[#allocation3 + $0x20] sm:$0x3]
      %v422 = vsel %vm410, 0, %v421
      %423 = vst [vmem:[#allocation3 + $0x20] sm:$0x3] %v422
      %424 = vst.msk [vmem:[#allocation3 + $0x24] sm:$0xf] %vm406, 0
      %425 = vst.msk [vmem:[#allocation3 + $0x28] sm:$0xf] %vm406, 0
      %v426 = vld [vmem:[#allocation3 + $0x2c] sm:$0x3]
      %v427 = vsel %vm410, 0, %v426
      %428 = vst [vmem:[#allocation3 + $0x2c] sm:$0x3] %v427
      %429 = vst.msk [vmem:[#allocation3 + $0x30] sm:$0xf] %vm406, 0
      %430 = vst.msk [vmem:[#allocation3 + $0x34] sm:$0xf] %vm406, 0
      %v431 = vld [vmem:[#allocation3 + $0x38] sm:$0x3]
      %v432 = vsel %vm410, 0, %v431
      %433 = vst [vmem:[#allocation3 + $0x38] sm:$0x3] %v432
      %434 = vst.msk [vmem:[#allocation3 + $0x3c] sm:$0xf] %vm406, 0
      %435 = vst.msk [vmem:[#allocation3 + $0x40] sm:$0xf] %vm406, 0
      %v436 = vld [vmem:[#allocation3 + $0x44] sm:$0x3]
      %v437 = vsel %vm410, 0, %v436
      %438 = vst [vmem:[#allocation3 + $0x44] sm:$0x3] %v437
      %439 = vst.msk [vmem:[#allocation3 + $0x48] sm:$0xf] %vm406, 0
      %440 = vst.msk [vmem:[#allocation3 + $0x4c] sm:$0xf] %vm406, 0
      %v441 = vld [vmem:[#allocation3 + $0x50] sm:$0x3]
      %v442 = vsel %vm410, 0, %v441
      %443 = vst [vmem:[#allocation3 + $0x50] sm:$0x3] %v442
      %444 = vst.msk [vmem:[#allocation3 + $0x54] sm:$0xf] %vm406, 0
      %445 = vst.msk [vmem:[#allocation3 + $0x58] sm:$0xf] %vm406, 0
      %v446 = vld [vmem:[#allocation3 + $0x5c] sm:$0x3]
      %v447 = vsel %vm410, 0, %v446
      %448 = vst [vmem:[#allocation3 + $0x5c] sm:$0x3] %v447
      %449 = vst.msk [vmem:[#allocation3 + $0x60] sm:$0xf] %vm406, 0
      %450 = vst.msk [vmem:[#allocation3 + $0x64] sm:$0xf] %vm406, 0
      %v451 = vld [vmem:[#allocation3 + $0x68] sm:$0x3]
      %v452 = vsel %vm410, 0, %v451
      %453 = vst [vmem:[#allocation3 + $0x68] sm:$0x3] %v452
      %454 = vst.msk [vmem:[#allocation3 + $0x6c] sm:$0xf] %vm406, 0
      %455 = vst.msk [vmem:[#allocation3 + $0x70] sm:$0xf] %vm406, 0
      %v456 = vld [vmem:[#allocation3 + $0x74] sm:$0x3]
      %v457 = vsel %vm410, 0, %v456
      %458 = vst [vmem:[#allocation3 + $0x74] sm:$0x3] %v457
      %459 = vst.msk [vmem:[#allocation3 + $0x78] sm:$0xf] %vm406, 0
      %460 = vst.msk [vmem:[#allocation3 + $0x7c] sm:$0xf] %vm406, 0
      %v461 = vld [vmem:[#allocation3 + $0x80] sm:$0x3]
      %v462 = vsel %vm410, 0, %v461
      %463 = vst [vmem:[#allocation3 + $0x80] sm:$0x3] %v462
      %464 = vst.msk [vmem:[#allocation3 + $0x84] sm:$0xf] %vm406, 0
      %465 = vst.msk [vmem:[#allocation3 + $0x88] sm:$0xf] %vm406, 0
      %v466 = vld [vmem:[#allocation3 + $0x8c] sm:$0x3]
      %v467 = vsel %vm410, 0, %v466
      %468 = vst [vmem:[#allocation3 + $0x8c] sm:$0x3] %v467
      %469 = vst.msk [vmem:[#allocation3 + $0x90] sm:$0xf] %vm406, 0
      %470 = vst.msk [vmem:[#allocation3 + $0x94] sm:$0xf] %vm406, 0
      %v471 = vld [vmem:[#allocation3 + $0x98] sm:$0x3]
      %v472 = vsel %vm410, 0, %v471
      %473 = vst [vmem:[#allocation3 + $0x98] sm:$0x3] %v472
      %474 = vst.msk [vmem:[#allocation3 + $0x9c] sm:$0xf] %vm406, 0
      %475 = vst.msk [vmem:[#allocation3 + $0xa0] sm:$0xf] %vm406, 0
      %v476 = vld [vmem:[#allocation3 + $0xa4] sm:$0x3]
      %v477 = vsel %vm410, 0, %v476
      %478 = vst [vmem:[#allocation3 + $0xa4] sm:$0x3] %v477
      %479 = vst.msk [vmem:[#allocation3 + $0xa8] sm:$0xf] %vm406, 0
      %480 = vst.msk [vmem:[#allocation3 + $0xac] sm:$0xf] %vm406, 0
      %v481 = vld [vmem:[#allocation3 + $0xb0] sm:$0x3]
      %v482 = vsel %vm410, 0, %v481
      %483 = vst [vmem:[#allocation3 + $0xb0] sm:$0x3] %v482
      %484 = vst.msk [vmem:[#allocation3 + $0xb4] sm:$0xf] %vm406, 0
      %485 = vst.msk [vmem:[#allocation3 + $0xb8] sm:$0xf] %vm406, 0
      %v486 = vld [vmem:[#allocation3 + $0xbc] sm:$0x3]
      %v487 = vsel %vm410, 0, %v486
      %488 = vst [vmem:[#allocation3 + $0xbc] sm:$0x3] %v487
      %489 = vst.msk [vmem:[#allocation3 + $0xc0] sm:$0xf] %vm406, 0
      %490 = vst.msk [vmem:[#allocation3 + $0xc4] sm:$0xf] %vm406, 0
      %v491 = vld [vmem:[#allocation3 + $0xc8] sm:$0x3]
      %v492 = vsel %vm410, 0, %v491
      %493 = vst [vmem:[#allocation3 + $0xc8] sm:$0x3] %v492
      %494 = vst.msk [vmem:[#allocation3 + $0xcc] sm:$0xf] %vm406, 0
      %495 = vst.msk [vmem:[#allocation3 + $0xd0] sm:$0xf] %vm406, 0
      %v496 = vld [vmem:[#allocation3 + $0xd4] sm:$0x3]
      %v497 = vsel %vm410, 0, %v496
      %498 = vst [vmem:[#allocation3 + $0xd4] sm:$0x3] %v497
      %vm531 = vcmask 1040384
      %vm532 = vcmask 1044484
      %vm533 = vmor %vm531, %vm532
      %v534 = vrot.slane %v280, 7
      %v535 = vrot.slane %v534, 4
      %v536 = vrot.slane %v281, 7
      %v537 = vsel %vm533, %v535, %v536
      %v538 = vrot.slane %v536, 4
      %v539 = vrot.slane %v282, 7
      %v540 = vrot.slane %v539, 4
      %v541 = vrot.slane %v283, 7
      %v542 = vsel %vm533, %v540, %v541
      %v543 = vrot.slane %v541, 4
      %v544 = vrot.slane %v284, 7
      %v545 = vrot.slane %v544, 4
      %v546 = vrot.slane %v285, 7
      %v547 = vsel %vm533, %v545, %v546
      %v548 = vrot.slane %v546, 4
      %v549 = vrot.slane %v286, 7
      %v550 = vrot.slane %v549, 4
      %v551 = vrot.slane %v287, 7
      %v552 = vsel %vm533, %v550, %v551
      %v553 = vrot.slane %v551, 4
      %v554 = vrot.slane %v288, 7
      %v555 = vrot.slane %v554, 4
      %v556 = vrot.slane %v289, 7
      %v557 = vsel %vm533, %v555, %v556
      %v558 = vrot.slane %v556, 4
      %v559 = vrot.slane %v290, 7
      %v560 = vrot.slane %v559, 4
      %v561 = vrot.slane %v291, 7
      %v562 = vsel %vm533, %v560, %v561
      %v563 = vrot.slane %v561, 4
      %v564 = vrot.slane %v292, 7
      %v565 = vrot.slane %v564, 4
      %v566 = vrot.slane %v293, 7
      %v567 = vsel %vm533, %v565, %v566
      %v568 = vrot.slane %v566, 4
      %v569 = vrot.slane %v294, 7
      %v570 = vrot.slane %v569, 4
      %v571 = vrot.slane %v295, 7
      %v572 = vsel %vm533, %v570, %v571
      %v573 = vrot.slane %v571, 4
      %v574 = vrot.slane %v296, 7
      %v575 = vrot.slane %v574, 4
      %v576 = vrot.slane %v297, 7
      %v577 = vsel %vm533, %v575, %v576
      %v578 = vrot.slane %v576, 4
      %v579 = vrot.slane %v298, 7
      %v580 = vrot.slane %v579, 4
      %v581 = vrot.slane %v299, 7
      %v582 = vsel %vm533, %v580, %v581
      %v583 = vrot.slane %v581, 4
      %v584 = vrot.slane %v300, 7
      %v585 = vrot.slane %v584, 4
      %v586 = vrot.slane %v301, 7
      %v587 = vsel %vm533, %v585, %v586
      %v588 = vrot.slane %v586, 4
      %v589 = vrot.slane %v302, 7
      %v590 = vrot.slane %v589, 4
      %v591 = vrot.slane %v303, 7
      %v592 = vsel %vm533, %v590, %v591
      %v593 = vrot.slane %v591, 4
      %v594 = vrot.slane %v304, 7
      %v595 = vrot.slane %v594, 4
      %v596 = vrot.slane %v305, 7
      %v597 = vsel %vm533, %v595, %v596
      %v598 = vrot.slane %v596, 4
      %v599 = vrot.slane %v306, 7
      %v600 = vrot.slane %v599, 4
      %v601 = vrot.slane %v307, 7
      %v602 = vsel %vm533, %v600, %v601
      %v603 = vrot.slane %v601, 4
      %v604 = vrot.slane %v308, 7
      %v605 = vrot.slane %v604, 4
      %v606 = vrot.slane %v309, 7
      %v607 = vsel %vm533, %v605, %v606
      %v608 = vrot.slane %v606, 4
      %v609 = vrot.slane %v310, 7
      %v610 = vrot.slane %v609, 4
      %v611 = vrot.slane %v311, 7
      %v612 = vsel %vm533, %v610, %v611
      %v613 = vrot.slane %v611, 4
      %s662 = scalar_lea.vmem [#allocation2], 12
      %vm663 = vcmask 60417
      %664 = vst.msk [vmem:[%s662] sm:$0xe] %vm663, %v534
      %665 = vst.msk [vmem:[%s662 + $0x4] sm:$0xf] %vm312, %v537
      %vm666 = vcmask 57344
      %667 = vst.msk [vmem:[%s662 + $0x8] sm:$0x1] %vm666, %v538
      %668 = vst.msk [vmem:[%s662 + $0xc] sm:$0xe] %vm663, %v539
      %669 = vst.msk [vmem:[%s662 + $0x10] sm:$0xf] %vm312, %v542
      %670 = vst.msk [vmem:[%s662 + $0x14] sm:$0x1] %vm666, %v543
      %671 = vst.msk [vmem:[%s662 + $0x18] sm:$0xe] %vm663, %v544
      %672 = vst.msk [vmem:[%s662 + $0x1c] sm:$0xf] %vm312, %v547
      %673 = vst.msk [vmem:[%s662 + $0x20] sm:$0x1] %vm666, %v548
      %674 = vst.msk [vmem:[%s662 + $0x24] sm:$0xe] %vm663, %v549
      %675 = vst.msk [vmem:[%s662 + $0x28] sm:$0xf] %vm312, %v552
      %676 = vst.msk [vmem:[%s662 + $0x2c] sm:$0x1] %vm666, %v553
      %677 = vst.msk [vmem:[%s662 + $0x30] sm:$0xe] %vm663, %v554
      %678 = vst.msk [vmem:[%s662 + $0x34] sm:$0xf] %vm312, %v557
      %679 = vst.msk [vmem:[%s662 + $0x38] sm:$0x1] %vm666, %v558
      %680 = vst.msk [vmem:[%s662 + $0x3c] sm:$0xe] %vm663, %v559
      %681 = vst.msk [vmem:[%s662 + $0x40] sm:$0xf] %vm312, %v562
      %682 = vst.msk [vmem:[%s662 + $0x44] sm:$0x1] %vm666, %v563
      %683 = vst.msk [vmem:[%s662 + $0x48] sm:$0xe] %vm663, %v564
      %684 = vst.msk [vmem:[%s662 + $0x4c] sm:$0xf] %vm312, %v567
      %685 = vst.msk [vmem:[%s662 + $0x50] sm:$0x1] %vm666, %v568
      %686 = vst.msk [vmem:[%s662 + $0x54] sm:$0xe] %vm663, %v569
      %687 = vst.msk [vmem:[%s662 + $0x58] sm:$0xf] %vm312, %v572
      %688 = vst.msk [vmem:[%s662 + $0x5c] sm:$0x1] %vm666, %v573
      %689 = vst.msk [vmem:[%s662 + $0x60] sm:$0xe] %vm663, %v574
      %690 = vst.msk [vmem:[%s662 + $0x64] sm:$0xf] %vm312, %v577
      %691 = vst.msk [vmem:[%s662 + $0x68] sm:$0x1] %vm666, %v578
      %692 = vst.msk [vmem:[%s662 + $0x6c] sm:$0xe] %vm663, %v579
      %693 = vst.msk [vmem:[%s662 + $0x70] sm:$0xf] %vm312, %v582
      %694 = vst.msk [vmem:[%s662 + $0x74] sm:$0x1] %vm666, %v583
      %695 = vst.msk [vmem:[%s662 + $0x78] sm:$0xe] %vm663, %v584
      %696 = vst.msk [vmem:[%s662 + $0x7c] sm:$0xf] %vm312, %v587
      %697 = vst.msk [vmem:[%s662 + $0x80] sm:$0x1] %vm666, %v588
      %698 = vst.msk [vmem:[%s662 + $0x84] sm:$0xe] %vm663, %v589
      %699 = vst.msk [vmem:[%s662 + $0x88] sm:$0xf] %vm312, %v592
      %700 = vst.msk [vmem:[%s662 + $0x8c] sm:$0x1] %vm666, %v593
      %701 = vst.msk [vmem:[%s662 + $0x90] sm:$0xe] %vm663, %v594
      %702 = vst.msk [vmem:[%s662 + $0x94] sm:$0xf] %vm312, %v597
      %703 = vst.msk [vmem:[%s662 + $0x98] sm:$0x1] %vm666, %v598
      %704 = vst.msk [vmem:[%s662 + $0x9c] sm:$0xe] %vm663, %v599
      %705 = vst.msk [vmem:[%s662 + $0xa0] sm:$0xf] %vm312, %v602
      %706 = vst.msk [vmem:[%s662 + $0xa4] sm:$0x1] %vm666, %v603
      %707 = vst.msk [vmem:[%s662 + $0xa8] sm:$0xe] %vm663, %v604
      %708 = vst.msk [vmem:[%s662 + $0xac] sm:$0xf] %vm312, %v607
      %709 = vst.msk [vmem:[%s662 + $0xb0] sm:$0x1] %vm666, %v608
      %710 = vst.msk [vmem:[%s662 + $0xb4] sm:$0xe] %vm663, %v609
      %711 = vst.msk [vmem:[%s662 + $0xb8] sm:$0xf] %vm312, %v612
      %712 = vst.msk [vmem:[%s662 + $0xbc] sm:$0x1] %vm666, %v613
      %v713 = vld [vmem:[%s2] sm:$0x1]
      %v714 = vld [vmem:[#allocation2] sm:$0xf]
      %v715 = vld [vmem:[#allocation2 + $0x4] sm:$0xf]
      %v716 = vld [vmem:[#allocation2 + $0x8] sm:$0x3]
      %v717 = vld [vmem:[#allocation2 + $0xc] sm:$0xf]
      %v718 = vld [vmem:[#allocation2 + $0x10] sm:$0xf]
      %v719 = vld [vmem:[#allocation2 + $0x14] sm:$0x3]
      %v720 = vld [vmem:[#allocation2 + $0x18] sm:$0xf]
      %v721 = vld [vmem:[#allocation2 + $0x1c] sm:$0xf]
      %v722 = vld [vmem:[#allocation2 + $0x20] sm:$0x3]
      %v723 = vld [vmem:[#allocation2 + $0x24] sm:$0xf]
      %v724 = vld [vmem:[#allocation2 + $0x28] sm:$0xf]
      %v725 = vld [vmem:[#allocation2 + $0x2c] sm:$0x3]
      %v726 = vld [vmem:[#allocation2 + $0x30] sm:$0xf]
      %v727 = vld [vmem:[#allocation2 + $0x34] sm:$0xf]
      %v728 = vld [vmem:[#allocation2 + $0x38] sm:$0x3]
      %v729 = vld [vmem:[#allocation2 + $0x3c] sm:$0xf]
      %v730 = vld [vmem:[#allocation2 + $0x40] sm:$0xf]
      %v731 = vld [vmem:[#allocation2 + $0x44] sm:$0x3]
      %v732 = vld [vmem:[#allocation2 + $0x48] sm:$0xf]
      %v733 = vld [vmem:[#allocation2 + $0x4c] sm:$0xf]
      %v734 = vld [vmem:[#allocation2 + $0x50] sm:$0x3]
      %v735 = vld [vmem:[#allocation2 + $0x54] sm:$0xf]
      %v736 = vld [vmem:[#allocation2 + $0x58] sm:$0xf]
      %v737 = vld [vmem:[#allocation2 + $0x5c] sm:$0x3]
      %v738 = vld [vmem:[#allocation2 + $0x60] sm:$0xf]
      %v739 = vld [vmem:[#allocation2 + $0x64] sm:$0xf]
      %v740 = vld [vmem:[#allocation2 + $0x68] sm:$0x3]
      %v741 = vld [vmem:[#allocation2 + $0x6c] sm:$0xf]
      %v742 = vld [vmem:[#allocation2 + $0x70] sm:$0xf]
      %v743 = vld [vmem:[#allocation2 + $0x74] sm:$0x3]
      %v744 = vld [vmem:[#allocation2 + $0x78] sm:$0xf]
      %v745 = vld [vmem:[#allocation2 + $0x7c] sm:$0xf]
      %v746 = vld [vmem:[#allocation2 + $0x80] sm:$0x3]
      %v747 = vld [vmem:[#allocation2 + $0x84] sm:$0xf]
      %v748 = vld [vmem:[#allocation2 + $0x88] sm:$0xf]
      %v749 = vld [vmem:[#allocation2 + $0x8c] sm:$0x3]
      %v750 = vld [vmem:[#allocation2 + $0x90] sm:$0xf]
      %v751 = vld [vmem:[#allocation2 + $0x94] sm:$0xf]
      %v752 = vld [vmem:[#allocation2 + $0x98] sm:$0x3]
      %v753 = vld [vmem:[#allocation2 + $0x9c] sm:$0xf]
      %v754 = vld [vmem:[#allocation2 + $0xa0] sm:$0xf]
      %v755 = vld [vmem:[#allocation2 + $0xa4] sm:$0x3]
      %v756 = vld [vmem:[#allocation2 + $0xa8] sm:$0xf]
      %v757 = vld [vmem:[#allocation2 + $0xac] sm:$0xf]
      %v758 = vld [vmem:[#allocation2 + $0xb0] sm:$0x3]
      %v759 = vld [vmem:[#allocation2 + $0xb4] sm:$0xf]
      %v760 = vld [vmem:[#allocation2 + $0xb8] sm:$0xf]
      %v761 = vld [vmem:[#allocation2 + $0xbc] sm:$0x3]
      %v762 = vld [vmem:[#allocation2 + $0xc0] sm:$0xf]
      %v763 = vld [vmem:[#allocation2 + $0xc4] sm:$0xf]
      %v764 = vld [vmem:[#allocation2 + $0xc8] sm:$0x3]
      %v765 = vld [vmem:[#allocation2 + $0xcc] sm:$0xf]
      %v766 = vld [vmem:[#allocation2 + $0xd0] sm:$0xf]
      %v767 = vld [vmem:[#allocation2 + $0xd4] sm:$0x3]
      %v769 = vlaneseq
      %v770 = vshrl.u32 %v769, 7
      %v771 = vsub.s32 0, %v770
      %v772 = vrot.slane %v713, %v771
      %v822 = vunpack.c.l.b16 %v714
      %v823 = vunpack.c.l.b16 %v715
      %v824 = vunpack.c.l.b16 %v716
      %v825 = vunpack.c.l.b16 %v717
      %v826 = vunpack.c.l.b16 %v718
      %v827 = vunpack.c.l.b16 %v719
      %v828 = vunpack.c.l.b16 %v720
      %v829 = vunpack.c.l.b16 %v721
      %v830 = vunpack.c.l.b16 %v722
      %v831 = vunpack.c.l.b16 %v723
      %v832 = vunpack.c.l.b16 %v724
      %v833 = vunpack.c.l.b16 %v725
      %v834 = vunpack.c.l.b16 %v726
      %v835 = vunpack.c.l.b16 %v727
      %v836 = vunpack.c.l.b16 %v728
      %v837 = vunpack.c.l.b16 %v729
      %v838 = vunpack.c.l.b16 %v730
      %v839 = vunpack.c.l.b16 %v731
      %v840 = vunpack.c.l.b16 %v732
      %v841 = vunpack.c.l.b16 %v733
      %v842 = vunpack.c.l.b16 %v734
      %v843 = vunpack.c.l.b16 %v735
      %v844 = vunpack.c.l.b16 %v736
      %v845 = vunpack.c.l.b16 %v737
      %v846 = vunpack.c.l.b16 %v738
      %v847 = vunpack.c.l.b16 %v739
      %v848 = vunpack.c.l.b16 %v740
      %v849 = vunpack.c.l.b16 %v741
      %v850 = vunpack.c.l.b16 %v742
      %v851 = vunpack.c.l.b16 %v743
      %v852 = vunpack.c.l.b16 %v744
      %v853 = vunpack.c.l.b16 %v745
      %v854 = vunpack.c.l.b16 %v746
      %v855 = vunpack.c.l.b16 %v747
      %v856 = vunpack.c.l.b16 %v748
      %v857 = vunpack.c.l.b16 %v749
      %v858 = vunpack.c.l.b16 %v750
      %v859 = vunpack.c.l.b16 %v751
      %v860 = vunpack.c.l.b16 %v752
      %v861 = vunpack.c.l.b16 %v753
      %v862 = vunpack.c.l.b16 %v754
      %v863 = vunpack.c.l.b16 %v755
      %v864 = vunpack.c.l.b16 %v756
      %v865 = vunpack.c.l.b16 %v757
      %v866 = vunpack.c.l.b16 %v758
      %v867 = vunpack.c.l.b16 %v759
      %v868 = vunpack.c.l.b16 %v760
      %v869 = vunpack.c.l.b16 %v761
      %v870 = vpack.c.b16 %v823, %v822
      %v871 = vpack.c.b16 %v824, %v824
      %v872 = vpack.c.b16 %v826, %v825
      %v873 = vpack.c.b16 %v827, %v827
      %v874 = vpack.c.b16 %v829, %v828
      %v875 = vpack.c.b16 %v830, %v830
      %v876 = vpack.c.b16 %v832, %v831
      %v877 = vpack.c.b16 %v833, %v833
      %v878 = vpack.c.b16 %v835, %v834
      %v879 = vpack.c.b16 %v836, %v836
      %v880 = vpack.c.b16 %v838, %v837
      %v881 = vpack.c.b16 %v839, %v839
      %v882 = vpack.c.b16 %v841, %v840
      %v883 = vpack.c.b16 %v842, %v842
      %v884 = vpack.c.b16 %v844, %v843
      %v885 = vpack.c.b16 %v845, %v845
      %v886 = vpack.c.b16 %v847, %v846
      %v887 = vpack.c.b16 %v848, %v848
      %v888 = vpack.c.b16 %v850, %v849
      %v889 = vpack.c.b16 %v851, %v851
      %v890 = vpack.c.b16 %v853, %v852
      %v891 = vpack.c.b16 %v854, %v854
      %v892 = vpack.c.b16 %v856, %v855
      %v893 = vpack.c.b16 %v857, %v857
      %v894 = vpack.c.b16 %v859, %v858
      %v895 = vpack.c.b16 %v860, %v860
      %v896 = vpack.c.b16 %v862, %v861
      %v897 = vpack.c.b16 %v863, %v863
      %v898 = vpack.c.b16 %v865, %v864
      %v899 = vpack.c.b16 %v866, %v866
      %v900 = vpack.c.b16 %v868, %v867
      %v901 = vpack.c.b16 %v869, %v869
      %vm902 = vsmask.f32 7424
      %v904 = vshrl.u32 %v870, 16
      %v906 = vshll.u32 %v870, 16
      %v908 = vrot.slane %v906, 1
      %v909 = vor.u32 %v904, %v908
      %v911 = vshll.u32 %v871, 16
      %v913 = vrot.slane %v911, 1
      %v914 = vsel %vm902, %v909, %v913
      %v915 = vshrl.u32 %v871, 16
      %v918 = vshrl.u32 %v872, 16
      %v920 = vshll.u32 %v872, 16
      %v922 = vrot.slane %v920, 1
      %v923 = vor.u32 %v918, %v922
      %v925 = vshll.u32 %v873, 16
      %v927 = vrot.slane %v925, 1
      %v928 = vsel %vm902, %v923, %v927
      %v929 = vshrl.u32 %v873, 16
      %v932 = vshrl.u32 %v874, 16
      %v934 = vshll.u32 %v874, 16
      %v936 = vrot.slane %v934, 1
      %v937 = vor.u32 %v932, %v936
      %v939 = vshll.u32 %v875, 16
      %v941 = vrot.slane %v939, 1
      %v942 = vsel %vm902, %v937, %v941
      %v943 = vshrl.u32 %v875, 16
      %v946 = vshrl.u32 %v876, 16
      %v948 = vshll.u32 %v876, 16
      %v950 = vrot.slane %v948, 1
      %v951 = vor.u32 %v946, %v950
      %v953 = vshll.u32 %v877, 16
      %v955 = vrot.slane %v953, 1
      %v956 = vsel %vm902, %v951, %v955
      %v957 = vshrl.u32 %v877, 16
      %v960 = vshrl.u32 %v878, 16
      %v962 = vshll.u32 %v878, 16
      %v964 = vrot.slane %v962, 1
      %v965 = vor.u32 %v960, %v964
      %v967 = vshll.u32 %v879, 16
      %v969 = vrot.slane %v967, 1
      %v970 = vsel %vm902, %v965, %v969
      %v971 = vshrl.u32 %v879, 16
      %v974 = vshrl.u32 %v880, 16
      %v976 = vshll.u32 %v880, 16
      %v978 = vrot.slane %v976, 1
      %v979 = vor.u32 %v974, %v978
      %v981 = vshll.u32 %v881, 16
      %v983 = vrot.slane %v981, 1
      %v984 = vsel %vm902, %v979, %v983
      %v985 = vshrl.u32 %v881, 16
      %v988 = vshrl.u32 %v882, 16
      %v990 = vshll.u32 %v882, 16
      %v992 = vrot.slane %v990, 1
      %v993 = vor.u32 %v988, %v992
      %v995 = vshll.u32 %v883, 16
      %v997 = vrot.slane %v995, 1
      %v998 = vsel %vm902, %v993, %v997
      %v999 = vshrl.u32 %v883, 16
      %v1002 = vshrl.u32 %v884, 16
      %v1004 = vshll.u32 %v884, 16
      %v1006 = vrot.slane %v1004, 1
      %v1007 = vor.u32 %v1002, %v1006
      %v1009 = vshll.u32 %v885, 16
      %v1011 = vrot.slane %v1009, 1
      %v1012 = vsel %vm902, %v1007, %v1011
      %v1013 = vshrl.u32 %v885, 16
      %v1016 = vshrl.u32 %v886, 16
      %v1018 = vshll.u32 %v886, 16
      %v1020 = vrot.slane %v1018, 1
      %v1021 = vor.u32 %v1016, %v1020
      %v1023 = vshll.u32 %v887, 16
      %v1025 = vrot.slane %v1023, 1
      %v1026 = vsel %vm902, %v1021, %v1025
      %v1027 = vshrl.u32 %v887, 16
      %v1030 = vshrl.u32 %v888, 16
      %v1032 = vshll.u32 %v888, 16
      %v1034 = vrot.slane %v1032, 1
      %v1035 = vor.u32 %v1030, %v1034
      %v1037 = vshll.u32 %v889, 16
      %v1039 = vrot.slane %v1037, 1
      %v1040 = vsel %vm902, %v1035, %v1039
      %v1041 = vshrl.u32 %v889, 16
      %v1044 = vshrl.u32 %v890, 16
      %v1046 = vshll.u32 %v890, 16
      %v1048 = vrot.slane %v1046, 1
      %v1049 = vor.u32 %v1044, %v1048
      %v1051 = vshll.u32 %v891, 16
      %v1053 = vrot.slane %v1051, 1
      %v1054 = vsel %vm902, %v1049, %v1053
      %v1055 = vshrl.u32 %v891, 16
      %v1058 = vshrl.u32 %v892, 16
      %v1060 = vshll.u32 %v892, 16
      %v1062 = vrot.slane %v1060, 1
      %v1063 = vor.u32 %v1058, %v1062
      %v1065 = vshll.u32 %v893, 16
      %v1067 = vrot.slane %v1065, 1
      %v1068 = vsel %vm902, %v1063, %v1067
      %v1069 = vshrl.u32 %v893, 16
      %v1072 = vshrl.u32 %v894, 16
      %v1074 = vshll.u32 %v894, 16
      %v1076 = vrot.slane %v1074, 1
      %v1077 = vor.u32 %v1072, %v1076
      %v1079 = vshll.u32 %v895, 16
      %v1081 = vrot.slane %v1079, 1
      %v1082 = vsel %vm902, %v1077, %v1081
      %v1083 = vshrl.u32 %v895, 16
      %v1086 = vshrl.u32 %v896, 16
      %v1088 = vshll.u32 %v896, 16
      %v1090 = vrot.slane %v1088, 1
      %v1091 = vor.u32 %v1086, %v1090
      %v1093 = vshll.u32 %v897, 16
      %v1095 = vrot.slane %v1093, 1
      %v1096 = vsel %vm902, %v1091, %v1095
      %v1097 = vshrl.u32 %v897, 16
      %v1100 = vshrl.u32 %v898, 16
      %v1102 = vshll.u32 %v898, 16
      %v1104 = vrot.slane %v1102, 1
      %v1105 = vor.u32 %v1100, %v1104
      %v1107 = vshll.u32 %v899, 16
      %v1109 = vrot.slane %v1107, 1
      %v1110 = vsel %vm902, %v1105, %v1109
      %v1111 = vshrl.u32 %v899, 16
      %v1114 = vshrl.u32 %v900, 16
      %v1116 = vshll.u32 %v900, 16
      %v1118 = vrot.slane %v1116, 1
      %v1119 = vor.u32 %v1114, %v1118
      %v1121 = vshll.u32 %v901, 16
      %v1123 = vrot.slane %v1121, 1
      %v1124 = vsel %vm902, %v1119, %v1123
      %v1125 = vshrl.u32 %v901, 16
      %1127 = vrot.lane.b32.xlu0 %v914, 8
      %v1128 = vpop.permute.xlu0 %1127
      %1129 = vrot.lane.b32.xlu0 %v915, 8
      %v1130 = vpop.permute.xlu0 %1129
      %1131 = vrot.lane.b32.xlu0 %v928, 8
      %v1132 = vpop.permute.xlu0 %1131
      %1133 = vrot.lane.b32.xlu0 %v929, 8
      %v1134 = vpop.permute.xlu0 %1133
      %1135 = vrot.lane.b32.xlu0 %v942, 8
      %v1136 = vpop.permute.xlu0 %1135
      %1137 = vrot.lane.b32.xlu0 %v943, 8
      %v1138 = vpop.permute.xlu0 %1137
      %1139 = vrot.lane.b32.xlu0 %v956, 8
      %v1140 = vpop.permute.xlu0 %1139
      %1141 = vrot.lane.b32.xlu0 %v957, 8
      %v1142 = vpop.permute.xlu0 %1141
      %1143 = vrot.lane.b32.xlu0 %v970, 8
      %v1144 = vpop.permute.xlu0 %1143
      %1145 = vrot.lane.b32.xlu0 %v971, 8
      %v1146 = vpop.permute.xlu0 %1145
      %1147 = vrot.lane.b32.xlu0 %v984, 8
      %v1148 = vpop.permute.xlu0 %1147
      %1149 = vrot.lane.b32.xlu0 %v985, 8
      %v1150 = vpop.permute.xlu0 %1149
      %1151 = vrot.lane.b32.xlu0 %v998, 8
      %v1152 = vpop.permute.xlu0 %1151
      %1153 = vrot.lane.b32.xlu0 %v999, 8
      %v1154 = vpop.permute.xlu0 %1153
      %1155 = vrot.lane.b32.xlu0 %v1012, 8
      %v1156 = vpop.permute.xlu0 %1155
      %1157 = vrot.lane.b32.xlu0 %v1013, 8
      %v1158 = vpop.permute.xlu0 %1157
      %1159 = vrot.lane.b32.xlu0 %v1026, 8
      %v1160 = vpop.permute.xlu0 %1159
      %1161 = vrot.lane.b32.xlu0 %v1027, 8
      %v1162 = vpop.permute.xlu0 %1161
      %1163 = vrot.lane.b32.xlu0 %v1040, 8
      %v1164 = vpop.permute.xlu0 %1163
      %1165 = vrot.lane.b32.xlu0 %v1041, 8
      %v1166 = vpop.permute.xlu0 %1165
      %1167 = vrot.lane.b32.xlu0 %v1054, 8
      %v1168 = vpop.permute.xlu0 %1167
      %1169 = vrot.lane.b32.xlu0 %v1055, 8
      %v1170 = vpop.permute.xlu0 %1169
      %1171 = vrot.lane.b32.xlu0 %v1068, 8
      %v1172 = vpop.permute.xlu0 %1171
      %1173 = vrot.lane.b32.xlu0 %v1069, 8
      %v1174 = vpop.permute.xlu0 %1173
      %1175 = vrot.lane.b32.xlu0 %v1082, 8
      %v1176 = vpop.permute.xlu0 %1175
      %1177 = vrot.lane.b32.xlu0 %v1083, 8
      %v1178 = vpop.permute.xlu0 %1177
      %1179 = vrot.lane.b32.xlu0 %v1096, 8
      %v1180 = vpop.permute.xlu0 %1179
      %1181 = vrot.lane.b32.xlu0 %v1097, 8
      %v1182 = vpop.permute.xlu0 %1181
      %1183 = vrot.lane.b32.xlu0 %v1110, 8
      %v1184 = vpop.permute.xlu0 %1183
      %1185 = vrot.lane.b32.xlu0 %v1111, 8
      %v1186 = vpop.permute.xlu0 %1185
      %1187 = vrot.lane.b32.xlu0 %v1124, 8
      %v1188 = vpop.permute.xlu0 %1187
      %1189 = vrot.lane.b32.xlu0 %v1125, 8
      %v1190 = vpop.permute.xlu0 %1189
      %vm1191 = vcmask 1046528
      %v1192 = vrot.slane %v870, 1
      %v1193 = vrot.slane %v871, 1
      %v1194 = vsel %vm1191, %v1192, %v1193
      %v1195 = vrot.slane %v872, 1
      %v1196 = vrot.slane %v873, 1
      %v1197 = vsel %vm1191, %v1195, %v1196
      %v1198 = vrot.slane %v874, 1
      %v1199 = vrot.slane %v875, 1
      %v1200 = vsel %vm1191, %v1198, %v1199
      %v1201 = vrot.slane %v876, 1
      %v1202 = vrot.slane %v877, 1
      %v1203 = vsel %vm1191, %v1201, %v1202
      %v1204 = vrot.slane %v878, 1
      %v1205 = vrot.slane %v879, 1
      %v1206 = vsel %vm1191, %v1204, %v1205
      %v1207 = vrot.slane %v880, 1
      %v1208 = vrot.slane %v881, 1
      %v1209 = vsel %vm1191, %v1207, %v1208
      %v1210 = vrot.slane %v882, 1
      %v1211 = vrot.slane %v883, 1
      %v1212 = vsel %vm1191, %v1210, %v1211
      %v1213 = vrot.slane %v884, 1
      %v1214 = vrot.slane %v885, 1
      %v1215 = vsel %vm1191, %v1213, %v1214
      %v1216 = vrot.slane %v886, 1
      %v1217 = vrot.slane %v887, 1
      %v1218 = vsel %vm1191, %v1216, %v1217
      %v1219 = vrot.slane %v888, 1
      %v1220 = vrot.slane %v889, 1
      %v1221 = vsel %vm1191, %v1219, %v1220
      %v1222 = vrot.slane %v890, 1
      %v1223 = vrot.slane %v891, 1
      %v1224 = vsel %vm1191, %v1222, %v1223
      %v1225 = vrot.slane %v892, 1
      %v1226 = vrot.slane %v893, 1
      %v1227 = vsel %vm1191, %v1225, %v1226
      %v1228 = vrot.slane %v894, 1
      %v1229 = vrot.slane %v895, 1
      %v1230 = vsel %vm1191, %v1228, %v1229
      %v1231 = vrot.slane %v896, 1
      %v1232 = vrot.slane %v897, 1
      %v1233 = vsel %vm1191, %v1231, %v1232
      %v1234 = vrot.slane %v898, 1
      %v1235 = vrot.slane %v899, 1
      %v1236 = vsel %vm1191, %v1234, %v1235
      %v1237 = vrot.slane %v900, 1
      %v1238 = vrot.slane %v901, 1
      %v1239 = vsel %vm1191, %v1237, %v1238
      %1240 = vrot.lane.b32.xlu0 %v1194, 16
      %v1241 = vpop.permute.xlu0 %1240
      %1242 = vrot.lane.b32.xlu0 %v1193, 16
      %v1243 = vpop.permute.xlu0 %1242
      %1244 = vrot.lane.b32.xlu0 %v1197, 16
      %v1245 = vpop.permute.xlu0 %1244
      %1246 = vrot.lane.b32.xlu0 %v1196, 16
      %v1247 = vpop.permute.xlu0 %1246
      %1248 = vrot.lane.b32.xlu0 %v1200, 16
      %v1249 = vpop.permute.xlu0 %1248
      %1250 = vrot.lane.b32.xlu0 %v1199, 16
      %v1251 = vpop.permute.xlu0 %1250
      %1252 = vrot.lane.b32.xlu0 %v1203, 16
      %v1253 = vpop.permute.xlu0 %1252
      %1254 = vrot.lane.b32.xlu0 %v1202, 16
      %v1255 = vpop.permute.xlu0 %1254
      %1256 = vrot.lane.b32.xlu0 %v1206, 16
      %v1257 = vpop.permute.xlu0 %1256
      %1258 = vrot.lane.b32.xlu0 %v1205, 16
      %v1259 = vpop.permute.xlu0 %1258
      %1260 = vrot.lane.b32.xlu0 %v1209, 16
      %v1261 = vpop.permute.xlu0 %1260
      %1262 = vrot.lane.b32.xlu0 %v1208, 16
      %v1263 = vpop.permute.xlu0 %1262
      %1264 = vrot.lane.b32.xlu0 %v1212, 16
      %v1265 = vpop.permute.xlu0 %1264
      %1266 = vrot.lane.b32.xlu0 %v1211, 16
      %v1267 = vpop.permute.xlu0 %1266
      %1268 = vrot.lane.b32.xlu0 %v1215, 16
      %v1269 = vpop.permute.xlu0 %1268
      %1270 = vrot.lane.b32.xlu0 %v1214, 16
      %v1271 = vpop.permute.xlu0 %1270
      %1272 = vrot.lane.b32.xlu0 %v1218, 16
      %v1273 = vpop.permute.xlu0 %1272
      %1274 = vrot.lane.b32.xlu0 %v1217, 16
      %v1275 = vpop.permute.xlu0 %1274
      %1276 = vrot.lane.b32.xlu0 %v1221, 16
      %v1277 = vpop.permute.xlu0 %1276
      %1278 = vrot.lane.b32.xlu0 %v1220, 16
      %v1279 = vpop.permute.xlu0 %1278
      %1280 = vrot.lane.b32.xlu0 %v1224, 16
      %v1281 = vpop.permute.xlu0 %1280
      %1282 = vrot.lane.b32.xlu0 %v1223, 16
      %v1283 = vpop.permute.xlu0 %1282
      %1284 = vrot.lane.b32.xlu0 %v1227, 16
      %v1285 = vpop.permute.xlu0 %1284
      %1286 = vrot.lane.b32.xlu0 %v1226, 16
      %v1287 = vpop.permute.xlu0 %1286
      %1288 = vrot.lane.b32.xlu0 %v1230, 16
      %v1289 = vpop.permute.xlu0 %1288
      %1290 = vrot.lane.b32.xlu0 %v1229, 16
      %v1291 = vpop.permute.xlu0 %1290
      %1292 = vrot.lane.b32.xlu0 %v1233, 16
      %v1293 = vpop.permute.xlu0 %1292
      %1294 = vrot.lane.b32.xlu0 %v1232, 16
      %v1295 = vpop.permute.xlu0 %1294
      %1296 = vrot.lane.b32.xlu0 %v1236, 16
      %v1297 = vpop.permute.xlu0 %1296
      %1298 = vrot.lane.b32.xlu0 %v1235, 16
      %v1299 = vpop.permute.xlu0 %1298
      %1300 = vrot.lane.b32.xlu0 %v1239, 16
      %v1301 = vpop.permute.xlu0 %1300
      %1302 = vrot.lane.b32.xlu0 %v1238, 16
      %v1303 = vpop.permute.xlu0 %1302
      %vm1304 = vcmask 64512
      %v1306 = vsel %vm1304, %v870, %v1128
      %v1308 = vsel %vm1304, %v871, %v1130
      %v1310 = vsel %vm1304, %v872, %v1132
      %v1312 = vsel %vm1304, %v873, %v1134
      %v1314 = vsel %vm1304, %v874, %v1136
      %v1316 = vsel %vm1304, %v875, %v1138
      %v1318 = vsel %vm1304, %v876, %v1140
      %v1320 = vsel %vm1304, %v877, %v1142
      %v1322 = vsel %vm1304, %v878, %v1144
      %v1324 = vsel %vm1304, %v879, %v1146
      %v1326 = vsel %vm1304, %v880, %v1148
      %v1328 = vsel %vm1304, %v881, %v1150
      %v1330 = vsel %vm1304, %v882, %v1152
      %v1332 = vsel %vm1304, %v883, %v1154
      %v1334 = vsel %vm1304, %v884, %v1156
      %v1336 = vsel %vm1304, %v885, %v1158
      %v1338 = vsel %vm1304, %v886, %v1160
      %v1340 = vsel %vm1304, %v887, %v1162
      %v1342 = vsel %vm1304, %v888, %v1164
      %v1344 = vsel %vm1304, %v889, %v1166
      %v1346 = vsel %vm1304, %v890, %v1168
      %v1348 = vsel %vm1304, %v891, %v1170
      %v1350 = vsel %vm1304, %v892, %v1172
      %v1352 = vsel %vm1304, %v893, %v1174
      %v1354 = vsel %vm1304, %v894, %v1176
      %v1356 = vsel %vm1304, %v895, %v1178
      %v1358 = vsel %vm1304, %v896, %v1180
      %v1360 = vsel %vm1304, %v897, %v1182
      %v1362 = vsel %vm1304, %v898, %v1184
      %v1364 = vsel %vm1304, %v899, %v1186
      %v1366 = vsel %vm1304, %v900, %v1188
      %v1368 = vsel %vm1304, %v901, %v1190
      %vm1369 = vcmask 130048
      %v1371 = vsel %vm1369, %v1306, %v1241
      %v1373 = vsel %vm1369, %v1308, %v1243
      %v1375 = vsel %vm1369, %v1310, %v1245
      %v1377 = vsel %vm1369, %v1312, %v1247
      %v1379 = vsel %vm1369, %v1314, %v1249
      %v1381 = vsel %vm1369, %v1316, %v1251
      %v1383 = vsel %vm1369, %v1318, %v1253
      %v1385 = vsel %vm1369, %v1320, %v1255
      %v1387 = vsel %vm1369, %v1322, %v1257
      %v1389 = vsel %vm1369, %v1324, %v1259
      %v1391 = vsel %vm1369, %v1326, %v1261
      %v1393 = vsel %vm1369, %v1328, %v1263
      %v1395 = vsel %vm1369, %v1330, %v1265
      %v1397 = vsel %vm1369, %v1332, %v1267
      %v1399 = vsel %vm1369, %v1334, %v1269
      %v1401 = vsel %vm1369, %v1336, %v1271
      %v1403 = vsel %vm1369, %v1338, %v1273
      %v1405 = vsel %vm1369, %v1340, %v1275
      %v1407 = vsel %vm1369, %v1342, %v1277
      %v1409 = vsel %vm1369, %v1344, %v1279
      %v1411 = vsel %vm1369, %v1346, %v1281
      %v1413 = vsel %vm1369, %v1348, %v1283
      %v1415 = vsel %vm1369, %v1350, %v1285
      %v1417 = vsel %vm1369, %v1352, %v1287
      %v1419 = vsel %vm1369, %v1354, %v1289
      %v1421 = vsel %vm1369, %v1356, %v1291
      %v1423 = vsel %vm1369, %v1358, %v1293
      %v1425 = vsel %vm1369, %v1360, %v1295
      %v1427 = vsel %vm1369, %v1362, %v1297
      %v1429 = vsel %vm1369, %v1364, %v1299
      %v1431 = vsel %vm1369, %v1366, %v1301
      %v1433 = vsel %vm1369, %v1368, %v1303
      %v1434 = vshrl.u32 %v1371, 16
      %v1436 = vshll.u32 %v1371, 16
      %v1438 = vrot.slane %v1436, 1
      %v1439 = vor.u32 %v1434, %v1438
      %v1440 = vshll.u32 %v1373, 16
      %v1442 = vrot.slane %v1440, 1
      %v1443 = vsel %vm902, %v1439, %v1442
      %v1444 = vshrl.u32 %v1375, 16
      %v1446 = vshll.u32 %v1375, 16
      %v1448 = vrot.slane %v1446, 1
      %v1449 = vor.u32 %v1444, %v1448
      %v1450 = vshll.u32 %v1377, 16
      %v1452 = vrot.slane %v1450, 1
      %v1453 = vsel %vm902, %v1449, %v1452
      %v1454 = vshrl.u32 %v1379, 16
      %v1456 = vshll.u32 %v1379, 16
      %v1458 = vrot.slane %v1456, 1
      %v1459 = vor.u32 %v1454, %v1458
      %v1460 = vshll.u32 %v1381, 16
      %v1462 = vrot.slane %v1460, 1
      %v1463 = vsel %vm902, %v1459, %v1462
      %v1464 = vshrl.u32 %v1383, 16
      %v1466 = vshll.u32 %v1383, 16
      %v1468 = vrot.slane %v1466, 1
      %v1469 = vor.u32 %v1464, %v1468
      %v1470 = vshll.u32 %v1385, 16
      %v1472 = vrot.slane %v1470, 1
      %v1473 = vsel %vm902, %v1469, %v1472
      %v1474 = vshrl.u32 %v1387, 16
      %v1476 = vshll.u32 %v1387, 16
      %v1478 = vrot.slane %v1476, 1
      %v1479 = vor.u32 %v1474, %v1478
      %v1480 = vshll.u32 %v1389, 16
      %v1482 = vrot.slane %v1480, 1
      %v1483 = vsel %vm902, %v1479, %v1482
      %v1484 = vshrl.u32 %v1391, 16
      %v1486 = vshll.u32 %v1391, 16
      %v1488 = vrot.slane %v1486, 1
      %v1489 = vor.u32 %v1484, %v1488
      %v1490 = vshll.u32 %v1393, 16
      %v1492 = vrot.slane %v1490, 1
      %v1493 = vsel %vm902, %v1489, %v1492
      %v1494 = vshrl.u32 %v1395, 16
      %v1496 = vshll.u32 %v1395, 16
      %v1498 = vrot.slane %v1496, 1
      %v1499 = vor.u32 %v1494, %v1498
      %v1500 = vshll.u32 %v1397, 16
      %v1502 = vrot.slane %v1500, 1
      %v1503 = vsel %vm902, %v1499, %v1502
      %v1504 = vshrl.u32 %v1399, 16
      %v1506 = vshll.u32 %v1399, 16
      %v1508 = vrot.slane %v1506, 1
      %v1509 = vor.u32 %v1504, %v1508
      %v1510 = vshll.u32 %v1401, 16
      %v1512 = vrot.slane %v1510, 1
      %v1513 = vsel %vm902, %v1509, %v1512
      %v1514 = vshrl.u32 %v1403, 16
      %v1516 = vshll.u32 %v1403, 16
      %v1518 = vrot.slane %v1516, 1
      %v1519 = vor.u32 %v1514, %v1518
      %v1520 = vshll.u32 %v1405, 16
      %v1522 = vrot.slane %v1520, 1
      %v1523 = vsel %vm902, %v1519, %v1522
      %v1524 = vshrl.u32 %v1407, 16
      %v1526 = vshll.u32 %v1407, 16
      %v1528 = vrot.slane %v1526, 1
      %v1529 = vor.u32 %v1524, %v1528
      %v1530 = vshll.u32 %v1409, 16
      %v1532 = vrot.slane %v1530, 1
      %v1533 = vsel %vm902, %v1529, %v1532
      %v1534 = vshrl.u32 %v1411, 16
      %v1536 = vshll.u32 %v1411, 16
      %v1538 = vrot.slane %v1536, 1
      %v1539 = vor.u32 %v1534, %v1538
      %v1540 = vshll.u32 %v1413, 16
      %v1542 = vrot.slane %v1540, 1
      %v1543 = vsel %vm902, %v1539, %v1542
      %v1544 = vshrl.u32 %v1415, 16
      %v1546 = vshll.u32 %v1415, 16
      %v1548 = vrot.slane %v1546, 1
      %v1549 = vor.u32 %v1544, %v1548
      %v1550 = vshll.u32 %v1417, 16
      %v1552 = vrot.slane %v1550, 1
      %v1553 = vsel %vm902, %v1549, %v1552
      %v1554 = vshrl.u32 %v1419, 16
      %v1556 = vshll.u32 %v1419, 16
      %v1558 = vrot.slane %v1556, 1
      %v1559 = vor.u32 %v1554, %v1558
      %v1560 = vshll.u32 %v1421, 16
      %v1562 = vrot.slane %v1560, 1
      %v1563 = vsel %vm902, %v1559, %v1562
      %v1564 = vshrl.u32 %v1423, 16
      %v1566 = vshll.u32 %v1423, 16
      %v1568 = vrot.slane %v1566, 1
      %v1569 = vor.u32 %v1564, %v1568
      %v1570 = vshll.u32 %v1425, 16
      %v1572 = vrot.slane %v1570, 1
      %v1573 = vsel %vm902, %v1569, %v1572
      %v1574 = vshrl.u32 %v1427, 16
      %v1576 = vshll.u32 %v1427, 16
      %v1578 = vrot.slane %v1576, 1
      %v1579 = vor.u32 %v1574, %v1578
      %v1580 = vshll.u32 %v1429, 16
      %v1582 = vrot.slane %v1580, 1
      %v1583 = vsel %vm902, %v1579, %v1582
      %v1584 = vshrl.u32 %v1431, 16
      %v1586 = vshll.u32 %v1431, 16
      %v1588 = vrot.slane %v1586, 1
      %v1589 = vor.u32 %v1584, %v1588
      %v1590 = vshll.u32 %v1433, 16
      %v1592 = vrot.slane %v1590, 1
      %v1593 = vsel %vm902, %v1589, %v1592
      %v1594 = vld [vmem:[%s1] sm:$0xf]
      %v1595 = vld [vmem:[%s1 + $0x4] sm:$0xf]
      %v1596 = vld [vmem:[%s1 + $0x8] sm:$0xf]
      %v1600 = vunpack.c.l.b16 %v1594
      %v1601 = vunpack.c.l.b16 %v1595
      %v1602 = vunpack.c.l.b16 %v1596
      %v1603 = vpack.c.b16 %v1601, %v1600
      %v1604 = vpack.c.b16 %v1602, %v1602
      %vm1606 = vcmask 195584
      %v1608 = vsel %vm1606, %v1443, 0
      %v1611 = vsel %vm1606, %v1453, 0
      %v1614 = vsel %vm1606, %v1463, 0
      %v1617 = vsel %vm1606, %v1473, 0
      %v1620 = vsel %vm1606, %v1483, 0
      %v1623 = vsel %vm1606, %v1493, 0
      %v1626 = vsel %vm1606, %v1503, 0
      %v1629 = vsel %vm1606, %v1513, 0
      %v1632 = vsel %vm1606, %v1523, 0
      %v1635 = vsel %vm1606, %v1533, 0
      %v1638 = vsel %vm1606, %v1543, 0
      %v1641 = vsel %vm1606, %v1553, 0
      %v1644 = vsel %vm1606, %v1563, 0
      %v1647 = vsel %vm1606, %v1573, 0
      %v1650 = vsel %vm1606, %v1583, 0
      %v1653 = vsel %vm1606, %v1593, 0
      %vm1655 = vcmask 1043456
      %v1657 = vsel %vm1655, %v1604, 0
      %1659 = vmatprep.subr.bf16.mxu0 0
      %1660 = vmatpush1.bf16.msra.mxu0 0
      %1661 = vmatprep.subr.bf16.mxu0 0
      %1662 = vmatpush1.bf16.msra.mxu0 0
      %1663 = vmatprep.subr.bf16.mxu0 0
      %1664 = vmatpush1.bf16.msra.mxu0 0
      %1665 = vmatprep.subr.bf16.mxu0 0
      %1666 = vmatpush1.bf16.msra.mxu0 0
      %1667 = vmatprep.subr.bf16.mxu0 0
      %1668 = vmatpush1.bf16.msra.mxu0 0
      %1669 = vmatprep.subr.bf16.mxu0 0
      %1670 = vmatpush1.bf16.msra.mxu0 0
      %1671 = vmatprep.subr.bf16.mxu0 0
      %1672 = vmatpush1.bf16.msra.mxu0 %v1657
      %1673 = vmatprep.subr.bf16.mxu0 0
      %1674 = vmatpush1.bf16.msra.mxu0 %v1603
      %1675 = vmatprep.subr.bf16.mxu0 0
      %1676 = vmatpush2.bf16.msra.mxu0 0
      %1677 = vmatprep.subr.bf16.mxu0 0
      %1678 = vmatpush2.bf16.msra.mxu0 0
      %1679 = vmatprep.subr.bf16.mxu0 0
      %1680 = vmatpush2.bf16.msra.mxu0 0
      %1681 = vmatprep.subr.bf16.mxu0 0
      %1682 = vmatpush2.bf16.msra.mxu0 0
      %1683 = vmatprep.subr.bf16.mxu0 0
      %1684 = vmatpush2.bf16.msra.mxu0 0
      %1685 = vmatprep.subr.bf16.mxu0 0
      %1686 = vmatpush2.bf16.msra.mxu0 0
      %1687 = vmatprep.subr.bf16.mxu0 0
      %1688 = vmatpush2.bf16.msra.mxu0 0
      %1689 = vmatprep.subr.bf16.mxu0 0
      %1690 = vmatpush2.bf16.msra.mxu0 0
      %1691 = vmatprep.mubr.bf16.mxu0 0
      %1692 = vmatmul.mubr.bf16.gmra.mxu0 %v1608
      %v1693 = vpop.f32.mrf.mxu0
      %v1694 = vadd.f32 0.0, %v1693
      %v1695 = vpop.f32.mrf.mxu0
      %v1696 = vpop.f32.mrf.mxu0
      %v1697 = vadd.f32 0.0, %v1696
      %v1698 = vpop.f32.mrf.mxu0
      %1699 = vmatprep.mubr.bf16.mxu0 0
      %1700 = vmatmul.mubr.bf16.gmra.mxu0 %v1611
      %v1701 = vpop.f32.mrf.mxu0
      %v1702 = vadd.f32 0.0, %v1701
      %v1703 = vpop.f32.mrf.mxu0
      %v1704 = vpop.f32.mrf.mxu0
      %v1705 = vadd.f32 0.0, %v1704
      %v1706 = vpop.f32.mrf.mxu0
      %1707 = vmatprep.mubr.bf16.mxu0 0
      %1708 = vmatmul.mubr.bf16.gmra.mxu0 %v1614
      %v1709 = vpop.f32.mrf.mxu0
      %v1710 = vadd.f32 0.0, %v1709
      %v1711 = vpop.f32.mrf.mxu0
      %v1712 = vpop.f32.mrf.mxu0
      %v1713 = vadd.f32 0.0, %v1712
      %v1714 = vpop.f32.mrf.mxu0
      %1715 = vmatprep.mubr.bf16.mxu0 0
      %1716 = vmatmul.mubr.bf16.gmra.mxu0 %v1617
      %v1717 = vpop.f32.mrf.mxu0
      %v1718 = vadd.f32 0.0, %v1717
      %v1719 = vpop.f32.mrf.mxu0
      %v1720 = vpop.f32.mrf.mxu0
      %v1721 = vadd.f32 0.0, %v1720
      %v1722 = vpop.f32.mrf.mxu0
      %1723 = vmatprep.mubr.bf16.mxu0 0
      %1724 = vmatmul.mubr.bf16.gmra.mxu0 %v1620
      %v1725 = vpop.f32.mrf.mxu0
      %v1726 = vadd.f32 0.0, %v1725
      %v1727 = vpop.f32.mrf.mxu0
      %v1728 = vpop.f32.mrf.mxu0
      %v1729 = vadd.f32 0.0, %v1728
      %v1730 = vpop.f32.mrf.mxu0
      %1731 = vmatprep.mubr.bf16.mxu0 0
      %1732 = vmatmul.mubr.bf16.gmra.mxu0 %v1623
      %v1733 = vpop.f32.mrf.mxu0
      %v1734 = vadd.f32 0.0, %v1733
      %v1735 = vpop.f32.mrf.mxu0
      %v1736 = vpop.f32.mrf.mxu0
      %v1737 = vadd.f32 0.0, %v1736
      %v1738 = vpop.f32.mrf.mxu0
      %1739 = vmatprep.mubr.bf16.mxu0 0
      %1740 = vmatmul.mubr.bf16.gmra.mxu0 %v1626
      %v1741 = vpop.f32.mrf.mxu0
      %v1742 = vadd.f32 0.0, %v1741
      %v1743 = vpop.f32.mrf.mxu0
      %v1744 = vpop.f32.mrf.mxu0
      %v1745 = vadd.f32 0.0, %v1744
      %v1746 = vpop.f32.mrf.mxu0
      %1747 = vmatprep.mubr.bf16.mxu0 0
      %1748 = vmatmul.mubr.bf16.gmra.mxu0 %v1629
      %v1749 = vpop.f32.mrf.mxu0
      %v1750 = vadd.f32 0.0, %v1749
      %v1751 = vpop.f32.mrf.mxu0
      %v1752 = vpop.f32.mrf.mxu0
      %v1753 = vadd.f32 0.0, %v1752
      %v1754 = vpop.f32.mrf.mxu0
      %1755 = vmatprep.mubr.bf16.mxu0 0
      %1756 = vmatmul.mubr.bf16.gmra.mxu0 %v1632
      %v1757 = vpop.f32.mrf.mxu0
      %v1758 = vadd.f32 0.0, %v1757
      %v1759 = vpop.f32.mrf.mxu0
      %v1760 = vpop.f32.mrf.mxu0
      %v1761 = vadd.f32 0.0, %v1760
      %v1762 = vpop.f32.mrf.mxu0
      %1763 = vmatprep.mubr.bf16.mxu0 0
      %1764 = vmatmul.mubr.bf16.gmra.mxu0 %v1635
      %v1765 = vpop.f32.mrf.mxu0
      %v1766 = vadd.f32 0.0, %v1765
      %v1767 = vpop.f32.mrf.mxu0
      %v1768 = vpop.f32.mrf.mxu0
      %v1769 = vadd.f32 0.0, %v1768
      %v1770 = vpop.f32.mrf.mxu0
      %1771 = vmatprep.mubr.bf16.mxu0 0
      %1772 = vmatmul.mubr.bf16.gmra.mxu0 %v1638
      %v1773 = vpop.f32.mrf.mxu0
      %v1774 = vadd.f32 0.0, %v1773
      %v1775 = vpop.f32.mrf.mxu0
      %v1776 = vpop.f32.mrf.mxu0
      %v1777 = vadd.f32 0.0, %v1776
      %v1778 = vpop.f32.mrf.mxu0
      %1779 = vmatprep.mubr.bf16.mxu0 0
      %1780 = vmatmul.mubr.bf16.gmra.mxu0 %v1641
      %v1781 = vpop.f32.mrf.mxu0
      %v1782 = vadd.f32 0.0, %v1781
      %v1783 = vpop.f32.mrf.mxu0
      %v1784 = vpop.f32.mrf.mxu0
      %v1785 = vadd.f32 0.0, %v1784
      %v1786 = vpop.f32.mrf.mxu0
      %1787 = vmatprep.mubr.bf16.mxu0 0
      %1788 = vmatmul.mubr.bf16.gmra.mxu0 %v1644
      %v1789 = vpop.f32.mrf.mxu0
      %v1790 = vadd.f32 0.0, %v1789
      %v1791 = vpop.f32.mrf.mxu0
      %v1792 = vpop.f32.mrf.mxu0
      %v1793 = vadd.f32 0.0, %v1792
      %v1794 = vpop.f32.mrf.mxu0
      %1795 = vmatprep.mubr.bf16.mxu0 0
      %1796 = vmatmul.mubr.bf16.gmra.mxu0 %v1647
      %v1797 = vpop.f32.mrf.mxu0
      %v1798 = vadd.f32 0.0, %v1797
      %v1799 = vpop.f32.mrf.mxu0
      %v1800 = vpop.f32.mrf.mxu0
      %v1801 = vadd.f32 0.0, %v1800
      %v1802 = vpop.f32.mrf.mxu0
      %1803 = vmatprep.mubr.bf16.mxu0 0
      %1804 = vmatmul.mubr.bf16.gmra.mxu0 %v1650
      %v1805 = vpop.f32.mrf.mxu0
      %v1806 = vadd.f32 0.0, %v1805
      %v1807 = vpop.f32.mrf.mxu0
      %v1808 = vpop.f32.mrf.mxu0
      %v1809 = vadd.f32 0.0, %v1808
      %v1810 = vpop.f32.mrf.mxu0
      %1811 = vmatprep.mubr.bf16.mxu0 0
      %1812 = vmatmul.mubr.bf16.gmra.mxu0 %v1653
      %v1813 = vpop.f32.mrf.mxu0
      %v1814 = vadd.f32 0.0, %v1813
      %v1815 = vpop.f32.mrf.mxu0
      %v1816 = vpop.f32.mrf.mxu0
      %v1817 = vadd.f32 0.0, %v1816
      %v1818 = vpop.f32.mrf.mxu0
      %1819 = vdwg.mxu0
      %v1820 = vadd.f32 %v772, %v1694
      %v1821 = vadd.f32 %v772, %v1697
      %v1822 = vadd.f32 %v772, %v1702
      %v1823 = vadd.f32 %v772, %v1705
      %v1824 = vadd.f32 %v772, %v1710
      %v1825 = vadd.f32 %v772, %v1713
      %v1826 = vadd.f32 %v772, %v1718
      %v1827 = vadd.f32 %v772, %v1721
      %v1828 = vadd.f32 %v772, %v1726
      %v1829 = vadd.f32 %v772, %v1729
      %v1830 = vadd.f32 %v772, %v1734
      %v1831 = vadd.f32 %v772, %v1737
      %v1832 = vadd.f32 %v772, %v1742
      %v1833 = vadd.f32 %v772, %v1745
      %v1834 = vadd.f32 %v772, %v1750
      %v1835 = vadd.f32 %v772, %v1753
      %v1836 = vadd.f32 %v772, %v1758
      %v1837 = vadd.f32 %v772, %v1761
      %v1838 = vadd.f32 %v772, %v1766
      %v1839 = vadd.f32 %v772, %v1769
      %v1840 = vadd.f32 %v772, %v1774
      %v1841 = vadd.f32 %v772, %v1777
      %v1842 = vadd.f32 %v772, %v1782
      %v1843 = vadd.f32 %v772, %v1785
      %v1844 = vadd.f32 %v772, %v1790
      %v1845 = vadd.f32 %v772, %v1793
      %v1846 = vadd.f32 %v772, %v1798
      %v1847 = vadd.f32 %v772, %v1801
      %v1848 = vadd.f32 %v772, %v1806
      %v1849 = vadd.f32 %v772, %v1809
      %v1850 = vadd.f32 %v772, %v1814
      %v1851 = vadd.f32 %v772, %v1817
      %v1855 = vunpack.c.l.b16 %v762
      %v1856 = vunpack.c.l.b16 %v763
      %v1857 = vunpack.c.l.b16 %v764
      %v1858 = vpack.c.b16 %v1856, %v1855
      %v1859 = vpack.c.b16 %v1857, %v1857
      %v1861 = vshrl.u32 %v1858, 16
      %v1863 = vshll.u32 %v1858, 16
      %v1865 = vrot.slane %v1863, 1
      %v1866 = vor.u32 %v1861, %v1865
      %v1868 = vshll.u32 %v1859, 16
      %v1870 = vrot.slane %v1868, 1
      %v1871 = vsel %vm902, %v1866, %v1870
      %v1872 = vshrl.u32 %v1859, 16
      %1874 = vrot.lane.b32.xlu0 %v1871, 8
      %v1875 = vpop.permute.xlu0 %1874
      %1876 = vrot.lane.b32.xlu0 %v1872, 8
      %v1877 = vpop.permute.xlu0 %1876
      %v1878 = vrot.slane %v1858, 1
      %v1879 = vrot.slane %v1859, 1
      %v1880 = vsel %vm1191, %v1878, %v1879
      %1881 = vrot.lane.b32.xlu0 %v1880, 16
      %v1882 = vpop.permute.xlu0 %1881
      %1883 = vrot.lane.b32.xlu0 %v1879, 16
      %v1884 = vpop.permute.xlu0 %1883
      %v1886 = vsel %vm1304, %v1858, %v1875
      %v1888 = vsel %vm1304, %v1859, %v1877
      %v1890 = vsel %vm1369, %v1886, %v1882
      %v1892 = vsel %vm1369, %v1888, %v1884
      %v1893 = vshrl.u32 %v1890, 16
      %v1895 = vshll.u32 %v1890, 16
      %v1897 = vrot.slane %v1895, 1
      %v1898 = vor.u32 %v1893, %v1897
      %v1899 = vshll.u32 %v1892, 16
      %v1901 = vrot.slane %v1899, 1
      %v1902 = vsel %vm902, %v1898, %v1901
      %s1903 = scalar_lea.vmem %s1, 12
      %v1904 = vld [vmem:[%s1903] sm:$0xf]
      %v1905 = vld [vmem:[%s1903 + $0x4] sm:$0xf]
      %v1906 = vld [vmem:[%s1903 + $0x8] sm:$0xf]
      %v1910 = vunpack.c.l.b16 %v1904
      %v1911 = vunpack.c.l.b16 %v1905
      %v1912 = vunpack.c.l.b16 %v1906
      %v1913 = vpack.c.b16 %v1911, %v1910
      %v1914 = vpack.c.b16 %v1912, %v1912
      %v1917 = vsel %vm1606, %v1902, 0
      %v1920 = vsel %vm1655, %v1914, 0
      %1922 = vmatprep.subr.bf16.mxu0 0
      %1923 = vmatpush1.bf16.msra.mxu0 0
      %1924 = vmatprep.subr.bf16.mxu0 0
      %1925 = vmatpush1.bf16.msra.mxu0 0
      %1926 = vmatprep.subr.bf16.mxu0 0
      %1927 = vmatpush1.bf16.msra.mxu0 0
      %1928 = vmatprep.subr.bf16.mxu0 0
      %1929 = vmatpush1.bf16.msra.mxu0 0
      %1930 = vmatprep.subr.bf16.mxu0 0
      %1931 = vmatpush1.bf16.msra.mxu0 0
      %1932 = vmatprep.subr.bf16.mxu0 0
      %1933 = vmatpush1.bf16.msra.mxu0 0
      %1934 = vmatprep.subr.bf16.mxu0 0
      %1935 = vmatpush1.bf16.msra.mxu0 %v1920
      %1936 = vmatprep.subr.bf16.mxu0 0
      %1937 = vmatpush1.bf16.msra.mxu0 %v1913
      %1938 = vmatprep.subr.bf16.mxu0 0
      %1939 = vmatpush2.bf16.msra.mxu0 0
      %1940 = vmatprep.subr.bf16.mxu0 0
      %1941 = vmatpush2.bf16.msra.mxu0 0
      %1942 = vmatprep.subr.bf16.mxu0 0
      %1943 = vmatpush2.bf16.msra.mxu0 0
      %1944 = vmatprep.subr.bf16.mxu0 0
      %1945 = vmatpush2.bf16.msra.mxu0 0
      %1946 = vmatprep.subr.bf16.mxu0 0
      %1947 = vmatpush2.bf16.msra.mxu0 0
      %1948 = vmatprep.subr.bf16.mxu0 0
      %1949 = vmatpush2.bf16.msra.mxu0 0
      %1950 = vmatprep.subr.bf16.mxu0 0
      %1951 = vmatpush2.bf16.msra.mxu0 0
      %1952 = vmatprep.subr.bf16.mxu0 0
      %1953 = vmatpush2.bf16.msra.mxu0 0
      %1954 = vmatprep.mubr.bf16.mxu0 0
      %1955 = vmatmul.mubr.bf16.gmra.mxu0 %v1611
      %v1956 = vpop.f32.mrf.mxu0
      %v1957 = vadd.f32 0.0, %v1956
      %v1958 = vpop.f32.mrf.mxu0
      %v1959 = vpop.f32.mrf.mxu0
      %v1960 = vadd.f32 0.0, %v1959
      %v1961 = vpop.f32.mrf.mxu0
      %1962 = vmatprep.mubr.bf16.mxu0 0
      %1963 = vmatmul.mubr.bf16.gmra.mxu0 %v1614
      %v1964 = vpop.f32.mrf.mxu0
      %v1965 = vadd.f32 0.0, %v1964
      %v1966 = vpop.f32.mrf.mxu0
      %v1967 = vpop.f32.mrf.mxu0
      %v1968 = vadd.f32 0.0, %v1967
      %v1969 = vpop.f32.mrf.mxu0
      %1970 = vmatprep.mubr.bf16.mxu0 0
      %1971 = vmatmul.mubr.bf16.gmra.mxu0 %v1617
      %v1972 = vpop.f32.mrf.mxu0
      %v1973 = vadd.f32 0.0, %v1972
      %v1974 = vpop.f32.mrf.mxu0
      %v1975 = vpop.f32.mrf.mxu0
      %v1976 = vadd.f32 0.0, %v1975
      %v1977 = vpop.f32.mrf.mxu0
      %1978 = vmatprep.mubr.bf16.mxu0 0
      %1979 = vmatmul.mubr.bf16.gmra.mxu0 %v1620
      %v1980 = vpop.f32.mrf.mxu0
      %v1981 = vadd.f32 0.0, %v1980
      %v1982 = vpop.f32.mrf.mxu0
      %v1983 = vpop.f32.mrf.mxu0
      %v1984 = vadd.f32 0.0, %v1983
      %v1985 = vpop.f32.mrf.mxu0
      %1986 = vmatprep.mubr.bf16.mxu0 0
      %1987 = vmatmul.mubr.bf16.gmra.mxu0 %v1623
      %v1988 = vpop.f32.mrf.mxu0
      %v1989 = vadd.f32 0.0, %v1988
      %v1990 = vpop.f32.mrf.mxu0
      %v1991 = vpop.f32.mrf.mxu0
      %v1992 = vadd.f32 0.0, %v1991
      %v1993 = vpop.f32.mrf.mxu0
      %1994 = vmatprep.mubr.bf16.mxu0 0
      %1995 = vmatmul.mubr.bf16.gmra.mxu0 %v1626
      %v1996 = vpop.f32.mrf.mxu0
      %v1997 = vadd.f32 0.0, %v1996
      %v1998 = vpop.f32.mrf.mxu0
      %v1999 = vpop.f32.mrf.mxu0
      %v2000 = vadd.f32 0.0, %v1999
      %v2001 = vpop.f32.mrf.mxu0
      %2002 = vmatprep.mubr.bf16.mxu0 0
      %2003 = vmatmul.mubr.bf16.gmra.mxu0 %v1629
      %v2004 = vpop.f32.mrf.mxu0
      %v2005 = vadd.f32 0.0, %v2004
      %v2006 = vpop.f32.mrf.mxu0
      %v2007 = vpop.f32.mrf.mxu0
      %v2008 = vadd.f32 0.0, %v2007
      %v2009 = vpop.f32.mrf.mxu0
      %2010 = vmatprep.mubr.bf16.mxu0 0
      %2011 = vmatmul.mubr.bf16.gmra.mxu0 %v1632
      %v2012 = vpop.f32.mrf.mxu0
      %v2013 = vadd.f32 0.0, %v2012
      %v2014 = vpop.f32.mrf.mxu0
      %v2015 = vpop.f32.mrf.mxu0
      %v2016 = vadd.f32 0.0, %v2015
      %v2017 = vpop.f32.mrf.mxu0
      %2018 = vmatprep.mubr.bf16.mxu0 0
      %2019 = vmatmul.mubr.bf16.gmra.mxu0 %v1635
      %v2020 = vpop.f32.mrf.mxu0
      %v2021 = vadd.f32 0.0, %v2020
      %v2022 = vpop.f32.mrf.mxu0
      %v2023 = vpop.f32.mrf.mxu0
      %v2024 = vadd.f32 0.0, %v2023
      %v2025 = vpop.f32.mrf.mxu0
      %2026 = vmatprep.mubr.bf16.mxu0 0
      %2027 = vmatmul.mubr.bf16.gmra.mxu0 %v1638
      %v2028 = vpop.f32.mrf.mxu0
      %v2029 = vadd.f32 0.0, %v2028
      %v2030 = vpop.f32.mrf.mxu0
      %v2031 = vpop.f32.mrf.mxu0
      %v2032 = vadd.f32 0.0, %v2031
      %v2033 = vpop.f32.mrf.mxu0
      %2034 = vmatprep.mubr.bf16.mxu0 0
      %2035 = vmatmul.mubr.bf16.gmra.mxu0 %v1641
      %v2036 = vpop.f32.mrf.mxu0
      %v2037 = vadd.f32 0.0, %v2036
      %v2038 = vpop.f32.mrf.mxu0
      %v2039 = vpop.f32.mrf.mxu0
      %v2040 = vadd.f32 0.0, %v2039
      %v2041 = vpop.f32.mrf.mxu0
      %2042 = vmatprep.mubr.bf16.mxu0 0
      %2043 = vmatmul.mubr.bf16.gmra.mxu0 %v1644
      %v2044 = vpop.f32.mrf.mxu0
      %v2045 = vadd.f32 0.0, %v2044
      %v2046 = vpop.f32.mrf.mxu0
      %v2047 = vpop.f32.mrf.mxu0
      %v2048 = vadd.f32 0.0, %v2047
      %v2049 = vpop.f32.mrf.mxu0
      %2050 = vmatprep.mubr.bf16.mxu0 0
      %2051 = vmatmul.mubr.bf16.gmra.mxu0 %v1647
      %v2052 = vpop.f32.mrf.mxu0
      %v2053 = vadd.f32 0.0, %v2052
      %v2054 = vpop.f32.mrf.mxu0
      %v2055 = vpop.f32.mrf.mxu0
      %v2056 = vadd.f32 0.0, %v2055
      %v2057 = vpop.f32.mrf.mxu0
      %2058 = vmatprep.mubr.bf16.mxu0 0
      %2059 = vmatmul.mubr.bf16.gmra.mxu0 %v1650
      %v2060 = vpop.f32.mrf.mxu0
      %v2061 = vadd.f32 0.0, %v2060
      %v2062 = vpop.f32.mrf.mxu0
      %v2063 = vpop.f32.mrf.mxu0
      %v2064 = vadd.f32 0.0, %v2063
      %v2065 = vpop.f32.mrf.mxu0
      %2066 = vmatprep.mubr.bf16.mxu0 0
      %2067 = vmatmul.mubr.bf16.gmra.mxu0 %v1653
      %v2068 = vpop.f32.mrf.mxu0
      %v2069 = vadd.f32 0.0, %v2068
      %v2070 = vpop.f32.mrf.mxu0
      %v2071 = vpop.f32.mrf.mxu0
      %v2072 = vadd.f32 0.0, %v2071
      %v2073 = vpop.f32.mrf.mxu0
      %2074 = vmatprep.mubr.bf16.mxu0 0
      %2075 = vmatmul.mubr.bf16.gmra.mxu0 %v1917
      %v2076 = vpop.f32.mrf.mxu0
      %v2077 = vadd.f32 0.0, %v2076
      %v2078 = vpop.f32.mrf.mxu0
      %v2079 = vpop.f32.mrf.mxu0
      %v2080 = vadd.f32 0.0, %v2079
      %v2081 = vpop.f32.mrf.mxu0
      %2082 = vdwg.mxu0
      %v2083 = vadd.f32 %v1820, %v1957
      %v2084 = vadd.f32 %v1821, %v1960
      %v2085 = vadd.f32 %v1822, %v1965
      %v2086 = vadd.f32 %v1823, %v1968
      %v2087 = vadd.f32 %v1824, %v1973
      %v2088 = vadd.f32 %v1825, %v1976
      %v2089 = vadd.f32 %v1826, %v1981
      %v2090 = vadd.f32 %v1827, %v1984
      %v2091 = vadd.f32 %v1828, %v1989
      %v2092 = vadd.f32 %v1829, %v1992
      %v2093 = vadd.f32 %v1830, %v1997
      %v2094 = vadd.f32 %v1831, %v2000
      %v2095 = vadd.f32 %v1832, %v2005
      %v2096 = vadd.f32 %v1833, %v2008
      %v2097 = vadd.f32 %v1834, %v2013
      %v2098 = vadd.f32 %v1835, %v2016
      %v2099 = vadd.f32 %v1836, %v2021
      %v2100 = vadd.f32 %v1837, %v2024
      %v2101 = vadd.f32 %v1838, %v2029
      %v2102 = vadd.f32 %v1839, %v2032
      %v2103 = vadd.f32 %v1840, %v2037
      %v2104 = vadd.f32 %v1841, %v2040
      %v2105 = vadd.f32 %v1842, %v2045
      %v2106 = vadd.f32 %v1843, %v2048
      %v2107 = vadd.f32 %v1844, %v2053
      %v2108 = vadd.f32 %v1845, %v2056
      %v2109 = vadd.f32 %v1846, %v2061
      %v2110 = vadd.f32 %v1847, %v2064
      %v2111 = vadd.f32 %v1848, %v2069
      %v2112 = vadd.f32 %v1849, %v2072
      %v2113 = vadd.f32 %v1850, %v2077
      %v2114 = vadd.f32 %v1851, %v2080
      %v2118 = vunpack.c.l.b16 %v765
      %v2119 = vunpack.c.l.b16 %v766
      %v2120 = vunpack.c.l.b16 %v767
      %v2121 = vpack.c.b16 %v2119, %v2118
      %v2122 = vpack.c.b16 %v2120, %v2120
      %v2124 = vshrl.u32 %v2121, 16
      %v2126 = vshll.u32 %v2121, 16
      %v2128 = vrot.slane %v2126, 1
      %v2129 = vor.u32 %v2124, %v2128
      %v2131 = vshll.u32 %v2122, 16
      %v2133 = vrot.slane %v2131, 1
      %v2134 = vsel %vm902, %v2129, %v2133
      %v2135 = vshrl.u32 %v2122, 16
      %2137 = vrot.lane.b32.xlu0 %v2134, 8
      %v2138 = vpop.permute.xlu0 %2137
      %2139 = vrot.lane.b32.xlu0 %v2135, 8
      %v2140 = vpop.permute.xlu0 %2139
      %v2141 = vrot.slane %v2121, 1
      %v2142 = vrot.slane %v2122, 1
      %v2143 = vsel %vm1191, %v2141, %v2142
      %2144 = vrot.lane.b32.xlu0 %v2143, 16
      %v2145 = vpop.permute.xlu0 %2144
      %2146 = vrot.lane.b32.xlu0 %v2142, 16
      %v2147 = vpop.permute.xlu0 %2146
      %v2149 = vsel %vm1304, %v2121, %v2138
      %v2151 = vsel %vm1304, %v2122, %v2140
      %v2153 = vsel %vm1369, %v2149, %v2145
      %v2155 = vsel %vm1369, %v2151, %v2147
      %v2156 = vshrl.u32 %v2153, 16
      %v2158 = vshll.u32 %v2153, 16
      %v2160 = vrot.slane %v2158, 1
      %v2161 = vor.u32 %v2156, %v2160
      %v2162 = vshll.u32 %v2155, 16
      %v2164 = vrot.slane %v2162, 1
      %v2165 = vsel %vm902, %v2161, %v2164
      %s2166 = scalar_lea.vmem %s1, 24
      %v2167 = vld [vmem:[%s2166] sm:$0xf]
      %v2168 = vld [vmem:[%s2166 + $0x4] sm:$0xf]
      %v2169 = vld [vmem:[%s2166 + $0x8] sm:$0xf]
      %v2173 = vunpack.c.l.b16 %v2167
      %v2174 = vunpack.c.l.b16 %v2168
      %v2175 = vunpack.c.l.b16 %v2169
      %v2176 = vpack.c.b16 %v2174, %v2173
      %v2177 = vpack.c.b16 %v2175, %v2175
      %v2180 = vsel %vm1606, %v2165, 0
      %v2183 = vsel %vm1655, %v2177, 0
      %2185 = vmatprep.subr.bf16.mxu0 0
      %2186 = vmatpush1.bf16.msra.mxu0 0
      %2187 = vmatprep.subr.bf16.mxu0 0
      %2188 = vmatpush1.bf16.msra.mxu0 0
      %2189 = vmatprep.subr.bf16.mxu0 0
      %2190 = vmatpush1.bf16.msra.mxu0 0
      %2191 = vmatprep.subr.bf16.mxu0 0
      %2192 = vmatpush1.bf16.msra.mxu0 0
      %2193 = vmatprep.subr.bf16.mxu0 0
      %2194 = vmatpush1.bf16.msra.mxu0 0
      %2195 = vmatprep.subr.bf16.mxu0 0
      %2196 = vmatpush1.bf16.msra.mxu0 0
      %2197 = vmatprep.subr.bf16.mxu0 0
      %2198 = vmatpush1.bf16.msra.mxu0 %v2183
      %2199 = vmatprep.subr.bf16.mxu0 0
      %2200 = vmatpush1.bf16.msra.mxu0 %v2176
      %2201 = vmatprep.subr.bf16.mxu0 0
      %2202 = vmatpush2.bf16.msra.mxu0 0
      %2203 = vmatprep.subr.bf16.mxu0 0
      %2204 = vmatpush2.bf16.msra.mxu0 0
      %2205 = vmatprep.subr.bf16.mxu0 0
      %2206 = vmatpush2.bf16.msra.mxu0 0
      %2207 = vmatprep.subr.bf16.mxu0 0
      %2208 = vmatpush2.bf16.msra.mxu0 0
      %2209 = vmatprep.subr.bf16.mxu0 0
      %2210 = vmatpush2.bf16.msra.mxu0 0
      %2211 = vmatprep.subr.bf16.mxu0 0
      %2212 = vmatpush2.bf16.msra.mxu0 0
      %2213 = vmatprep.subr.bf16.mxu0 0
      %2214 = vmatpush2.bf16.msra.mxu0 0
      %2215 = vmatprep.subr.bf16.mxu0 0
      %2216 = vmatpush2.bf16.msra.mxu0 0
      %2217 = vmatprep.mubr.bf16.mxu0 0
      %2218 = vmatmul.mubr.bf16.gmra.mxu0 %v1614
      %v2219 = vpop.f32.mrf.mxu0
      %v2220 = vadd.f32 0.0, %v2219
      %v2221 = vpop.f32.mrf.mxu0
      %v2222 = vpop.f32.mrf.mxu0
      %v2223 = vadd.f32 0.0, %v2222
      %v2224 = vpop.f32.mrf.mxu0
      %2225 = vmatprep.mubr.bf16.mxu0 0
      %2226 = vmatmul.mubr.bf16.gmra.mxu0 %v1617
      %v2227 = vpop.f32.mrf.mxu0
      %v2228 = vadd.f32 0.0, %v2227
      %v2229 = vpop.f32.mrf.mxu0
      %v2230 = vpop.f32.mrf.mxu0
      %v2231 = vadd.f32 0.0, %v2230
      %v2232 = vpop.f32.mrf.mxu0
      %2233 = vmatprep.mubr.bf16.mxu0 0
      %2234 = vmatmul.mubr.bf16.gmra.mxu0 %v1620
      %v2235 = vpop.f32.mrf.mxu0
      %v2236 = vadd.f32 0.0, %v2235
      %v2237 = vpop.f32.mrf.mxu0
      %v2238 = vpop.f32.mrf.mxu0
      %v2239 = vadd.f32 0.0, %v2238
      %v2240 = vpop.f32.mrf.mxu0
      %2241 = vmatprep.mubr.bf16.mxu0 0
      %2242 = vmatmul.mubr.bf16.gmra.mxu0 %v1623
      %v2243 = vpop.f32.mrf.mxu0
      %v2244 = vadd.f32 0.0, %v2243
      %v2245 = vpop.f32.mrf.mxu0
      %v2246 = vpop.f32.mrf.mxu0
      %v2247 = vadd.f32 0.0, %v2246
      %v2248 = vpop.f32.mrf.mxu0
      %2249 = vmatprep.mubr.bf16.mxu0 0
      %2250 = vmatmul.mubr.bf16.gmra.mxu0 %v1626
      %v2251 = vpop.f32.mrf.mxu0
      %v2252 = vadd.f32 0.0, %v2251
      %v2253 = vpop.f32.mrf.mxu0
      %v2254 = vpop.f32.mrf.mxu0
      %v2255 = vadd.f32 0.0, %v2254
      %v2256 = vpop.f32.mrf.mxu0
      %2257 = vmatprep.mubr.bf16.mxu0 0
      %2258 = vmatmul.mubr.bf16.gmra.mxu0 %v1629
      %v2259 = vpop.f32.mrf.mxu0
      %v2260 = vadd.f32 0.0, %v2259
      %v2261 = vpop.f32.mrf.mxu0
      %v2262 = vpop.f32.mrf.mxu0
      %v2263 = vadd.f32 0.0, %v2262
      %v2264 = vpop.f32.mrf.mxu0
      %2265 = vmatprep.mubr.bf16.mxu0 0
      %2266 = vmatmul.mubr.bf16.gmra.mxu0 %v1632
      %v2267 = vpop.f32.mrf.mxu0
      %v2268 = vadd.f32 0.0, %v2267
      %v2269 = vpop.f32.mrf.mxu0
      %v2270 = vpop.f32.mrf.mxu0
      %v2271 = vadd.f32 0.0, %v2270
      %v2272 = vpop.f32.mrf.mxu0
      %2273 = vmatprep.mubr.bf16.mxu0 0
      %2274 = vmatmul.mubr.bf16.gmra.mxu0 %v1635
      %v2275 = vpop.f32.mrf.mxu0
      %v2276 = vadd.f32 0.0, %v2275
      %v2277 = vpop.f32.mrf.mxu0
      %v2278 = vpop.f32.mrf.mxu0
      %v2279 = vadd.f32 0.0, %v2278
      %v2280 = vpop.f32.mrf.mxu0
      %2281 = vmatprep.mubr.bf16.mxu0 0
      %2282 = vmatmul.mubr.bf16.gmra.mxu0 %v1638
      %v2283 = vpop.f32.mrf.mxu0
      %v2284 = vadd.f32 0.0, %v2283
      %v2285 = vpop.f32.mrf.mxu0
      %v2286 = vpop.f32.mrf.mxu0
      %v2287 = vadd.f32 0.0, %v2286
      %v2288 = vpop.f32.mrf.mxu0
      %2289 = vmatprep.mubr.bf16.mxu0 0
      %2290 = vmatmul.mubr.bf16.gmra.mxu0 %v1641
      %v2291 = vpop.f32.mrf.mxu0
      %v2292 = vadd.f32 0.0, %v2291
      %v2293 = vpop.f32.mrf.mxu0
      %v2294 = vpop.f32.mrf.mxu0
      %v2295 = vadd.f32 0.0, %v2294
      %v2296 = vpop.f32.mrf.mxu0
      %2297 = vmatprep.mubr.bf16.mxu0 0
      %2298 = vmatmul.mubr.bf16.gmra.mxu0 %v1644
      %v2299 = vpop.f32.mrf.mxu0
      %v2300 = vadd.f32 0.0, %v2299
      %v2301 = vpop.f32.mrf.mxu0
      %v2302 = vpop.f32.mrf.mxu0
      %v2303 = vadd.f32 0.0, %v2302
      %v2304 = vpop.f32.mrf.mxu0
      %2305 = vmatprep.mubr.bf16.mxu0 0
      %2306 = vmatmul.mubr.bf16.gmra.mxu0 %v1647
      %v2307 = vpop.f32.mrf.mxu0
      %v2308 = vadd.f32 0.0, %v2307
      %v2309 = vpop.f32.mrf.mxu0
      %v2310 = vpop.f32.mrf.mxu0
      %v2311 = vadd.f32 0.0, %v2310
      %v2312 = vpop.f32.mrf.mxu0
      %2313 = vmatprep.mubr.bf16.mxu0 0
      %2314 = vmatmul.mubr.bf16.gmra.mxu0 %v1650
      %v2315 = vpop.f32.mrf.mxu0
      %v2316 = vadd.f32 0.0, %v2315
      %v2317 = vpop.f32.mrf.mxu0
      %v2318 = vpop.f32.mrf.mxu0
      %v2319 = vadd.f32 0.0, %v2318
      %v2320 = vpop.f32.mrf.mxu0
      %2321 = vmatprep.mubr.bf16.mxu0 0
      %2322 = vmatmul.mubr.bf16.gmra.mxu0 %v1653
      %v2323 = vpop.f32.mrf.mxu0
      %v2324 = vadd.f32 0.0, %v2323
      %v2325 = vpop.f32.mrf.mxu0
      %v2326 = vpop.f32.mrf.mxu0
      %v2327 = vadd.f32 0.0, %v2326
      %v2328 = vpop.f32.mrf.mxu0
      %2329 = vmatprep.mubr.bf16.mxu0 0
      %2330 = vmatmul.mubr.bf16.gmra.mxu0 %v1917
      %v2331 = vpop.f32.mrf.mxu0
      %v2332 = vadd.f32 0.0, %v2331
      %v2333 = vpop.f32.mrf.mxu0
      %v2334 = vpop.f32.mrf.mxu0
      %v2335 = vadd.f32 0.0, %v2334
      %v2336 = vpop.f32.mrf.mxu0
      %2337 = vmatprep.mubr.bf16.mxu0 0
      %2338 = vmatmul.mubr.bf16.gmra.mxu0 %v2180
      %v2339 = vpop.f32.mrf.mxu0
      %v2340 = vadd.f32 0.0, %v2339
      %v2341 = vpop.f32.mrf.mxu0
      %v2342 = vpop.f32.mrf.mxu0
      %v2343 = vadd.f32 0.0, %v2342
      %v2344 = vpop.f32.mrf.mxu0
      %2345 = vdwg.mxu0
      %v2346 = vadd.f32 %v2083, %v2220
      %v2347 = vadd.f32 %v2084, %v2223
      %v2348 = vadd.f32 %v2085, %v2228
      %v2349 = vadd.f32 %v2086, %v2231
      %v2350 = vadd.f32 %v2087, %v2236
      %v2351 = vadd.f32 %v2088, %v2239
      %v2352 = vadd.f32 %v2089, %v2244
      %v2353 = vadd.f32 %v2090, %v2247
      %v2354 = vadd.f32 %v2091, %v2252
      %v2355 = vadd.f32 %v2092, %v2255
      %v2356 = vadd.f32 %v2093, %v2260
      %v2357 = vadd.f32 %v2094, %v2263
      %v2358 = vadd.f32 %v2095, %v2268
      %v2359 = vadd.f32 %v2096, %v2271
      %v2360 = vadd.f32 %v2097, %v2276
      %v2361 = vadd.f32 %v2098, %v2279
      %v2362 = vadd.f32 %v2099, %v2284
      %v2363 = vadd.f32 %v2100, %v2287
      %v2364 = vadd.f32 %v2101, %v2292
      %v2365 = vadd.f32 %v2102, %v2295
      %v2366 = vadd.f32 %v2103, %v2300
      %v2367 = vadd.f32 %v2104, %v2303
      %v2368 = vadd.f32 %v2105, %v2308
      %v2369 = vadd.f32 %v2106, %v2311
      %v2370 = vadd.f32 %v2107, %v2316
      %v2371 = vadd.f32 %v2108, %v2319
      %v2372 = vadd.f32 %v2109, %v2324
      %v2373 = vadd.f32 %v2110, %v2327
      %v2374 = vadd.f32 %v2111, %v2332
      %v2375 = vadd.f32 %v2112, %v2335
      %v2376 = vadd.f32 %v2113, %v2340
      %v2377 = vadd.f32 %v2114, %v2343
      %v2378 = vmul.f32 %v2346, 0.2
      %v2379 = vmul.f32 %v2347, 0.2
      %v2380 = vmul.f32 %v2348, 0.2
      %v2381 = vmul.f32 %v2349, 0.2
      %v2382 = vmul.f32 %v2350, 0.2
      %v2383 = vmul.f32 %v2351, 0.2
      %v2384 = vmul.f32 %v2352, 0.2
      %v2385 = vmul.f32 %v2353, 0.2
      %v2386 = vmul.f32 %v2354, 0.2
      %v2387 = vmul.f32 %v2355, 0.2
      %v2388 = vmul.f32 %v2356, 0.2
      %v2389 = vmul.f32 %v2357, 0.2
      %v2390 = vmul.f32 %v2358, 0.2
      %v2391 = vmul.f32 %v2359, 0.2
      %v2392 = vmul.f32 %v2360, 0.2
      %v2393 = vmul.f32 %v2361, 0.2
      %v2394 = vmul.f32 %v2362, 0.2
      %v2395 = vmul.f32 %v2363, 0.2
      %v2396 = vmul.f32 %v2364, 0.2
      %v2397 = vmul.f32 %v2365, 0.2
      %v2398 = vmul.f32 %v2366, 0.2
      %v2399 = vmul.f32 %v2367, 0.2
      %v2400 = vmul.f32 %v2368, 0.2
      %v2401 = vmul.f32 %v2369, 0.2
      %v2402 = vmul.f32 %v2370, 0.2
      %v2403 = vmul.f32 %v2371, 0.2
      %v2404 = vmul.f32 %v2372, 0.2
      %v2405 = vmul.f32 %v2373, 0.2
      %v2406 = vmul.f32 %v2374, 0.2
      %v2407 = vmul.f32 %v2375, 0.2
      %v2408 = vmul.f32 %v2376, 0.2
      %v2409 = vmul.f32 %v2377, 0.2
      %v2410 = vmax.f32 %v2346, %v2378
      %v2411 = vmax.f32 %v2347, %v2379
      %v2412 = vmax.f32 %v2348, %v2380
      %v2413 = vmax.f32 %v2349, %v2381
      %v2414 = vmax.f32 %v2350, %v2382
      %v2415 = vmax.f32 %v2351, %v2383
      %v2416 = vmax.f32 %v2352, %v2384
      %v2417 = vmax.f32 %v2353, %v2385
      %v2418 = vmax.f32 %v2354, %v2386
      %v2419 = vmax.f32 %v2355, %v2387
      %v2420 = vmax.f32 %v2356, %v2388
      %v2421 = vmax.f32 %v2357, %v2389
      %v2422 = vmax.f32 %v2358, %v2390
      %v2423 = vmax.f32 %v2359, %v2391
      %v2424 = vmax.f32 %v2360, %v2392
      %v2425 = vmax.f32 %v2361, %v2393
      %v2426 = vmax.f32 %v2362, %v2394
      %v2427 = vmax.f32 %v2363, %v2395
      %v2428 = vmax.f32 %v2364, %v2396
      %v2429 = vmax.f32 %v2365, %v2397
      %v2430 = vmax.f32 %v2366, %v2398
      %v2431 = vmax.f32 %v2367, %v2399
      %v2432 = vmax.f32 %v2368, %v2400
      %v2433 = vmax.f32 %v2369, %v2401
      %v2434 = vmax.f32 %v2370, %v2402
      %v2435 = vmax.f32 %v2371, %v2403
      %v2436 = vmax.f32 %v2372, %v2404
      %v2437 = vmax.f32 %v2373, %v2405
      %v2438 = vmax.f32 %v2374, %v2406
      %v2439 = vmax.f32 %v2375, %v2407
      %v2440 = vmax.f32 %v2376, %v2408
      %v2441 = vmax.f32 %v2377, %v2409
      %v2442 = vpack.c.bf16 %v2411, %v2410
      %v2443 = vpack.c.bf16 %v2413, %v2412
      %v2444 = vpack.c.bf16 %v2415, %v2414
      %v2445 = vpack.c.bf16 %v2417, %v2416
      %v2446 = vpack.c.bf16 %v2419, %v2418
      %v2447 = vpack.c.bf16 %v2421, %v2420
      %v2448 = vpack.c.bf16 %v2423, %v2422
      %v2449 = vpack.c.bf16 %v2425, %v2424
      %v2450 = vpack.c.bf16 %v2427, %v2426
      %v2451 = vpack.c.bf16 %v2429, %v2428
      %v2452 = vpack.c.bf16 %v2431, %v2430
      %v2453 = vpack.c.bf16 %v2433, %v2432
      %v2454 = vpack.c.bf16 %v2435, %v2434
      %v2455 = vpack.c.bf16 %v2437, %v2436
      %v2456 = vpack.c.bf16 %v2439, %v2438
      %v2457 = vpack.c.bf16 %v2441, %v2440
      %v2474 = vunpack.c.l.b16 %v2442
      %v2475 = vunpack.c.h.b16 %v2442
      %v2476 = vunpack.c.l.b16 %v2443
      %v2477 = vunpack.c.h.b16 %v2443
      %v2478 = vunpack.c.l.b16 %v2444
      %v2479 = vunpack.c.h.b16 %v2444
      %v2480 = vunpack.c.l.b16 %v2445
      %v2481 = vunpack.c.h.b16 %v2445
      %v2482 = vunpack.c.l.b16 %v2446
      %v2483 = vunpack.c.h.b16 %v2446
      %v2484 = vunpack.c.l.b16 %v2447
      %v2485 = vunpack.c.h.b16 %v2447
      %v2486 = vunpack.c.l.b16 %v2448
      %v2487 = vunpack.c.h.b16 %v2448
      %v2488 = vunpack.c.l.b16 %v2449
      %v2489 = vunpack.c.h.b16 %v2449
      %v2490 = vunpack.c.l.b16 %v2450
      %v2491 = vunpack.c.h.b16 %v2450
      %v2492 = vunpack.c.l.b16 %v2451
      %v2493 = vunpack.c.h.b16 %v2451
      %v2494 = vunpack.c.l.b16 %v2452
      %v2495 = vunpack.c.h.b16 %v2452
      %v2496 = vunpack.c.l.b16 %v2453
      %v2497 = vunpack.c.h.b16 %v2453
      %v2498 = vunpack.c.l.b16 %v2454
      %v2499 = vunpack.c.h.b16 %v2454
      %v2500 = vunpack.c.l.b16 %v2455
      %v2501 = vunpack.c.h.b16 %v2455
      %v2502 = vunpack.c.l.b16 %v2456
      %v2503 = vunpack.c.h.b16 %v2456
      %v2504 = vunpack.c.l.b16 %v2457
      %v2505 = vunpack.c.h.b16 %v2457
      %v2506 = vpack.c.b16 %v2474, %v2474
      %v2507 = vpack.c.b16 %v2475, %v2475
      %v2508 = vpack.c.b16 %v2476, %v2476
      %v2509 = vpack.c.b16 %v2477, %v2477
      %v2510 = vpack.c.b16 %v2478, %v2478
      %v2511 = vpack.c.b16 %v2479, %v2479
      %v2512 = vpack.c.b16 %v2480, %v2480
      %v2513 = vpack.c.b16 %v2481, %v2481
      %v2514 = vpack.c.b16 %v2482, %v2482
      %v2515 = vpack.c.b16 %v2483, %v2483
      %v2516 = vpack.c.b16 %v2484, %v2484
      %v2517 = vpack.c.b16 %v2485, %v2485
      %v2518 = vpack.c.b16 %v2486, %v2486
      %v2519 = vpack.c.b16 %v2487, %v2487
      %v2520 = vpack.c.b16 %v2488, %v2488
      %v2521 = vpack.c.b16 %v2489, %v2489
      %v2522 = vpack.c.b16 %v2490, %v2490
      %v2523 = vpack.c.b16 %v2491, %v2491
      %v2524 = vpack.c.b16 %v2492, %v2492
      %v2525 = vpack.c.b16 %v2493, %v2493
      %v2526 = vpack.c.b16 %v2494, %v2494
      %v2527 = vpack.c.b16 %v2495, %v2495
      %v2528 = vpack.c.b16 %v2496, %v2496
      %v2529 = vpack.c.b16 %v2497, %v2497
      %v2530 = vpack.c.b16 %v2498, %v2498
      %v2531 = vpack.c.b16 %v2499, %v2499
      %v2532 = vpack.c.b16 %v2500, %v2500
      %v2533 = vpack.c.b16 %v2501, %v2501
      %v2534 = vpack.c.b16 %v2502, %v2502
      %v2535 = vpack.c.b16 %v2503, %v2503
      %v2536 = vpack.c.b16 %v2504, %v2504
      %v2537 = vpack.c.b16 %v2505, %v2505
      %v2538 = vrot.slane %v2506, 7
      %v2539 = vrot.slane %v2538, 4
      %v2540 = vrot.slane %v2507, 7
      %v2541 = vsel %vm533, %v2539, %v2540
      %v2542 = vrot.slane %v2540, 4
      %v2543 = vrot.slane %v2508, 7
      %v2544 = vrot.slane %v2543, 4
      %v2545 = vrot.slane %v2509, 7
      %v2546 = vsel %vm533, %v2544, %v2545
      %v2547 = vrot.slane %v2545, 4
      %v2548 = vrot.slane %v2510, 7
      %v2549 = vrot.slane %v2548, 4
      %v2550 = vrot.slane %v2511, 7
      %v2551 = vsel %vm533, %v2549, %v2550
      %v2552 = vrot.slane %v2550, 4
      %v2553 = vrot.slane %v2512, 7
      %v2554 = vrot.slane %v2553, 4
      %v2555 = vrot.slane %v2513, 7
      %v2556 = vsel %vm533, %v2554, %v2555
      %v2557 = vrot.slane %v2555, 4
      %v2558 = vrot.slane %v2514, 7
      %v2559 = vrot.slane %v2558, 4
      %v2560 = vrot.slane %v2515, 7
      %v2561 = vsel %vm533, %v2559, %v2560
      %v2562 = vrot.slane %v2560, 4
      %v2563 = vrot.slane %v2516, 7
      %v2564 = vrot.slane %v2563, 4
      %v2565 = vrot.slane %v2517, 7
      %v2566 = vsel %vm533, %v2564, %v2565
      %v2567 = vrot.slane %v2565, 4
      %v2568 = vrot.slane %v2518, 7
      %v2569 = vrot.slane %v2568, 4
      %v2570 = vrot.slane %v2519, 7
      %v2571 = vsel %vm533, %v2569, %v2570
      %v2572 = vrot.slane %v2570, 4
      %v2573 = vrot.slane %v2520, 7
      %v2574 = vrot.slane %v2573, 4
      %v2575 = vrot.slane %v2521, 7
      %v2576 = vsel %vm533, %v2574, %v2575
      %v2577 = vrot.slane %v2575, 4
      %v2578 = vrot.slane %v2522, 7
      %v2579 = vrot.slane %v2578, 4
      %v2580 = vrot.slane %v2523, 7
      %v2581 = vsel %vm533, %v2579, %v2580
      %v2582 = vrot.slane %v2580, 4
      %v2583 = vrot.slane %v2524, 7
      %v2584 = vrot.slane %v2583, 4
      %v2585 = vrot.slane %v2525, 7
      %v2586 = vsel %vm533, %v2584, %v2585
      %v2587 = vrot.slane %v2585, 4
      %v2588 = vrot.slane %v2526, 7
      %v2589 = vrot.slane %v2588, 4
      %v2590 = vrot.slane %v2527, 7
      %v2591 = vsel %vm533, %v2589, %v2590
      %v2592 = vrot.slane %v2590, 4
      %v2593 = vrot.slane %v2528, 7
      %v2594 = vrot.slane %v2593, 4
      %v2595 = vrot.slane %v2529, 7
      %v2596 = vsel %vm533, %v2594, %v2595
      %v2597 = vrot.slane %v2595, 4
      %v2598 = vrot.slane %v2530, 7
      %v2599 = vrot.slane %v2598, 4
      %v2600 = vrot.slane %v2531, 7
      %v2601 = vsel %vm533, %v2599, %v2600
      %v2602 = vrot.slane %v2600, 4
      %v2603 = vrot.slane %v2532, 7
      %v2604 = vrot.slane %v2603, 4
      %v2605 = vrot.slane %v2533, 7
      %v2606 = vsel %vm533, %v2604, %v2605
      %v2607 = vrot.slane %v2605, 4
      %v2608 = vrot.slane %v2534, 7
      %v2609 = vrot.slane %v2608, 4
      %v2610 = vrot.slane %v2535, 7
      %v2611 = vsel %vm533, %v2609, %v2610
      %v2612 = vrot.slane %v2610, 4
      %v2613 = vrot.slane %v2536, 7
      %v2614 = vrot.slane %v2613, 4
      %v2615 = vrot.slane %v2537, 7
      %v2616 = vsel %vm533, %v2614, %v2615
      %v2617 = vrot.slane %v2615, 4
      %s2666 = scalar_lea.vmem [#allocation3], 12
      %vm2667 = vcmask 27649
      %2668 = vst.msk [vmem:[%s2666] sm:$0xe] %vm2667, %v2538
      %2669 = vst.msk [vmem:[%s2666 + $0x4] sm:$0xf] %vm406, %v2541
      %vm2670 = vcmask 24576
      %2671 = vst.msk [vmem:[%s2666 + $0x8] sm:$0x1] %vm2670, %v2542
      %2672 = vst.msk [vmem:[%s2666 + $0xc] sm:$0xe] %vm2667, %v2543
      %2673 = vst.msk [vmem:[%s2666 + $0x10] sm:$0xf] %vm406, %v2546
      %2674 = vst.msk [vmem:[%s2666 + $0x14] sm:$0x1] %vm2670, %v2547
      %2675 = vst.msk [vmem:[%s2666 + $0x18] sm:$0xe] %vm2667, %v2548
      %2676 = vst.msk [vmem:[%s2666 + $0x1c] sm:$0xf] %vm406, %v2551
      %2677 = vst.msk [vmem:[%s2666 + $0x20] sm:$0x1] %vm2670, %v2552
      %2678 = vst.msk [vmem:[%s2666 + $0x24] sm:$0xe] %vm2667, %v2553
      %2679 = vst.msk [vmem:[%s2666 + $0x28] sm:$0xf] %vm406, %v2556
      %2680 = vst.msk [vmem:[%s2666 + $0x2c] sm:$0x1] %vm2670, %v2557
      %2681 = vst.msk [vmem:[%s2666 + $0x30] sm:$0xe] %vm2667, %v2558
      %2682 = vst.msk [vmem:[%s2666 + $0x34] sm:$0xf] %vm406, %v2561
      %2683 = vst.msk [vmem:[%s2666 + $0x38] sm:$0x1] %vm2670, %v2562
      %2684 = vst.msk [vmem:[%s2666 + $0x3c] sm:$0xe] %vm2667, %v2563
      %2685 = vst.msk [vmem:[%s2666 + $0x40] sm:$0xf] %vm406, %v2566
      %2686 = vst.msk [vmem:[%s2666 + $0x44] sm:$0x1] %vm2670, %v2567
      %2687 = vst.msk [vmem:[%s2666 + $0x48] sm:$0xe] %vm2667, %v2568
      %2688 = vst.msk [vmem:[%s2666 + $0x4c] sm:$0xf] %vm406, %v2571
      %2689 = vst.msk [vmem:[%s2666 + $0x50] sm:$0x1] %vm2670, %v2572
      %2690 = vst.msk [vmem:[%s2666 + $0x54] sm:$0xe] %vm2667, %v2573
      %2691 = vst.msk [vmem:[%s2666 + $0x58] sm:$0xf] %vm406, %v2576
      %2692 = vst.msk [vmem:[%s2666 + $0x5c] sm:$0x1] %vm2670, %v2577
      %2693 = vst.msk [vmem:[%s2666 + $0x60] sm:$0xe] %vm2667, %v2578
      %2694 = vst.msk [vmem:[%s2666 + $0x64] sm:$0xf] %vm406, %v2581
      %2695 = vst.msk [vmem:[%s2666 + $0x68] sm:$0x1] %vm2670, %v2582
      %2696 = vst.msk [vmem:[%s2666 + $0x6c] sm:$0xe] %vm2667, %v2583
      %2697 = vst.msk [vmem:[%s2666 + $0x70] sm:$0xf] %vm406, %v2586
      %2698 = vst.msk [vmem:[%s2666 + $0x74] sm:$0x1] %vm2670, %v2587
      %2699 = vst.msk [vmem:[%s2666 + $0x78] sm:$0xe] %vm2667, %v2588
      %2700 = vst.msk [vmem:[%s2666 + $0x7c] sm:$0xf] %vm406, %v2591
      %2701 = vst.msk [vmem:[%s2666 + $0x80] sm:$0x1] %vm2670, %v2592
      %2702 = vst.msk [vmem:[%s2666 + $0x84] sm:$0xe] %vm2667, %v2593
      %2703 = vst.msk [vmem:[%s2666 + $0x88] sm:$0xf] %vm406, %v2596
      %2704 = vst.msk [vmem:[%s2666 + $0x8c] sm:$0x1] %vm2670, %v2597
      %2705 = vst.msk [vmem:[%s2666 + $0x90] sm:$0xe] %vm2667, %v2598
      %2706 = vst.msk [vmem:[%s2666 + $0x94] sm:$0xf] %vm406, %v2601
      %2707 = vst.msk [vmem:[%s2666 + $0x98] sm:$0x1] %vm2670, %v2602
      %2708 = vst.msk [vmem:[%s2666 + $0x9c] sm:$0xe] %vm2667, %v2603
      %2709 = vst.msk [vmem:[%s2666 + $0xa0] sm:$0xf] %vm406, %v2606
      %2710 = vst.msk [vmem:[%s2666 + $0xa4] sm:$0x1] %vm2670, %v2607
      %2711 = vst.msk [vmem:[%s2666 + $0xa8] sm:$0xe] %vm2667, %v2608
      %2712 = vst.msk [vmem:[%s2666 + $0xac] sm:$0xf] %vm406, %v2611
      %2713 = vst.msk [vmem:[%s2666 + $0xb0] sm:$0x1] %vm2670, %v2612
      %2714 = vst.msk [vmem:[%s2666 + $0xb4] sm:$0xe] %vm2667, %v2613
      %2715 = vst.msk [vmem:[%s2666 + $0xb8] sm:$0xf] %vm406, %v2616
      %2716 = vst.msk [vmem:[%s2666 + $0xbc] sm:$0x1] %vm2670, %v2617
      %v2717 = vld [vmem:[%s4] sm:$0x1]
      %v2718 = vld [vmem:[#allocation3] sm:$0xf]
      %v2719 = vld [vmem:[#allocation3 + $0x4] sm:$0xf]
      %v2720 = vld [vmem:[#allocation3 + $0x8] sm:$0x3]
      %v2721 = vld [vmem:[#allocation3 + $0xc] sm:$0xf]
      %v2722 = vld [vmem:[#allocation3 + $0x10] sm:$0xf]
      %v2723 = vld [vmem:[#allocation3 + $0x14] sm:$0x3]
      %v2724 = vld [vmem:[#allocation3 + $0x18] sm:$0xf]
      %v2725 = vld [vmem:[#allocation3 + $0x1c] sm:$0xf]
      %v2726 = vld [vmem:[#allocation3 + $0x20] sm:$0x3]
      %v2727 = vld [vmem:[#allocation3 + $0x24] sm:$0xf]
      %v2728 = vld [vmem:[#allocation3 + $0x28] sm:$0xf]
      %v2729 = vld [vmem:[#allocation3 + $0x2c] sm:$0x3]
      %v2730 = vld [vmem:[#allocation3 + $0x30] sm:$0xf]
      %v2731 = vld [vmem:[#allocation3 + $0x34] sm:$0xf]
      %v2732 = vld [vmem:[#allocation3 + $0x38] sm:$0x3]
      %v2733 = vld [vmem:[#allocation3 + $0x3c] sm:$0xf]
      %v2734 = vld [vmem:[#allocation3 + $0x40] sm:$0xf]
      %v2735 = vld [vmem:[#allocation3 + $0x44] sm:$0x3]
      %v2736 = vld [vmem:[#allocation3 + $0x48] sm:$0xf]
      %v2737 = vld [vmem:[#allocation3 + $0x4c] sm:$0xf]
      %v2738 = vld [vmem:[#allocation3 + $0x50] sm:$0x3]
      %v2739 = vld [vmem:[#allocation3 + $0x54] sm:$0xf]
      %v2740 = vld [vmem:[#allocation3 + $0x58] sm:$0xf]
      %v2741 = vld [vmem:[#allocation3 + $0x5c] sm:$0x3]
      %v2742 = vld [vmem:[#allocation3 + $0x60] sm:$0xf]
      %v2743 = vld [vmem:[#allocation3 + $0x64] sm:$0xf]
      %v2744 = vld [vmem:[#allocation3 + $0x68] sm:$0x3]
      %v2745 = vld [vmem:[#allocation3 + $0x6c] sm:$0xf]
      %v2746 = vld [vmem:[#allocation3 + $0x70] sm:$0xf]
      %v2747 = vld [vmem:[#allocation3 + $0x74] sm:$0x3]
      %v2748 = vld [vmem:[#allocation3 + $0x78] sm:$0xf]
      %v2749 = vld [vmem:[#allocation3 + $0x7c] sm:$0xf]
      %v2750 = vld [vmem:[#allocation3 + $0x80] sm:$0x3]
      %v2751 = vld [vmem:[#allocation3 + $0x84] sm:$0xf]
      %v2752 = vld [vmem:[#allocation3 + $0x88] sm:$0xf]
      %v2753 = vld [vmem:[#allocation3 + $0x8c] sm:$0x3]
      %v2754 = vld [vmem:[#allocation3 + $0x90] sm:$0xf]
      %v2755 = vld [vmem:[#allocation3 + $0x94] sm:$0xf]
      %v2756 = vld [vmem:[#allocation3 + $0x98] sm:$0x3]
      %v2757 = vld [vmem:[#allocation3 + $0x9c] sm:$0xf]
      %v2758 = vld [vmem:[#allocation3 + $0xa0] sm:$0xf]
      %v2759 = vld [vmem:[#allocation3 + $0xa4] sm:$0x3]
      %v2760 = vld [vmem:[#allocation3 + $0xa8] sm:$0xf]
      %v2761 = vld [vmem:[#allocation3 + $0xac] sm:$0xf]
      %v2762 = vld [vmem:[#allocation3 + $0xb0] sm:$0x3]
      %v2763 = vld [vmem:[#allocation3 + $0xb4] sm:$0xf]
      %v2764 = vld [vmem:[#allocation3 + $0xb8] sm:$0xf]
      %v2765 = vld [vmem:[#allocation3 + $0xbc] sm:$0x3]
      %v2766 = vld [vmem:[#allocation3 + $0xc0] sm:$0xf]
      %v2767 = vld [vmem:[#allocation3 + $0xc4] sm:$0xf]
      %v2768 = vld [vmem:[#allocation3 + $0xc8] sm:$0x3]
      %v2769 = vld [vmem:[#allocation3 + $0xcc] sm:$0xf]
      %v2770 = vld [vmem:[#allocation3 + $0xd0] sm:$0xf]
      %v2771 = vld [vmem:[#allocation3 + $0xd4] sm:$0x3]
      %v2773 = vlaneseq
      %v2774 = vshrl.u32 %v2773, 7
      %v2775 = vsub.s32 0, %v2774
      %v2776 = vrot.slane %v2717, %v2775
      %v2826 = vunpack.c.l.b16 %v2718
      %v2827 = vunpack.c.l.b16 %v2719
      %v2828 = vunpack.c.l.b16 %v2720
      %v2829 = vunpack.c.l.b16 %v2721
      %v2830 = vunpack.c.l.b16 %v2722
      %v2831 = vunpack.c.l.b16 %v2723
      %v2832 = vunpack.c.l.b16 %v2724
      %v2833 = vunpack.c.l.b16 %v2725
      %v2834 = vunpack.c.l.b16 %v2726
      %v2835 = vunpack.c.l.b16 %v2727
      %v2836 = vunpack.c.l.b16 %v2728
      %v2837 = vunpack.c.l.b16 %v2729
      %v2838 = vunpack.c.l.b16 %v2730
      %v2839 = vunpack.c.l.b16 %v2731
      %v2840 = vunpack.c.l.b16 %v2732
      %v2841 = vunpack.c.l.b16 %v2733
      %v2842 = vunpack.c.l.b16 %v2734
      %v2843 = vunpack.c.l.b16 %v2735
      %v2844 = vunpack.c.l.b16 %v2736
      %v2845 = vunpack.c.l.b16 %v2737
      %v2846 = vunpack.c.l.b16 %v2738
      %v2847 = vunpack.c.l.b16 %v2739
      %v2848 = vunpack.c.l.b16 %v2740
      %v2849 = vunpack.c.l.b16 %v2741
      %v2850 = vunpack.c.l.b16 %v2742
      %v2851 = vunpack.c.l.b16 %v2743
      %v2852 = vunpack.c.l.b16 %v2744
      %v2853 = vunpack.c.l.b16 %v2745
      %v2854 = vunpack.c.l.b16 %v2746
      %v2855 = vunpack.c.l.b16 %v2747
      %v2856 = vunpack.c.l.b16 %v2748
      %v2857 = vunpack.c.l.b16 %v2749
      %v2858 = vunpack.c.l.b16 %v2750
      %v2859 = vunpack.c.l.b16 %v2751
      %v2860 = vunpack.c.l.b16 %v2752
      %v2861 = vunpack.c.l.b16 %v2753
      %v2862 = vunpack.c.l.b16 %v2754
      %v2863 = vunpack.c.l.b16 %v2755
      %v2864 = vunpack.c.l.b16 %v2756
      %v2865 = vunpack.c.l.b16 %v2757
      %v2866 = vunpack.c.l.b16 %v2758
      %v2867 = vunpack.c.l.b16 %v2759
      %v2868 = vunpack.c.l.b16 %v2760
      %v2869 = vunpack.c.l.b16 %v2761
      %v2870 = vunpack.c.l.b16 %v2762
      %v2871 = vunpack.c.l.b16 %v2763
      %v2872 = vunpack.c.l.b16 %v2764
      %v2873 = vunpack.c.l.b16 %v2765
      %v2874 = vpack.c.b16 %v2827, %v2826
      %v2875 = vpack.c.b16 %v2828, %v2828
      %v2876 = vpack.c.b16 %v2830, %v2829
      %v2877 = vpack.c.b16 %v2831, %v2831
      %v2878 = vpack.c.b16 %v2833, %v2832
      %v2879 = vpack.c.b16 %v2834, %v2834
      %v2880 = vpack.c.b16 %v2836, %v2835
      %v2881 = vpack.c.b16 %v2837, %v2837
      %v2882 = vpack.c.b16 %v2839, %v2838
      %v2883 = vpack.c.b16 %v2840, %v2840
      %v2884 = vpack.c.b16 %v2842, %v2841
      %v2885 = vpack.c.b16 %v2843, %v2843
      %v2886 = vpack.c.b16 %v2845, %v2844
      %v2887 = vpack.c.b16 %v2846, %v2846
      %v2888 = vpack.c.b16 %v2848, %v2847
      %v2889 = vpack.c.b16 %v2849, %v2849
      %v2890 = vpack.c.b16 %v2851, %v2850
      %v2891 = vpack.c.b16 %v2852, %v2852
      %v2892 = vpack.c.b16 %v2854, %v2853
      %v2893 = vpack.c.b16 %v2855, %v2855
      %v2894 = vpack.c.b16 %v2857, %v2856
      %v2895 = vpack.c.b16 %v2858, %v2858
      %v2896 = vpack.c.b16 %v2860, %v2859
      %v2897 = vpack.c.b16 %v2861, %v2861
      %v2898 = vpack.c.b16 %v2863, %v2862
      %v2899 = vpack.c.b16 %v2864, %v2864
      %v2900 = vpack.c.b16 %v2866, %v2865
      %v2901 = vpack.c.b16 %v2867, %v2867
      %v2902 = vpack.c.b16 %v2869, %v2868
      %v2903 = vpack.c.b16 %v2870, %v2870
      %v2904 = vpack.c.b16 %v2872, %v2871
      %v2905 = vpack.c.b16 %v2873, %v2873
      %v2907 = vshrl.u32 %v2874, 16
      %v2909 = vshll.u32 %v2874, 16
      %v2911 = vrot.slane %v2909, 1
      %v2912 = vor.u32 %v2907, %v2911
      %v2914 = vshll.u32 %v2875, 16
      %v2916 = vrot.slane %v2914, 1
      %v2917 = vsel %vm902, %v2912, %v2916
      %v2918 = vshrl.u32 %v2875, 16
      %v2921 = vshrl.u32 %v2876, 16
      %v2923 = vshll.u32 %v2876, 16
      %v2925 = vrot.slane %v2923, 1
      %v2926 = vor.u32 %v2921, %v2925
      %v2928 = vshll.u32 %v2877, 16
      %v2930 = vrot.slane %v2928, 1
      %v2931 = vsel %vm902, %v2926, %v2930
      %v2932 = vshrl.u32 %v2877, 16
      %v2935 = vshrl.u32 %v2878, 16
      %v2937 = vshll.u32 %v2878, 16
      %v2939 = vrot.slane %v2937, 1
      %v2940 = vor.u32 %v2935, %v2939
      %v2942 = vshll.u32 %v2879, 16
      %v2944 = vrot.slane %v2942, 1
      %v2945 = vsel %vm902, %v2940, %v2944
      %v2946 = vshrl.u32 %v2879, 16
      %v2949 = vshrl.u32 %v2880, 16
      %v2951 = vshll.u32 %v2880, 16
      %v2953 = vrot.slane %v2951, 1
      %v2954 = vor.u32 %v2949, %v2953
      %v2956 = vshll.u32 %v2881, 16
      %v2958 = vrot.slane %v2956, 1
      %v2959 = vsel %vm902, %v2954, %v2958
      %v2960 = vshrl.u32 %v2881, 16
      %v2963 = vshrl.u32 %v2882, 16
      %v2965 = vshll.u32 %v2882, 16
      %v2967 = vrot.slane %v2965, 1
      %v2968 = vor.u32 %v2963, %v2967
      %v2970 = vshll.u32 %v2883, 16
      %v2972 = vrot.slane %v2970, 1
      %v2973 = vsel %vm902, %v2968, %v2972
      %v2974 = vshrl.u32 %v2883, 16
      %v2977 = vshrl.u32 %v2884, 16
      %v2979 = vshll.u32 %v2884, 16
      %v2981 = vrot.slane %v2979, 1
      %v2982 = vor.u32 %v2977, %v2981
      %v2984 = vshll.u32 %v2885, 16
      %v2986 = vrot.slane %v2984, 1
      %v2987 = vsel %vm902, %v2982, %v2986
      %v2988 = vshrl.u32 %v2885, 16
      %v2991 = vshrl.u32 %v2886, 16
      %v2993 = vshll.u32 %v2886, 16
      %v2995 = vrot.slane %v2993, 1
      %v2996 = vor.u32 %v2991, %v2995
      %v2998 = vshll.u32 %v2887, 16
      %v3000 = vrot.slane %v2998, 1
      %v3001 = vsel %vm902, %v2996, %v3000
      %v3002 = vshrl.u32 %v2887, 16
      %v3005 = vshrl.u32 %v2888, 16
      %v3007 = vshll.u32 %v2888, 16
      %v3009 = vrot.slane %v3007, 1
      %v3010 = vor.u32 %v3005, %v3009
      %v3012 = vshll.u32 %v2889, 16
      %v3014 = vrot.slane %v3012, 1
      %v3015 = vsel %vm902, %v3010, %v3014
      %v3016 = vshrl.u32 %v2889, 16
      %v3019 = vshrl.u32 %v2890, 16
      %v3021 = vshll.u32 %v2890, 16
      %v3023 = vrot.slane %v3021, 1
      %v3024 = vor.u32 %v3019, %v3023
      %v3026 = vshll.u32 %v2891, 16
      %v3028 = vrot.slane %v3026, 1
      %v3029 = vsel %vm902, %v3024, %v3028
      %v3030 = vshrl.u32 %v2891, 16
      %v3033 = vshrl.u32 %v2892, 16
      %v3035 = vshll.u32 %v2892, 16
      %v3037 = vrot.slane %v3035, 1
      %v3038 = vor.u32 %v3033, %v3037
      %v3040 = vshll.u32 %v2893, 16
      %v3042 = vrot.slane %v3040, 1
      %v3043 = vsel %vm902, %v3038, %v3042
      %v3044 = vshrl.u32 %v2893, 16
      %v3047 = vshrl.u32 %v2894, 16
      %v3049 = vshll.u32 %v2894, 16
      %v3051 = vrot.slane %v3049, 1
      %v3052 = vor.u32 %v3047, %v3051
      %v3054 = vshll.u32 %v2895, 16
      %v3056 = vrot.slane %v3054, 1
      %v3057 = vsel %vm902, %v3052, %v3056
      %v3058 = vshrl.u32 %v2895, 16
      %v3061 = vshrl.u32 %v2896, 16
      %v3063 = vshll.u32 %v2896, 16
      %v3065 = vrot.slane %v3063, 1
      %v3066 = vor.u32 %v3061, %v3065
      %v3068 = vshll.u32 %v2897, 16
      %v3070 = vrot.slane %v3068, 1
      %v3071 = vsel %vm902, %v3066, %v3070
      %v3072 = vshrl.u32 %v2897, 16
      %v3075 = vshrl.u32 %v2898, 16
      %v3077 = vshll.u32 %v2898, 16
      %v3079 = vrot.slane %v3077, 1
      %v3080 = vor.u32 %v3075, %v3079
      %v3082 = vshll.u32 %v2899, 16
      %v3084 = vrot.slane %v3082, 1
      %v3085 = vsel %vm902, %v3080, %v3084
      %v3086 = vshrl.u32 %v2899, 16
      %v3089 = vshrl.u32 %v2900, 16
      %v3091 = vshll.u32 %v2900, 16
      %v3093 = vrot.slane %v3091, 1
      %v3094 = vor.u32 %v3089, %v3093
      %v3096 = vshll.u32 %v2901, 16
      %v3098 = vrot.slane %v3096, 1
      %v3099 = vsel %vm902, %v3094, %v3098
      %v3100 = vshrl.u32 %v2901, 16
      %v3103 = vshrl.u32 %v2902, 16
      %v3105 = vshll.u32 %v2902, 16
      %v3107 = vrot.slane %v3105, 1
      %v3108 = vor.u32 %v3103, %v3107
      %v3110 = vshll.u32 %v2903, 16
      %v3112 = vrot.slane %v3110, 1
      %v3113 = vsel %vm902, %v3108, %v3112
      %v3114 = vshrl.u32 %v2903, 16
      %v3117 = vshrl.u32 %v2904, 16
      %v3119 = vshll.u32 %v2904, 16
      %v3121 = vrot.slane %v3119, 1
      %v3122 = vor.u32 %v3117, %v3121
      %v3124 = vshll.u32 %v2905, 16
      %v3126 = vrot.slane %v3124, 1
      %v3127 = vsel %vm902, %v3122, %v3126
      %v3128 = vshrl.u32 %v2905, 16
      %3130 = vrot.lane.b32.xlu0 %v2917, 4
      %v3131 = vpop.permute.xlu0 %3130
      %3132 = vrot.lane.b32.xlu0 %v2918, 4
      %v3133 = vpop.permute.xlu0 %3132
      %3134 = vrot.lane.b32.xlu0 %v2931, 4
      %v3135 = vpop.permute.xlu0 %3134
      %3136 = vrot.lane.b32.xlu0 %v2932, 4
      %v3137 = vpop.permute.xlu0 %3136
      %3138 = vrot.lane.b32.xlu0 %v2945, 4
      %v3139 = vpop.permute.xlu0 %3138
      %3140 = vrot.lane.b32.xlu0 %v2946, 4
      %v3141 = vpop.permute.xlu0 %3140
      %3142 = vrot.lane.b32.xlu0 %v2959, 4
      %v3143 = vpop.permute.xlu0 %3142
      %3144 = vrot.lane.b32.xlu0 %v2960, 4
      %v3145 = vpop.permute.xlu0 %3144
      %3146 = vrot.lane.b32.xlu0 %v2973, 4
      %v3147 = vpop.permute.xlu0 %3146
      %3148 = vrot.lane.b32.xlu0 %v2974, 4
      %v3149 = vpop.permute.xlu0 %3148
      %3150 = vrot.lane.b32.xlu0 %v2987, 4
      %v3151 = vpop.permute.xlu0 %3150
      %3152 = vrot.lane.b32.xlu0 %v2988, 4
      %v3153 = vpop.permute.xlu0 %3152
      %3154 = vrot.lane.b32.xlu0 %v3001, 4
      %v3155 = vpop.permute.xlu0 %3154
      %3156 = vrot.lane.b32.xlu0 %v3002, 4
      %v3157 = vpop.permute.xlu0 %3156
      %3158 = vrot.lane.b32.xlu0 %v3015, 4
      %v3159 = vpop.permute.xlu0 %3158
      %3160 = vrot.lane.b32.xlu0 %v3016, 4
      %v3161 = vpop.permute.xlu0 %3160
      %3162 = vrot.lane.b32.xlu0 %v3029, 4
      %v3163 = vpop.permute.xlu0 %3162
      %3164 = vrot.lane.b32.xlu0 %v3030, 4
      %v3165 = vpop.permute.xlu0 %3164
      %3166 = vrot.lane.b32.xlu0 %v3043, 4
      %v3167 = vpop.permute.xlu0 %3166
      %3168 = vrot.lane.b32.xlu0 %v3044, 4
      %v3169 = vpop.permute.xlu0 %3168
      %3170 = vrot.lane.b32.xlu0 %v3057, 4
      %v3171 = vpop.permute.xlu0 %3170
      %3172 = vrot.lane.b32.xlu0 %v3058, 4
      %v3173 = vpop.permute.xlu0 %3172
      %3174 = vrot.lane.b32.xlu0 %v3071, 4
      %v3175 = vpop.permute.xlu0 %3174
      %3176 = vrot.lane.b32.xlu0 %v3072, 4
      %v3177 = vpop.permute.xlu0 %3176
      %3178 = vrot.lane.b32.xlu0 %v3085, 4
      %v3179 = vpop.permute.xlu0 %3178
      %3180 = vrot.lane.b32.xlu0 %v3086, 4
      %v3181 = vpop.permute.xlu0 %3180
      %3182 = vrot.lane.b32.xlu0 %v3099, 4
      %v3183 = vpop.permute.xlu0 %3182
      %3184 = vrot.lane.b32.xlu0 %v3100, 4
      %v3185 = vpop.permute.xlu0 %3184
      %3186 = vrot.lane.b32.xlu0 %v3113, 4
      %v3187 = vpop.permute.xlu0 %3186
      %3188 = vrot.lane.b32.xlu0 %v3114, 4
      %v3189 = vpop.permute.xlu0 %3188
      %3190 = vrot.lane.b32.xlu0 %v3127, 4
      %v3191 = vpop.permute.xlu0 %3190
      %3192 = vrot.lane.b32.xlu0 %v3128, 4
      %v3193 = vpop.permute.xlu0 %3192
      %v3194 = vrot.slane %v2874, 1
      %v3195 = vrot.slane %v2875, 1
      %v3196 = vsel %vm1191, %v3194, %v3195
      %v3197 = vrot.slane %v2876, 1
      %v3198 = vrot.slane %v2877, 1
      %v3199 = vsel %vm1191, %v3197, %v3198
      %v3200 = vrot.slane %v2878, 1
      %v3201 = vrot.slane %v2879, 1
      %v3202 = vsel %vm1191, %v3200, %v3201
      %v3203 = vrot.slane %v2880, 1
      %v3204 = vrot.slane %v2881, 1
      %v3205 = vsel %vm1191, %v3203, %v3204
      %v3206 = vrot.slane %v2882, 1
      %v3207 = vrot.slane %v2883, 1
      %v3208 = vsel %vm1191, %v3206, %v3207
      %v3209 = vrot.slane %v2884, 1
      %v3210 = vrot.slane %v2885, 1
      %v3211 = vsel %vm1191, %v3209, %v3210
      %v3212 = vrot.slane %v2886, 1
      %v3213 = vrot.slane %v2887, 1
      %v3214 = vsel %vm1191, %v3212, %v3213
      %v3215 = vrot.slane %v2888, 1
      %v3216 = vrot.slane %v2889, 1
      %v3217 = vsel %vm1191, %v3215, %v3216
      %v3218 = vrot.slane %v2890, 1
      %v3219 = vrot.slane %v2891, 1
      %v3220 = vsel %vm1191, %v3218, %v3219
      %v3221 = vrot.slane %v2892, 1
      %v3222 = vrot.slane %v2893, 1
      %v3223 = vsel %vm1191, %v3221, %v3222
      %v3224 = vrot.slane %v2894, 1
      %v3225 = vrot.slane %v2895, 1
      %v3226 = vsel %vm1191, %v3224, %v3225
      %v3227 = vrot.slane %v2896, 1
      %v3228 = vrot.slane %v2897, 1
      %v3229 = vsel %vm1191, %v3227, %v3228
      %v3230 = vrot.slane %v2898, 1
      %v3231 = vrot.slane %v2899, 1
      %v3232 = vsel %vm1191, %v3230, %v3231
      %v3233 = vrot.slane %v2900, 1
      %v3234 = vrot.slane %v2901, 1
      %v3235 = vsel %vm1191, %v3233, %v3234
      %v3236 = vrot.slane %v2902, 1
      %v3237 = vrot.slane %v2903, 1
      %v3238 = vsel %vm1191, %v3236, %v3237
      %v3239 = vrot.slane %v2904, 1
      %v3240 = vrot.slane %v2905, 1
      %v3241 = vsel %vm1191, %v3239, %v3240
      %3242 = vrot.lane.b32.xlu0 %v3196, 8
      %v3243 = vpop.permute.xlu0 %3242
      %3244 = vrot.lane.b32.xlu0 %v3195, 8
      %v3245 = vpop.permute.xlu0 %3244
      %3246 = vrot.lane.b32.xlu0 %v3199, 8
      %v3247 = vpop.permute.xlu0 %3246
      %3248 = vrot.lane.b32.xlu0 %v3198, 8
      %v3249 = vpop.permute.xlu0 %3248
      %3250 = vrot.lane.b32.xlu0 %v3202, 8
      %v3251 = vpop.permute.xlu0 %3250
      %3252 = vrot.lane.b32.xlu0 %v3201, 8
      %v3253 = vpop.permute.xlu0 %3252
      %3254 = vrot.lane.b32.xlu0 %v3205, 8
      %v3255 = vpop.permute.xlu0 %3254
      %3256 = vrot.lane.b32.xlu0 %v3204, 8
      %v3257 = vpop.permute.xlu0 %3256
      %3258 = vrot.lane.b32.xlu0 %v3208, 8
      %v3259 = vpop.permute.xlu0 %3258
      %3260 = vrot.lane.b32.xlu0 %v3207, 8
      %v3261 = vpop.permute.xlu0 %3260
      %3262 = vrot.lane.b32.xlu0 %v3211, 8
      %v3263 = vpop.permute.xlu0 %3262
      %3264 = vrot.lane.b32.xlu0 %v3210, 8
      %v3265 = vpop.permute.xlu0 %3264
      %3266 = vrot.lane.b32.xlu0 %v3214, 8
      %v3267 = vpop.permute.xlu0 %3266
      %3268 = vrot.lane.b32.xlu0 %v3213, 8
      %v3269 = vpop.permute.xlu0 %3268
      %3270 = vrot.lane.b32.xlu0 %v3217, 8
      %v3271 = vpop.permute.xlu0 %3270
      %3272 = vrot.lane.b32.xlu0 %v3216, 8
      %v3273 = vpop.permute.xlu0 %3272
      %3274 = vrot.lane.b32.xlu0 %v3220, 8
      %v3275 = vpop.permute.xlu0 %3274
      %3276 = vrot.lane.b32.xlu0 %v3219, 8
      %v3277 = vpop.permute.xlu0 %3276
      %3278 = vrot.lane.b32.xlu0 %v3223, 8
      %v3279 = vpop.permute.xlu0 %3278
      %3280 = vrot.lane.b32.xlu0 %v3222, 8
      %v3281 = vpop.permute.xlu0 %3280
      %3282 = vrot.lane.b32.xlu0 %v3226, 8
      %v3283 = vpop.permute.xlu0 %3282
      %3284 = vrot.lane.b32.xlu0 %v3225, 8
      %v3285 = vpop.permute.xlu0 %3284
      %3286 = vrot.lane.b32.xlu0 %v3229, 8
      %v3287 = vpop.permute.xlu0 %3286
      %3288 = vrot.lane.b32.xlu0 %v3228, 8
      %v3289 = vpop.permute.xlu0 %3288
      %3290 = vrot.lane.b32.xlu0 %v3232, 8
      %v3291 = vpop.permute.xlu0 %3290
      %3292 = vrot.lane.b32.xlu0 %v3231, 8
      %v3293 = vpop.permute.xlu0 %3292
      %3294 = vrot.lane.b32.xlu0 %v3235, 8
      %v3295 = vpop.permute.xlu0 %3294
      %3296 = vrot.lane.b32.xlu0 %v3234, 8
      %v3297 = vpop.permute.xlu0 %3296
      %3298 = vrot.lane.b32.xlu0 %v3238, 8
      %v3299 = vpop.permute.xlu0 %3298
      %3300 = vrot.lane.b32.xlu0 %v3237, 8
      %v3301 = vpop.permute.xlu0 %3300
      %3302 = vrot.lane.b32.xlu0 %v3241, 8
      %v3303 = vpop.permute.xlu0 %3302
      %3304 = vrot.lane.b32.xlu0 %v3240, 8
      %v3305 = vpop.permute.xlu0 %3304
      %vm3306 = vcmask 31744
      %v3308 = vsel %vm3306, %v2874, %v3131
      %v3310 = vsel %vm3306, %v2875, %v3133
      %v3312 = vsel %vm3306, %v2876, %v3135
      %v3314 = vsel %vm3306, %v2877, %v3137
      %v3316 = vsel %vm3306, %v2878, %v3139
      %v3318 = vsel %vm3306, %v2879, %v3141
      %v3320 = vsel %vm3306, %v2880, %v3143
      %v3322 = vsel %vm3306, %v2881, %v3145
      %v3324 = vsel %vm3306, %v2882, %v3147
      %v3326 = vsel %vm3306, %v2883, %v3149
      %v3328 = vsel %vm3306, %v2884, %v3151
      %v3330 = vsel %vm3306, %v2885, %v3153
      %v3332 = vsel %vm3306, %v2886, %v3155
      %v3334 = vsel %vm3306, %v2887, %v3157
      %v3336 = vsel %vm3306, %v2888, %v3159
      %v3338 = vsel %vm3306, %v2889, %v3161
      %v3340 = vsel %vm3306, %v2890, %v3163
      %v3342 = vsel %vm3306, %v2891, %v3165
      %v3344 = vsel %vm3306, %v2892, %v3167
      %v3346 = vsel %vm3306, %v2893, %v3169
      %v3348 = vsel %vm3306, %v2894, %v3171
      %v3350 = vsel %vm3306, %v2895, %v3173
      %v3352 = vsel %vm3306, %v2896, %v3175
      %v3354 = vsel %vm3306, %v2897, %v3177
      %v3356 = vsel %vm3306, %v2898, %v3179
      %v3358 = vsel %vm3306, %v2899, %v3181
      %v3360 = vsel %vm3306, %v2900, %v3183
      %v3362 = vsel %vm3306, %v2901, %v3185
      %v3364 = vsel %vm3306, %v2902, %v3187
      %v3366 = vsel %vm3306, %v2903, %v3189
      %v3368 = vsel %vm3306, %v2904, %v3191
      %v3370 = vsel %vm3306, %v2905, %v3193
      %v3372 = vsel %vm1304, %v3308, %v3243
      %v3374 = vsel %vm1304, %v3310, %v3245
      %v3376 = vsel %vm1304, %v3312, %v3247
      %v3378 = vsel %vm1304, %v3314, %v3249
      %v3380 = vsel %vm1304, %v3316, %v3251
      %v3382 = vsel %vm1304, %v3318, %v3253
      %v3384 = vsel %vm1304, %v3320, %v3255
      %v3386 = vsel %vm1304, %v3322, %v3257
      %v3388 = vsel %vm1304, %v3324, %v3259
      %v3390 = vsel %vm1304, %v3326, %v3261
      %v3392 = vsel %vm1304, %v3328, %v3263
      %v3394 = vsel %vm1304, %v3330, %v3265
      %v3396 = vsel %vm1304, %v3332, %v3267
      %v3398 = vsel %vm1304, %v3334, %v3269
      %v3400 = vsel %vm1304, %v3336, %v3271
      %v3402 = vsel %vm1304, %v3338, %v3273
      %v3404 = vsel %vm1304, %v3340, %v3275
      %v3406 = vsel %vm1304, %v3342, %v3277
      %v3408 = vsel %vm1304, %v3344, %v3279
      %v3410 = vsel %vm1304, %v3346, %v3281
      %v3412 = vsel %vm1304, %v3348, %v3283
      %v3414 = vsel %vm1304, %v3350, %v3285
      %v3416 = vsel %vm1304, %v3352, %v3287
      %v3418 = vsel %vm1304, %v3354, %v3289
      %v3420 = vsel %vm1304, %v3356, %v3291
      %v3422 = vsel %vm1304, %v3358, %v3293
      %v3424 = vsel %vm1304, %v3360, %v3295
      %v3426 = vsel %vm1304, %v3362, %v3297
      %v3428 = vsel %vm1304, %v3364, %v3299
      %v3430 = vsel %vm1304, %v3366, %v3301
      %v3432 = vsel %vm1304, %v3368, %v3303
      %v3434 = vsel %vm1304, %v3370, %v3305
      %v3435 = vshrl.u32 %v3372, 16
      %v3437 = vshll.u32 %v3372, 16
      %v3439 = vrot.slane %v3437, 1
      %v3440 = vor.u32 %v3435, %v3439
      %v3441 = vshll.u32 %v3374, 16
      %v3443 = vrot.slane %v3441, 1
      %v3444 = vsel %vm902, %v3440, %v3443
      %v3445 = vshrl.u32 %v3376, 16
      %v3447 = vshll.u32 %v3376, 16
      %v3449 = vrot.slane %v3447, 1
      %v3450 = vor.u32 %v3445, %v3449
      %v3451 = vshll.u32 %v3378, 16
      %v3453 = vrot.slane %v3451, 1
      %v3454 = vsel %vm902, %v3450, %v3453
      %v3455 = vshrl.u32 %v3380, 16
      %v3457 = vshll.u32 %v3380, 16
      %v3459 = vrot.slane %v3457, 1
      %v3460 = vor.u32 %v3455, %v3459
      %v3461 = vshll.u32 %v3382, 16
      %v3463 = vrot.slane %v3461, 1
      %v3464 = vsel %vm902, %v3460, %v3463
      %v3465 = vshrl.u32 %v3384, 16
      %v3467 = vshll.u32 %v3384, 16
      %v3469 = vrot.slane %v3467, 1
      %v3470 = vor.u32 %v3465, %v3469
      %v3471 = vshll.u32 %v3386, 16
      %v3473 = vrot.slane %v3471, 1
      %v3474 = vsel %vm902, %v3470, %v3473
      %v3475 = vshrl.u32 %v3388, 16
      %v3477 = vshll.u32 %v3388, 16
      %v3479 = vrot.slane %v3477, 1
      %v3480 = vor.u32 %v3475, %v3479
      %v3481 = vshll.u32 %v3390, 16
      %v3483 = vrot.slane %v3481, 1
      %v3484 = vsel %vm902, %v3480, %v3483
      %v3485 = vshrl.u32 %v3392, 16
      %v3487 = vshll.u32 %v3392, 16
      %v3489 = vrot.slane %v3487, 1
      %v3490 = vor.u32 %v3485, %v3489
      %v3491 = vshll.u32 %v3394, 16
      %v3493 = vrot.slane %v3491, 1
      %v3494 = vsel %vm902, %v3490, %v3493
      %v3495 = vshrl.u32 %v3396, 16
      %v3497 = vshll.u32 %v3396, 16
      %v3499 = vrot.slane %v3497, 1
      %v3500 = vor.u32 %v3495, %v3499
      %v3501 = vshll.u32 %v3398, 16
      %v3503 = vrot.slane %v3501, 1
      %v3504 = vsel %vm902, %v3500, %v3503
      %v3505 = vshrl.u32 %v3400, 16
      %v3507 = vshll.u32 %v3400, 16
      %v3509 = vrot.slane %v3507, 1
      %v3510 = vor.u32 %v3505, %v3509
      %v3511 = vshll.u32 %v3402, 16
      %v3513 = vrot.slane %v3511, 1
      %v3514 = vsel %vm902, %v3510, %v3513
      %v3515 = vshrl.u32 %v3404, 16
      %v3517 = vshll.u32 %v3404, 16
      %v3519 = vrot.slane %v3517, 1
      %v3520 = vor.u32 %v3515, %v3519
      %v3521 = vshll.u32 %v3406, 16
      %v3523 = vrot.slane %v3521, 1
      %v3524 = vsel %vm902, %v3520, %v3523
      %v3525 = vshrl.u32 %v3408, 16
      %v3527 = vshll.u32 %v3408, 16
      %v3529 = vrot.slane %v3527, 1
      %v3530 = vor.u32 %v3525, %v3529
      %v3531 = vshll.u32 %v3410, 16
      %v3533 = vrot.slane %v3531, 1
      %v3534 = vsel %vm902, %v3530, %v3533
      %v3535 = vshrl.u32 %v3412, 16
      %v3537 = vshll.u32 %v3412, 16
      %v3539 = vrot.slane %v3537, 1
      %v3540 = vor.u32 %v3535, %v3539
      %v3541 = vshll.u32 %v3414, 16
      %v3543 = vrot.slane %v3541, 1
      %v3544 = vsel %vm902, %v3540, %v3543
      %v3545 = vshrl.u32 %v3416, 16
      %v3547 = vshll.u32 %v3416, 16
      %v3549 = vrot.slane %v3547, 1
      %v3550 = vor.u32 %v3545, %v3549
      %v3551 = vshll.u32 %v3418, 16
      %v3553 = vrot.slane %v3551, 1
      %v3554 = vsel %vm902, %v3550, %v3553
      %v3555 = vshrl.u32 %v3420, 16
      %v3557 = vshll.u32 %v3420, 16
      %v3559 = vrot.slane %v3557, 1
      %v3560 = vor.u32 %v3555, %v3559
      %v3561 = vshll.u32 %v3422, 16
      %v3563 = vrot.slane %v3561, 1
      %v3564 = vsel %vm902, %v3560, %v3563
      %v3565 = vshrl.u32 %v3424, 16
      %v3567 = vshll.u32 %v3424, 16
      %v3569 = vrot.slane %v3567, 1
      %v3570 = vor.u32 %v3565, %v3569
      %v3571 = vshll.u32 %v3426, 16
      %v3573 = vrot.slane %v3571, 1
      %v3574 = vsel %vm902, %v3570, %v3573
      %v3575 = vshrl.u32 %v3428, 16
      %v3577 = vshll.u32 %v3428, 16
      %v3579 = vrot.slane %v3577, 1
      %v3580 = vor.u32 %v3575, %v3579
      %v3581 = vshll.u32 %v3430, 16
      %v3583 = vrot.slane %v3581, 1
      %v3584 = vsel %vm902, %v3580, %v3583
      %v3585 = vshrl.u32 %v3432, 16
      %v3587 = vshll.u32 %v3432, 16
      %v3589 = vrot.slane %v3587, 1
      %v3590 = vor.u32 %v3585, %v3589
      %v3591 = vshll.u32 %v3434, 16
      %v3593 = vrot.slane %v3591, 1
      %v3594 = vsel %vm902, %v3590, %v3593
      %v3595 = vld [vmem:[%s3] sm:$0xf]
      %v3596 = vld [vmem:[%s3 + $0x4] sm:$0x3]
      %v3599 = vunpack.c.l.b16 %v3595
      %v3600 = vunpack.c.l.b16 %v3596
      %v3601 = vpack.c.b16 %v3600, %v3599
      %vm3602 = vcmask 97280
      %v3604 = vsel %vm3602, %v3444, 0
      %v3607 = vsel %vm3602, %v3454, 0
      %v3610 = vsel %vm3602, %v3464, 0
      %v3613 = vsel %vm3602, %v3474, 0
      %v3616 = vsel %vm3602, %v3484, 0
      %v3619 = vsel %vm3602, %v3494, 0
      %v3622 = vsel %vm3602, %v3504, 0
      %v3625 = vsel %vm3602, %v3514, 0
      %v3628 = vsel %vm3602, %v3524, 0
      %v3631 = vsel %vm3602, %v3534, 0
      %v3634 = vsel %vm3602, %v3544, 0
      %v3637 = vsel %vm3602, %v3554, 0
      %v3640 = vsel %vm3602, %v3564, 0
      %v3643 = vsel %vm3602, %v3574, 0
      %v3646 = vsel %vm3602, %v3584, 0
      %v3649 = vsel %vm3602, %v3594, 0
      %vm3651 = vcmask 1045504
      %v3653 = vsel %vm3651, %v3601, 0
      %3655 = vmatprep.subr.bf16.mxu0 0
      %3656 = vmatpush1.bf16.msra.mxu0 0
      %3657 = vmatprep.subr.bf16.mxu0 0
      %3658 = vmatpush1.bf16.msra.mxu0 0
      %3659 = vmatprep.subr.bf16.mxu0 0
      %3660 = vmatpush1.bf16.msra.mxu0 0
      %3661 = vmatprep.subr.bf16.mxu0 0
      %3662 = vmatpush1.bf16.msra.mxu0 0
      %3663 = vmatprep.subr.bf16.mxu0 0
      %3664 = vmatpush1.bf16.msra.mxu0 0
      %3665 = vmatprep.subr.bf16.mxu0 0
      %3666 = vmatpush1.bf16.msra.mxu0 0
      %3667 = vmatprep.subr.bf16.mxu0 0
      %3668 = vmatpush1.bf16.msra.mxu0 0
      %3669 = vmatprep.subr.bf16.mxu0 0
      %3670 = vmatpush1.bf16.msra.mxu0 %v3653
      %3671 = vmatprep.subr.bf16.mxu0 0
      %3672 = vmatpush2.bf16.msra.mxu0 0
      %3673 = vmatprep.subr.bf16.mxu0 0
      %3674 = vmatpush2.bf16.msra.mxu0 0
      %3675 = vmatprep.subr.bf16.mxu0 0
      %3676 = vmatpush2.bf16.msra.mxu0 0
      %3677 = vmatprep.subr.bf16.mxu0 0
      %3678 = vmatpush2.bf16.msra.mxu0 0
      %3679 = vmatprep.subr.bf16.mxu0 0
      %3680 = vmatpush2.bf16.msra.mxu0 0
      %3681 = vmatprep.subr.bf16.mxu0 0
      %3682 = vmatpush2.bf16.msra.mxu0 0
      %3683 = vmatprep.subr.bf16.mxu0 0
      %3684 = vmatpush2.bf16.msra.mxu0 0
      %3685 = vmatprep.subr.bf16.mxu0 0
      %3686 = vmatpush2.bf16.msra.mxu0 0
      %3687 = vmatprep.mubr.bf16.mxu0 0
      %3688 = vmatmul.mubr.bf16.gmra.mxu0 %v3604
      %v3689 = vpop.f32.mrf.mxu0
      %v3690 = vadd.f32 0.0, %v3689
      %v3691 = vpop.f32.mrf.mxu0
      %v3692 = vpop.f32.mrf.mxu0
      %v3693 = vadd.f32 0.0, %v3692
      %v3694 = vpop.f32.mrf.mxu0
      %3695 = vmatprep.mubr.bf16.mxu0 0
      %3696 = vmatmul.mubr.bf16.gmra.mxu0 %v3607
      %v3697 = vpop.f32.mrf.mxu0
      %v3698 = vadd.f32 0.0, %v3697
      %v3699 = vpop.f32.mrf.mxu0
      %v3700 = vpop.f32.mrf.mxu0
      %v3701 = vadd.f32 0.0, %v3700
      %v3702 = vpop.f32.mrf.mxu0
      %3703 = vmatprep.mubr.bf16.mxu0 0
      %3704 = vmatmul.mubr.bf16.gmra.mxu0 %v3610
      %v3705 = vpop.f32.mrf.mxu0
      %v3706 = vadd.f32 0.0, %v3705
      %v3707 = vpop.f32.mrf.mxu0
      %v3708 = vpop.f32.mrf.mxu0
      %v3709 = vadd.f32 0.0, %v3708
      %v3710 = vpop.f32.mrf.mxu0
      %3711 = vmatprep.mubr.bf16.mxu0 0
      %3712 = vmatmul.mubr.bf16.gmra.mxu0 %v3613
      %v3713 = vpop.f32.mrf.mxu0
      %v3714 = vadd.f32 0.0, %v3713
      %v3715 = vpop.f32.mrf.mxu0
      %v3716 = vpop.f32.mrf.mxu0
      %v3717 = vadd.f32 0.0, %v3716
      %v3718 = vpop.f32.mrf.mxu0
      %3719 = vmatprep.mubr.bf16.mxu0 0
      %3720 = vmatmul.mubr.bf16.gmra.mxu0 %v3616
      %v3721 = vpop.f32.mrf.mxu0
      %v3722 = vadd.f32 0.0, %v3721
      %v3723 = vpop.f32.mrf.mxu0
      %v3724 = vpop.f32.mrf.mxu0
      %v3725 = vadd.f32 0.0, %v3724
      %v3726 = vpop.f32.mrf.mxu0
      %3727 = vmatprep.mubr.bf16.mxu0 0
      %3728 = vmatmul.mubr.bf16.gmra.mxu0 %v3619
      %v3729 = vpop.f32.mrf.mxu0
      %v3730 = vadd.f32 0.0, %v3729
      %v3731 = vpop.f32.mrf.mxu0
      %v3732 = vpop.f32.mrf.mxu0
      %v3733 = vadd.f32 0.0, %v3732
      %v3734 = vpop.f32.mrf.mxu0
      %3735 = vmatprep.mubr.bf16.mxu0 0
      %3736 = vmatmul.mubr.bf16.gmra.mxu0 %v3622
      %v3737 = vpop.f32.mrf.mxu0
      %v3738 = vadd.f32 0.0, %v3737
      %v3739 = vpop.f32.mrf.mxu0
      %v3740 = vpop.f32.mrf.mxu0
      %v3741 = vadd.f32 0.0, %v3740
      %v3742 = vpop.f32.mrf.mxu0
      %3743 = vmatprep.mubr.bf16.mxu0 0
      %3744 = vmatmul.mubr.bf16.gmra.mxu0 %v3625
      %v3745 = vpop.f32.mrf.mxu0
      %v3746 = vadd.f32 0.0, %v3745
      %v3747 = vpop.f32.mrf.mxu0
      %v3748 = vpop.f32.mrf.mxu0
      %v3749 = vadd.f32 0.0, %v3748
      %v3750 = vpop.f32.mrf.mxu0
      %3751 = vmatprep.mubr.bf16.mxu0 0
      %3752 = vmatmul.mubr.bf16.gmra.mxu0 %v3628
      %v3753 = vpop.f32.mrf.mxu0
      %v3754 = vadd.f32 0.0, %v3753
      %v3755 = vpop.f32.mrf.mxu0
      %v3756 = vpop.f32.mrf.mxu0
      %v3757 = vadd.f32 0.0, %v3756
      %v3758 = vpop.f32.mrf.mxu0
      %3759 = vmatprep.mubr.bf16.mxu0 0
      %3760 = vmatmul.mubr.bf16.gmra.mxu0 %v3631
      %v3761 = vpop.f32.mrf.mxu0
      %v3762 = vadd.f32 0.0, %v3761
      %v3763 = vpop.f32.mrf.mxu0
      %v3764 = vpop.f32.mrf.mxu0
      %v3765 = vadd.f32 0.0, %v3764
      %v3766 = vpop.f32.mrf.mxu0
      %3767 = vmatprep.mubr.bf16.mxu0 0
      %3768 = vmatmul.mubr.bf16.gmra.mxu0 %v3634
      %v3769 = vpop.f32.mrf.mxu0
      %v3770 = vadd.f32 0.0, %v3769
      %v3771 = vpop.f32.mrf.mxu0
      %v3772 = vpop.f32.mrf.mxu0
      %v3773 = vadd.f32 0.0, %v3772
      %v3774 = vpop.f32.mrf.mxu0
      %3775 = vmatprep.mubr.bf16.mxu0 0
      %3776 = vmatmul.mubr.bf16.gmra.mxu0 %v3637
      %v3777 = vpop.f32.mrf.mxu0
      %v3778 = vadd.f32 0.0, %v3777
      %v3779 = vpop.f32.mrf.mxu0
      %v3780 = vpop.f32.mrf.mxu0
      %v3781 = vadd.f32 0.0, %v3780
      %v3782 = vpop.f32.mrf.mxu0
      %3783 = vmatprep.mubr.bf16.mxu0 0
      %3784 = vmatmul.mubr.bf16.gmra.mxu0 %v3640
      %v3785 = vpop.f32.mrf.mxu0
      %v3786 = vadd.f32 0.0, %v3785
      %v3787 = vpop.f32.mrf.mxu0
      %v3788 = vpop.f32.mrf.mxu0
      %v3789 = vadd.f32 0.0, %v3788
      %v3790 = vpop.f32.mrf.mxu0
      %3791 = vmatprep.mubr.bf16.mxu0 0
      %3792 = vmatmul.mubr.bf16.gmra.mxu0 %v3643
      %v3793 = vpop.f32.mrf.mxu0
      %v3794 = vadd.f32 0.0, %v3793
      %v3795 = vpop.f32.mrf.mxu0
      %v3796 = vpop.f32.mrf.mxu0
      %v3797 = vadd.f32 0.0, %v3796
      %v3798 = vpop.f32.mrf.mxu0
      %3799 = vmatprep.mubr.bf16.mxu0 0
      %3800 = vmatmul.mubr.bf16.gmra.mxu0 %v3646
      %v3801 = vpop.f32.mrf.mxu0
      %v3802 = vadd.f32 0.0, %v3801
      %v3803 = vpop.f32.mrf.mxu0
      %v3804 = vpop.f32.mrf.mxu0
      %v3805 = vadd.f32 0.0, %v3804
      %v3806 = vpop.f32.mrf.mxu0
      %3807 = vmatprep.mubr.bf16.mxu0 0
      %3808 = vmatmul.mubr.bf16.gmra.mxu0 %v3649
      %v3809 = vpop.f32.mrf.mxu0
      %v3810 = vadd.f32 0.0, %v3809
      %v3811 = vpop.f32.mrf.mxu0
      %v3812 = vpop.f32.mrf.mxu0
      %v3813 = vadd.f32 0.0, %v3812
      %v3814 = vpop.f32.mrf.mxu0
      %3815 = vdwg.mxu0
      %v3816 = vadd.f32 %v2776, %v3690
      %v3817 = vadd.f32 %v2776, %v3693
      %v3818 = vadd.f32 %v2776, %v3698
      %v3819 = vadd.f32 %v2776, %v3701
      %v3820 = vadd.f32 %v2776, %v3706
      %v3821 = vadd.f32 %v2776, %v3709
      %v3822 = vadd.f32 %v2776, %v3714
      %v3823 = vadd.f32 %v2776, %v3717
      %v3824 = vadd.f32 %v2776, %v3722
      %v3825 = vadd.f32 %v2776, %v3725
      %v3826 = vadd.f32 %v2776, %v3730
      %v3827 = vadd.f32 %v2776, %v3733
      %v3828 = vadd.f32 %v2776, %v3738
      %v3829 = vadd.f32 %v2776, %v3741
      %v3830 = vadd.f32 %v2776, %v3746
      %v3831 = vadd.f32 %v2776, %v3749
      %v3832 = vadd.f32 %v2776, %v3754
      %v3833 = vadd.f32 %v2776, %v3757
      %v3834 = vadd.f32 %v2776, %v3762
      %v3835 = vadd.f32 %v2776, %v3765
      %v3836 = vadd.f32 %v2776, %v3770
      %v3837 = vadd.f32 %v2776, %v3773
      %v3838 = vadd.f32 %v2776, %v3778
      %v3839 = vadd.f32 %v2776, %v3781
      %v3840 = vadd.f32 %v2776, %v3786
      %v3841 = vadd.f32 %v2776, %v3789
      %v3842 = vadd.f32 %v2776, %v3794
      %v3843 = vadd.f32 %v2776, %v3797
      %v3844 = vadd.f32 %v2776, %v3802
      %v3845 = vadd.f32 %v2776, %v3805
      %v3846 = vadd.f32 %v2776, %v3810
      %v3847 = vadd.f32 %v2776, %v3813
      %v3851 = vunpack.c.l.b16 %v2766
      %v3852 = vunpack.c.l.b16 %v2767
      %v3853 = vunpack.c.l.b16 %v2768
      %v3854 = vpack.c.b16 %v3852, %v3851
      %v3855 = vpack.c.b16 %v3853, %v3853
      %v3857 = vshrl.u32 %v3854, 16
      %v3859 = vshll.u32 %v3854, 16
      %v3861 = vrot.slane %v3859, 1
      %v3862 = vor.u32 %v3857, %v3861
      %v3864 = vshll.u32 %v3855, 16
      %v3866 = vrot.slane %v3864, 1
      %v3867 = vsel %vm902, %v3862, %v3866
      %v3868 = vshrl.u32 %v3855, 16
      %3870 = vrot.lane.b32.xlu0 %v3867, 4
      %v3871 = vpop.permute.xlu0 %3870
      %3872 = vrot.lane.b32.xlu0 %v3868, 4
      %v3873 = vpop.permute.xlu0 %3872
      %v3874 = vrot.slane %v3854, 1
      %v3875 = vrot.slane %v3855, 1
      %v3876 = vsel %vm1191, %v3874, %v3875
      %3877 = vrot.lane.b32.xlu0 %v3876, 8
      %v3878 = vpop.permute.xlu0 %3877
      %3879 = vrot.lane.b32.xlu0 %v3875, 8
      %v3880 = vpop.permute.xlu0 %3879
      %v3882 = vsel %vm3306, %v3854, %v3871
      %v3884 = vsel %vm3306, %v3855, %v3873
      %v3886 = vsel %vm1304, %v3882, %v3878
      %v3888 = vsel %vm1304, %v3884, %v3880
      %v3889 = vshrl.u32 %v3886, 16
      %v3891 = vshll.u32 %v3886, 16
      %v3893 = vrot.slane %v3891, 1
      %v3894 = vor.u32 %v3889, %v3893
      %v3895 = vshll.u32 %v3888, 16
      %v3897 = vrot.slane %v3895, 1
      %v3898 = vsel %vm902, %v3894, %v3897
      %s3899 = scalar_lea.vmem %s3, 8
      %v3900 = vld [vmem:[%s3899] sm:$0xf]
      %v3901 = vld [vmem:[%s3899 + $0x4] sm:$0x3]
      %v3904 = vunpack.c.l.b16 %v3900
      %v3905 = vunpack.c.l.b16 %v3901
      %v3906 = vpack.c.b16 %v3905, %v3904
      %v3908 = vsel %vm3602, %v3898, 0
      %v3911 = vsel %vm3651, %v3906, 0
      %3913 = vmatprep.subr.bf16.mxu0 0
      %3914 = vmatpush1.bf16.msra.mxu0 0
      %3915 = vmatprep.subr.bf16.mxu0 0
      %3916 = vmatpush1.bf16.msra.mxu0 0
      %3917 = vmatprep.subr.bf16.mxu0 0
      %3918 = vmatpush1.bf16.msra.mxu0 0
      %3919 = vmatprep.subr.bf16.mxu0 0
      %3920 = vmatpush1.bf16.msra.mxu0 0
      %3921 = vmatprep.subr.bf16.mxu0 0
      %3922 = vmatpush1.bf16.msra.mxu0 0
      %3923 = vmatprep.subr.bf16.mxu0 0
      %3924 = vmatpush1.bf16.msra.mxu0 0
      %3925 = vmatprep.subr.bf16.mxu0 0
      %3926 = vmatpush1.bf16.msra.mxu0 0
      %3927 = vmatprep.subr.bf16.mxu0 0
      %3928 = vmatpush1.bf16.msra.mxu0 %v3911
      %3929 = vmatprep.subr.bf16.mxu0 0
      %3930 = vmatpush2.bf16.msra.mxu0 0
      %3931 = vmatprep.subr.bf16.mxu0 0
      %3932 = vmatpush2.bf16.msra.mxu0 0
      %3933 = vmatprep.subr.bf16.mxu0 0
      %3934 = vmatpush2.bf16.msra.mxu0 0
      %3935 = vmatprep.subr.bf16.mxu0 0
      %3936 = vmatpush2.bf16.msra.mxu0 0
      %3937 = vmatprep.subr.bf16.mxu0 0
      %3938 = vmatpush2.bf16.msra.mxu0 0
      %3939 = vmatprep.subr.bf16.mxu0 0
      %3940 = vmatpush2.bf16.msra.mxu0 0
      %3941 = vmatprep.subr.bf16.mxu0 0
      %3942 = vmatpush2.bf16.msra.mxu0 0
      %3943 = vmatprep.subr.bf16.mxu0 0
      %3944 = vmatpush2.bf16.msra.mxu0 0
      %3945 = vmatprep.mubr.bf16.mxu0 0
      %3946 = vmatmul.mubr.bf16.gmra.mxu0 %v3607
      %v3947 = vpop.f32.mrf.mxu0
      %v3948 = vadd.f32 0.0, %v3947
      %v3949 = vpop.f32.mrf.mxu0
      %v3950 = vpop.f32.mrf.mxu0
      %v3951 = vadd.f32 0.0, %v3950
      %v3952 = vpop.f32.mrf.mxu0
      %3953 = vmatprep.mubr.bf16.mxu0 0
      %3954 = vmatmul.mubr.bf16.gmra.mxu0 %v3610
      %v3955 = vpop.f32.mrf.mxu0
      %v3956 = vadd.f32 0.0, %v3955
      %v3957 = vpop.f32.mrf.mxu0
      %v3958 = vpop.f32.mrf.mxu0
      %v3959 = vadd.f32 0.0, %v3958
      %v3960 = vpop.f32.mrf.mxu0
      %3961 = vmatprep.mubr.bf16.mxu0 0
      %3962 = vmatmul.mubr.bf16.gmra.mxu0 %v3613
      %v3963 = vpop.f32.mrf.mxu0
      %v3964 = vadd.f32 0.0, %v3963
      %v3965 = vpop.f32.mrf.mxu0
      %v3966 = vpop.f32.mrf.mxu0
      %v3967 = vadd.f32 0.0, %v3966
      %v3968 = vpop.f32.mrf.mxu0
      %3969 = vmatprep.mubr.bf16.mxu0 0
      %3970 = vmatmul.mubr.bf16.gmra.mxu0 %v3616
      %v3971 = vpop.f32.mrf.mxu0
      %v3972 = vadd.f32 0.0, %v3971
      %v3973 = vpop.f32.mrf.mxu0
      %v3974 = vpop.f32.mrf.mxu0
      %v3975 = vadd.f32 0.0, %v3974
      %v3976 = vpop.f32.mrf.mxu0
      %3977 = vmatprep.mubr.bf16.mxu0 0
      %3978 = vmatmul.mubr.bf16.gmra.mxu0 %v3619
      %v3979 = vpop.f32.mrf.mxu0
      %v3980 = vadd.f32 0.0, %v3979
      %v3981 = vpop.f32.mrf.mxu0
      %v3982 = vpop.f32.mrf.mxu0
      %v3983 = vadd.f32 0.0, %v3982
      %v3984 = vpop.f32.mrf.mxu0
      %3985 = vmatprep.mubr.bf16.mxu0 0
      %3986 = vmatmul.mubr.bf16.gmra.mxu0 %v3622
      %v3987 = vpop.f32.mrf.mxu0
      %v3988 = vadd.f32 0.0, %v3987
      %v3989 = vpop.f32.mrf.mxu0
      %v3990 = vpop.f32.mrf.mxu0
      %v3991 = vadd.f32 0.0, %v3990
      %v3992 = vpop.f32.mrf.mxu0
      %3993 = vmatprep.mubr.bf16.mxu0 0
      %3994 = vmatmul.mubr.bf16.gmra.mxu0 %v3625
      %v3995 = vpop.f32.mrf.mxu0
      %v3996 = vadd.f32 0.0, %v3995
      %v3997 = vpop.f32.mrf.mxu0
      %v3998 = vpop.f32.mrf.mxu0
      %v3999 = vadd.f32 0.0, %v3998
      %v4000 = vpop.f32.mrf.mxu0
      %4001 = vmatprep.mubr.bf16.mxu0 0
      %4002 = vmatmul.mubr.bf16.gmra.mxu0 %v3628
      %v4003 = vpop.f32.mrf.mxu0
      %v4004 = vadd.f32 0.0, %v4003
      %v4005 = vpop.f32.mrf.mxu0
      %v4006 = vpop.f32.mrf.mxu0
      %v4007 = vadd.f32 0.0, %v4006
      %v4008 = vpop.f32.mrf.mxu0
      %4009 = vmatprep.mubr.bf16.mxu0 0
      %4010 = vmatmul.mubr.bf16.gmra.mxu0 %v3631
      %v4011 = vpop.f32.mrf.mxu0
      %v4012 = vadd.f32 0.0, %v4011
      %v4013 = vpop.f32.mrf.mxu0
      %v4014 = vpop.f32.mrf.mxu0
      %v4015 = vadd.f32 0.0, %v4014
      %v4016 = vpop.f32.mrf.mxu0
      %4017 = vmatprep.mubr.bf16.mxu0 0
      %4018 = vmatmul.mubr.bf16.gmra.mxu0 %v3634
      %v4019 = vpop.f32.mrf.mxu0
      %v4020 = vadd.f32 0.0, %v4019
      %v4021 = vpop.f32.mrf.mxu0
      %v4022 = vpop.f32.mrf.mxu0
      %v4023 = vadd.f32 0.0, %v4022
      %v4024 = vpop.f32.mrf.mxu0
      %4025 = vmatprep.mubr.bf16.mxu0 0
      %4026 = vmatmul.mubr.bf16.gmra.mxu0 %v3637
      %v4027 = vpop.f32.mrf.mxu0
      %v4028 = vadd.f32 0.0, %v4027
      %v4029 = vpop.f32.mrf.mxu0
      %v4030 = vpop.f32.mrf.mxu0
      %v4031 = vadd.f32 0.0, %v4030
      %v4032 = vpop.f32.mrf.mxu0
      %4033 = vmatprep.mubr.bf16.mxu0 0
      %4034 = vmatmul.mubr.bf16.gmra.mxu0 %v3640
      %v4035 = vpop.f32.mrf.mxu0
      %v4036 = vadd.f32 0.0, %v4035
      %v4037 = vpop.f32.mrf.mxu0
      %v4038 = vpop.f32.mrf.mxu0
      %v4039 = vadd.f32 0.0, %v4038
      %v4040 = vpop.f32.mrf.mxu0
      %4041 = vmatprep.mubr.bf16.mxu0 0
      %4042 = vmatmul.mubr.bf16.gmra.mxu0 %v3643
      %v4043 = vpop.f32.mrf.mxu0
      %v4044 = vadd.f32 0.0, %v4043
      %v4045 = vpop.f32.mrf.mxu0
      %v4046 = vpop.f32.mrf.mxu0
      %v4047 = vadd.f32 0.0, %v4046
      %v4048 = vpop.f32.mrf.mxu0
      %4049 = vmatprep.mubr.bf16.mxu0 0
      %4050 = vmatmul.mubr.bf16.gmra.mxu0 %v3646
      %v4051 = vpop.f32.mrf.mxu0
      %v4052 = vadd.f32 0.0, %v4051
      %v4053 = vpop.f32.mrf.mxu0
      %v4054 = vpop.f32.mrf.mxu0
      %v4055 = vadd.f32 0.0, %v4054
      %v4056 = vpop.f32.mrf.mxu0
      %4057 = vmatprep.mubr.bf16.mxu0 0
      %4058 = vmatmul.mubr.bf16.gmra.mxu0 %v3649
      %v4059 = vpop.f32.mrf.mxu0
      %v4060 = vadd.f32 0.0, %v4059
      %v4061 = vpop.f32.mrf.mxu0
      %v4062 = vpop.f32.mrf.mxu0
      %v4063 = vadd.f32 0.0, %v4062
      %v4064 = vpop.f32.mrf.mxu0
      %4065 = vmatprep.mubr.bf16.mxu0 0
      %4066 = vmatmul.mubr.bf16.gmra.mxu0 %v3908
      %v4067 = vpop.f32.mrf.mxu0
      %v4068 = vadd.f32 0.0, %v4067
      %v4069 = vpop.f32.mrf.mxu0
      %v4070 = vpop.f32.mrf.mxu0
      %v4071 = vadd.f32 0.0, %v4070
      %v4072 = vpop.f32.mrf.mxu0
      %4073 = vdwg.mxu0
      %v4074 = vadd.f32 %v3816, %v3948
      %v4075 = vadd.f32 %v3817, %v3951
      %v4076 = vadd.f32 %v3818, %v3956
      %v4077 = vadd.f32 %v3819, %v3959
      %v4078 = vadd.f32 %v3820, %v3964
      %v4079 = vadd.f32 %v3821, %v3967
      %v4080 = vadd.f32 %v3822, %v3972
      %v4081 = vadd.f32 %v3823, %v3975
      %v4082 = vadd.f32 %v3824, %v3980
      %v4083 = vadd.f32 %v3825, %v3983
      %v4084 = vadd.f32 %v3826, %v3988
      %v4085 = vadd.f32 %v3827, %v3991
      %v4086 = vadd.f32 %v3828, %v3996
      %v4087 = vadd.f32 %v3829, %v3999
      %v4088 = vadd.f32 %v3830, %v4004
      %v4089 = vadd.f32 %v3831, %v4007
      %v4090 = vadd.f32 %v3832, %v4012
      %v4091 = vadd.f32 %v3833, %v4015
      %v4092 = vadd.f32 %v3834, %v4020
      %v4093 = vadd.f32 %v3835, %v4023
      %v4094 = vadd.f32 %v3836, %v4028
      %v4095 = vadd.f32 %v3837, %v4031
      %v4096 = vadd.f32 %v3838, %v4036
      %v4097 = vadd.f32 %v3839, %v4039
      %v4098 = vadd.f32 %v3840, %v4044
      %v4099 = vadd.f32 %v3841, %v4047
      %v4100 = vadd.f32 %v3842, %v4052
      %v4101 = vadd.f32 %v3843, %v4055
      %v4102 = vadd.f32 %v3844, %v4060
      %v4103 = vadd.f32 %v3845, %v4063
      %v4104 = vadd.f32 %v3846, %v4068
      %v4105 = vadd.f32 %v3847, %v4071
      %v4109 = vunpack.c.l.b16 %v2769
      %v4110 = vunpack.c.l.b16 %v2770
      %v4111 = vunpack.c.l.b16 %v2771
      %v4112 = vpack.c.b16 %v4110, %v4109
      %v4113 = vpack.c.b16 %v4111, %v4111
      %v4115 = vshrl.u32 %v4112, 16
      %v4117 = vshll.u32 %v4112, 16
      %v4119 = vrot.slane %v4117, 1
      %v4120 = vor.u32 %v4115, %v4119
      %v4122 = vshll.u32 %v4113, 16
      %v4124 = vrot.slane %v4122, 1
      %v4125 = vsel %vm902, %v4120, %v4124
      %v4126 = vshrl.u32 %v4113, 16
      %4128 = vrot.lane.b32.xlu0 %v4125, 4
      %v4129 = vpop.permute.xlu0 %4128
      %4130 = vrot.lane.b32.xlu0 %v4126, 4
      %v4131 = vpop.permute.xlu0 %4130
      %v4132 = vrot.slane %v4112, 1
      %v4133 = vrot.slane %v4113, 1
      %v4134 = vsel %vm1191, %v4132, %v4133
      %4135 = vrot.lane.b32.xlu0 %v4134, 8
      %v4136 = vpop.permute.xlu0 %4135
      %4137 = vrot.lane.b32.xlu0 %v4133, 8
      %v4138 = vpop.permute.xlu0 %4137
      %v4140 = vsel %vm3306, %v4112, %v4129
      %v4142 = vsel %vm3306, %v4113, %v4131
      %v4144 = vsel %vm1304, %v4140, %v4136
      %v4146 = vsel %vm1304, %v4142, %v4138
      %v4147 = vshrl.u32 %v4144, 16
      %v4149 = vshll.u32 %v4144, 16
      %v4151 = vrot.slane %v4149, 1
      %v4152 = vor.u32 %v4147, %v4151
      %v4153 = vshll.u32 %v4146, 16
      %v4155 = vrot.slane %v4153, 1
      %v4156 = vsel %vm902, %v4152, %v4155
      %s4157 = scalar_lea.vmem %s3, 16
      %v4158 = vld [vmem:[%s4157] sm:$0xf]
      %v4159 = vld [vmem:[%s4157 + $0x4] sm:$0x3]
      %v4162 = vunpack.c.l.b16 %v4158
      %v4163 = vunpack.c.l.b16 %v4159
      %v4164 = vpack.c.b16 %v4163, %v4162
      %v4166 = vsel %vm3602, %v4156, 0
      %v4169 = vsel %vm3651, %v4164, 0
      %4171 = vmatprep.subr.bf16.mxu0 0
      %4172 = vmatpush1.bf16.msra.mxu0 0
      %4173 = vmatprep.subr.bf16.mxu0 0
      %4174 = vmatpush1.bf16.msra.mxu0 0
      %4175 = vmatprep.subr.bf16.mxu0 0
      %4176 = vmatpush1.bf16.msra.mxu0 0
      %4177 = vmatprep.subr.bf16.mxu0 0
      %4178 = vmatpush1.bf16.msra.mxu0 0
      %4179 = vmatprep.subr.bf16.mxu0 0
      %4180 = vmatpush1.bf16.msra.mxu0 0
      %4181 = vmatprep.subr.bf16.mxu0 0
      %4182 = vmatpush1.bf16.msra.mxu0 0
      %4183 = vmatprep.subr.bf16.mxu0 0
      %4184 = vmatpush1.bf16.msra.mxu0 0
      %4185 = vmatprep.subr.bf16.mxu0 0
      %4186 = vmatpush1.bf16.msra.mxu0 %v4169
      %4187 = vmatprep.subr.bf16.mxu0 0
      %4188 = vmatpush2.bf16.msra.mxu0 0
      %4189 = vmatprep.subr.bf16.mxu0 0
      %4190 = vmatpush2.bf16.msra.mxu0 0
      %4191 = vmatprep.subr.bf16.mxu0 0
      %4192 = vmatpush2.bf16.msra.mxu0 0
      %4193 = vmatprep.subr.bf16.mxu0 0
      %4194 = vmatpush2.bf16.msra.mxu0 0
      %4195 = vmatprep.subr.bf16.mxu0 0
      %4196 = vmatpush2.bf16.msra.mxu0 0
      %4197 = vmatprep.subr.bf16.mxu0 0
      %4198 = vmatpush2.bf16.msra.mxu0 0
      %4199 = vmatprep.subr.bf16.mxu0 0
      %4200 = vmatpush2.bf16.msra.mxu0 0
      %4201 = vmatprep.subr.bf16.mxu0 0
      %4202 = vmatpush2.bf16.msra.mxu0 0
      %4203 = vmatprep.mubr.bf16.mxu0 0
      %4204 = vmatmul.mubr.bf16.gmra.mxu0 %v3610
      %v4205 = vpop.f32.mrf.mxu0
      %v4206 = vadd.f32 0.0, %v4205
      %v4207 = vpop.f32.mrf.mxu0
      %v4208 = vpop.f32.mrf.mxu0
      %v4209 = vadd.f32 0.0, %v4208
      %v4210 = vpop.f32.mrf.mxu0
      %4211 = vmatprep.mubr.bf16.mxu0 0
      %4212 = vmatmul.mubr.bf16.gmra.mxu0 %v3613
      %v4213 = vpop.f32.mrf.mxu0
      %v4214 = vadd.f32 0.0, %v4213
      %v4215 = vpop.f32.mrf.mxu0
      %v4216 = vpop.f32.mrf.mxu0
      %v4217 = vadd.f32 0.0, %v4216
      %v4218 = vpop.f32.mrf.mxu0
      %4219 = vmatprep.mubr.bf16.mxu0 0
      %4220 = vmatmul.mubr.bf16.gmra.mxu0 %v3616
      %v4221 = vpop.f32.mrf.mxu0
      %v4222 = vadd.f32 0.0, %v4221
      %v4223 = vpop.f32.mrf.mxu0
      %v4224 = vpop.f32.mrf.mxu0
      %v4225 = vadd.f32 0.0, %v4224
      %v4226 = vpop.f32.mrf.mxu0
      %4227 = vmatprep.mubr.bf16.mxu0 0
      %4228 = vmatmul.mubr.bf16.gmra.mxu0 %v3619
      %v4229 = vpop.f32.mrf.mxu0
      %v4230 = vadd.f32 0.0, %v4229
      %v4231 = vpop.f32.mrf.mxu0
      %v4232 = vpop.f32.mrf.mxu0
      %v4233 = vadd.f32 0.0, %v4232
      %v4234 = vpop.f32.mrf.mxu0
      %4235 = vmatprep.mubr.bf16.mxu0 0
      %4236 = vmatmul.mubr.bf16.gmra.mxu0 %v3622
      %v4237 = vpop.f32.mrf.mxu0
      %v4238 = vadd.f32 0.0, %v4237
      %v4239 = vpop.f32.mrf.mxu0
      %v4240 = vpop.f32.mrf.mxu0
      %v4241 = vadd.f32 0.0, %v4240
      %v4242 = vpop.f32.mrf.mxu0
      %4243 = vmatprep.mubr.bf16.mxu0 0
      %4244 = vmatmul.mubr.bf16.gmra.mxu0 %v3625
      %v4245 = vpop.f32.mrf.mxu0
      %v4246 = vadd.f32 0.0, %v4245
      %v4247 = vpop.f32.mrf.mxu0
      %v4248 = vpop.f32.mrf.mxu0
      %v4249 = vadd.f32 0.0, %v4248
      %v4250 = vpop.f32.mrf.mxu0
      %4251 = vmatprep.mubr.bf16.mxu0 0
      %4252 = vmatmul.mubr.bf16.gmra.mxu0 %v3628
      %v4253 = vpop.f32.mrf.mxu0
      %v4254 = vadd.f32 0.0, %v4253
      %v4255 = vpop.f32.mrf.mxu0
      %v4256 = vpop.f32.mrf.mxu0
      %v4257 = vadd.f32 0.0, %v4256
      %v4258 = vpop.f32.mrf.mxu0
      %4259 = vmatprep.mubr.bf16.mxu0 0
      %4260 = vmatmul.mubr.bf16.gmra.mxu0 %v3631
      %v4261 = vpop.f32.mrf.mxu0
      %v4262 = vadd.f32 0.0, %v4261
      %v4263 = vpop.f32.mrf.mxu0
      %v4264 = vpop.f32.mrf.mxu0
      %v4265 = vadd.f32 0.0, %v4264
      %v4266 = vpop.f32.mrf.mxu0
      %4267 = vmatprep.mubr.bf16.mxu0 0
      %4268 = vmatmul.mubr.bf16.gmra.mxu0 %v3634
      %v4269 = vpop.f32.mrf.mxu0
      %v4270 = vadd.f32 0.0, %v4269
      %v4271 = vpop.f32.mrf.mxu0
      %v4272 = vpop.f32.mrf.mxu0
      %v4273 = vadd.f32 0.0, %v4272
      %v4274 = vpop.f32.mrf.mxu0
      %4275 = vmatprep.mubr.bf16.mxu0 0
      %4276 = vmatmul.mubr.bf16.gmra.mxu0 %v3637
      %v4277 = vpop.f32.mrf.mxu0
      %v4278 = vadd.f32 0.0, %v4277
      %v4279 = vpop.f32.mrf.mxu0
      %v4280 = vpop.f32.mrf.mxu0
      %v4281 = vadd.f32 0.0, %v4280
      %v4282 = vpop.f32.mrf.mxu0
      %4283 = vmatprep.mubr.bf16.mxu0 0
      %4284 = vmatmul.mubr.bf16.gmra.mxu0 %v3640
      %v4285 = vpop.f32.mrf.mxu0
      %v4286 = vadd.f32 0.0, %v4285
      %v4287 = vpop.f32.mrf.mxu0
      %v4288 = vpop.f32.mrf.mxu0
      %v4289 = vadd.f32 0.0, %v4288
      %v4290 = vpop.f32.mrf.mxu0
      %4291 = vmatprep.mubr.bf16.mxu0 0
      %4292 = vmatmul.mubr.bf16.gmra.mxu0 %v3643
      %v4293 = vpop.f32.mrf.mxu0
      %v4294 = vadd.f32 0.0, %v4293
      %v4295 = vpop.f32.mrf.mxu0
      %v4296 = vpop.f32.mrf.mxu0
      %v4297 = vadd.f32 0.0, %v4296
      %v4298 = vpop.f32.mrf.mxu0
      %4299 = vmatprep.mubr.bf16.mxu0 0
      %4300 = vmatmul.mubr.bf16.gmra.mxu0 %v3646
      %v4301 = vpop.f32.mrf.mxu0
      %v4302 = vadd.f32 0.0, %v4301
      %v4303 = vpop.f32.mrf.mxu0
      %v4304 = vpop.f32.mrf.mxu0
      %v4305 = vadd.f32 0.0, %v4304
      %v4306 = vpop.f32.mrf.mxu0
      %4307 = vmatprep.mubr.bf16.mxu0 0
      %4308 = vmatmul.mubr.bf16.gmra.mxu0 %v3649
      %v4309 = vpop.f32.mrf.mxu0
      %v4310 = vadd.f32 0.0, %v4309
      %v4311 = vpop.f32.mrf.mxu0
      %v4312 = vpop.f32.mrf.mxu0
      %v4313 = vadd.f32 0.0, %v4312
      %v4314 = vpop.f32.mrf.mxu0
      %4315 = vmatprep.mubr.bf16.mxu0 0
      %4316 = vmatmul.mubr.bf16.gmra.mxu0 %v3908
      %v4317 = vpop.f32.mrf.mxu0
      %v4318 = vadd.f32 0.0, %v4317
      %v4319 = vpop.f32.mrf.mxu0
      %v4320 = vpop.f32.mrf.mxu0
      %v4321 = vadd.f32 0.0, %v4320
      %v4322 = vpop.f32.mrf.mxu0
      %4323 = vmatprep.mubr.bf16.mxu0 0
      %4324 = vmatmul.mubr.bf16.gmra.mxu0 %v4166
      %v4325 = vpop.f32.mrf.mxu0
      %v4326 = vadd.f32 0.0, %v4325
      %v4327 = vpop.f32.mrf.mxu0
      %v4328 = vpop.f32.mrf.mxu0
      %v4329 = vadd.f32 0.0, %v4328
      %v4330 = vpop.f32.mrf.mxu0
      %4331 = vdwg.mxu0
      %v4332 = vadd.f32 %v4074, %v4206
      %v4333 = vadd.f32 %v4075, %v4209
      %v4334 = vadd.f32 %v4076, %v4214
      %v4335 = vadd.f32 %v4077, %v4217
      %v4336 = vadd.f32 %v4078, %v4222
      %v4337 = vadd.f32 %v4079, %v4225
      %v4338 = vadd.f32 %v4080, %v4230
      %v4339 = vadd.f32 %v4081, %v4233
      %v4340 = vadd.f32 %v4082, %v4238
      %v4341 = vadd.f32 %v4083, %v4241
      %v4342 = vadd.f32 %v4084, %v4246
      %v4343 = vadd.f32 %v4085, %v4249
      %v4344 = vadd.f32 %v4086, %v4254
      %v4345 = vadd.f32 %v4087, %v4257
      %v4346 = vadd.f32 %v4088, %v4262
      %v4347 = vadd.f32 %v4089, %v4265
      %v4348 = vadd.f32 %v4090, %v4270
      %v4349 = vadd.f32 %v4091, %v4273
      %v4350 = vadd.f32 %v4092, %v4278
      %v4351 = vadd.f32 %v4093, %v4281
      %v4352 = vadd.f32 %v4094, %v4286
      %v4353 = vadd.f32 %v4095, %v4289
      %v4354 = vadd.f32 %v4096, %v4294
      %v4355 = vadd.f32 %v4097, %v4297
      %v4356 = vadd.f32 %v4098, %v4302
      %v4357 = vadd.f32 %v4099, %v4305
      %v4358 = vadd.f32 %v4100, %v4310
      %v4359 = vadd.f32 %v4101, %v4313
      %v4360 = vadd.f32 %v4102, %v4318
      %v4361 = vadd.f32 %v4103, %v4321
      %v4362 = vadd.f32 %v4104, %v4326
      %v4363 = vadd.f32 %v4105, %v4329
      %v4364 = vmul.f32 %v4332, 0.2
      %v4365 = vmul.f32 %v4333, 0.2
      %v4366 = vmul.f32 %v4334, 0.2
      %v4367 = vmul.f32 %v4335, 0.2
      %v4368 = vmul.f32 %v4336, 0.2
      %v4369 = vmul.f32 %v4337, 0.2
      %v4370 = vmul.f32 %v4338, 0.2
      %v4371 = vmul.f32 %v4339, 0.2
      %v4372 = vmul.f32 %v4340, 0.2
      %v4373 = vmul.f32 %v4341, 0.2
      %v4374 = vmul.f32 %v4342, 0.2
      %v4375 = vmul.f32 %v4343, 0.2
      %v4376 = vmul.f32 %v4344, 0.2
      %v4377 = vmul.f32 %v4345, 0.2
      %v4378 = vmul.f32 %v4346, 0.2
      %v4379 = vmul.f32 %v4347, 0.2
      %v4380 = vmul.f32 %v4348, 0.2
      %v4381 = vmul.f32 %v4349, 0.2
      %v4382 = vmul.f32 %v4350, 0.2
      %v4383 = vmul.f32 %v4351, 0.2
      %v4384 = vmul.f32 %v4352, 0.2
      %v4385 = vmul.f32 %v4353, 0.2
      %v4386 = vmul.f32 %v4354, 0.2
      %v4387 = vmul.f32 %v4355, 0.2
      %v4388 = vmul.f32 %v4356, 0.2
      %v4389 = vmul.f32 %v4357, 0.2
      %v4390 = vmul.f32 %v4358, 0.2
      %v4391 = vmul.f32 %v4359, 0.2
      %v4392 = vmul.f32 %v4360, 0.2
      %v4393 = vmul.f32 %v4361, 0.2
      %v4394 = vmul.f32 %v4362, 0.2
      %v4395 = vmul.f32 %v4363, 0.2
      %v4396 = vmax.f32 %v4332, %v4364
      %v4397 = vmax.f32 %v4333, %v4365
      %v4398 = vmax.f32 %v4334, %v4366
      %v4399 = vmax.f32 %v4335, %v4367
      %v4400 = vmax.f32 %v4336, %v4368
      %v4401 = vmax.f32 %v4337, %v4369
      %v4402 = vmax.f32 %v4338, %v4370
      %v4403 = vmax.f32 %v4339, %v4371
      %v4404 = vmax.f32 %v4340, %v4372
      %v4405 = vmax.f32 %v4341, %v4373
      %v4406 = vmax.f32 %v4342, %v4374
      %v4407 = vmax.f32 %v4343, %v4375
      %v4408 = vmax.f32 %v4344, %v4376
      %v4409 = vmax.f32 %v4345, %v4377
      %v4410 = vmax.f32 %v4346, %v4378
      %v4411 = vmax.f32 %v4347, %v4379
      %v4412 = vmax.f32 %v4348, %v4380
      %v4413 = vmax.f32 %v4349, %v4381
      %v4414 = vmax.f32 %v4350, %v4382
      %v4415 = vmax.f32 %v4351, %v4383
      %v4416 = vmax.f32 %v4352, %v4384
      %v4417 = vmax.f32 %v4353, %v4385
      %v4418 = vmax.f32 %v4354, %v4386
      %v4419 = vmax.f32 %v4355, %v4387
      %v4420 = vmax.f32 %v4356, %v4388
      %v4421 = vmax.f32 %v4357, %v4389
      %v4422 = vmax.f32 %v4358, %v4390
      %v4423 = vmax.f32 %v4359, %v4391
      %v4424 = vmax.f32 %v4360, %v4392
      %v4425 = vmax.f32 %v4361, %v4393
      %v4426 = vmax.f32 %v4362, %v4394
      %v4427 = vmax.f32 %v4363, %v4395
      %v4428 = vld [vmem:[%s5] sm:$0xf]
      %v4429 = vld [vmem:[%s6] sm:$0x1]
      %v4431 = vlaneseq
      %v4432 = vshrl.u32 %v4431, 7
      %v4433 = vsub.s32 0, %v4432
      %v4434 = vrot.slane %v4429, %v4433
      %v4436 = vunpack.c.l.b16 %v280
      %v4437 = vunpack.c.l.b16 %v281
      %v4438 = vunpack.c.l.b16 %v282
      %v4439 = vunpack.c.l.b16 %v283
      %v4440 = vunpack.c.l.b16 %v284
      %v4441 = vunpack.c.l.b16 %v285
      %v4442 = vunpack.c.l.b16 %v286
      %v4443 = vunpack.c.l.b16 %v287
      %v4444 = vunpack.c.l.b16 %v288
      %v4445 = vunpack.c.l.b16 %v289
      %v4446 = vunpack.c.l.b16 %v290
      %v4447 = vunpack.c.l.b16 %v291
      %v4448 = vunpack.c.l.b16 %v292
      %v4449 = vunpack.c.l.b16 %v293
      %v4450 = vunpack.c.l.b16 %v294
      %v4451 = vunpack.c.l.b16 %v295
      %v4452 = vunpack.c.l.b16 %v296
      %v4453 = vunpack.c.l.b16 %v297
      %v4454 = vunpack.c.l.b16 %v298
      %v4455 = vunpack.c.l.b16 %v299
      %v4456 = vunpack.c.l.b16 %v300
      %v4457 = vunpack.c.l.b16 %v301
      %v4458 = vunpack.c.l.b16 %v302
      %v4459 = vunpack.c.l.b16 %v303
      %v4460 = vunpack.c.l.b16 %v304
      %v4461 = vunpack.c.l.b16 %v305
      %v4462 = vunpack.c.l.b16 %v306
      %v4463 = vunpack.c.l.b16 %v307
      %v4464 = vunpack.c.l.b16 %v308
      %v4465 = vunpack.c.l.b16 %v309
      %v4466 = vunpack.c.l.b16 %v310
      %v4467 = vunpack.c.l.b16 %v311
      %v4468 = vpack.c.b16 %v4437, %v4436
      %v4469 = vpack.c.b16 %v4439, %v4438
      %v4470 = vpack.c.b16 %v4441, %v4440
      %v4471 = vpack.c.b16 %v4443, %v4442
      %v4472 = vpack.c.b16 %v4445, %v4444
      %v4473 = vpack.c.b16 %v4447, %v4446
      %v4474 = vpack.c.b16 %v4449, %v4448
      %v4475 = vpack.c.b16 %v4451, %v4450
      %v4476 = vpack.c.b16 %v4453, %v4452
      %v4477 = vpack.c.b16 %v4455, %v4454
      %v4478 = vpack.c.b16 %v4457, %v4456
      %v4479 = vpack.c.b16 %v4459, %v4458
      %v4480 = vpack.c.b16 %v4461, %v4460
      %v4481 = vpack.c.b16 %v4463, %v4462
      %v4482 = vpack.c.b16 %v4465, %v4464
      %v4483 = vpack.c.b16 %v4467, %v4466
      %v4485 = vsel %vm1304, %v4468, 0
      %v4488 = vsel %vm1304, %v4469, 0
      %v4491 = vsel %vm1304, %v4470, 0
      %v4494 = vsel %vm1304, %v4471, 0
      %v4497 = vsel %vm1304, %v4472, 0
      %v4500 = vsel %vm1304, %v4473, 0
      %v4503 = vsel %vm1304, %v4474, 0
      %v4506 = vsel %vm1304, %v4475, 0
      %v4509 = vsel %vm1304, %v4476, 0
      %v4512 = vsel %vm1304, %v4477, 0
      %v4515 = vsel %vm1304, %v4478, 0
      %v4518 = vsel %vm1304, %v4479, 0
      %v4521 = vsel %vm1304, %v4480, 0
      %v4524 = vsel %vm1304, %v4481, 0
      %v4527 = vsel %vm1304, %v4482, 0
      %v4530 = vsel %vm1304, %v4483, 0
      %v4533 = vsel %vm1655, %v4428, 0
      %4535 = vmatprep.subr.bf16.mxu0 0
      %4536 = vmatpush1.bf16.msra.mxu0 0
      %4537 = vmatprep.subr.bf16.mxu0 0
      %4538 = vmatpush1.bf16.msra.mxu0 0
      %4539 = vmatprep.subr.bf16.mxu0 0
      %4540 = vmatpush1.bf16.msra.mxu0 0
      %4541 = vmatprep.subr.bf16.mxu0 0
      %4542 = vmatpush1.bf16.msra.mxu0 0
      %4543 = vmatprep.subr.bf16.mxu0 0
      %4544 = vmatpush1.bf16.msra.mxu0 0
      %4545 = vmatprep.subr.bf16.mxu0 0
      %4546 = vmatpush1.bf16.msra.mxu0 0
      %4547 = vmatprep.subr.bf16.mxu0 0
      %4548 = vmatpush1.bf16.msra.mxu0 0
      %4549 = vmatprep.subr.bf16.mxu0 0
      %4550 = vmatpush1.bf16.msra.mxu0 %v4533
      %4551 = vmatprep.subr.bf16.mxu0 0
      %4552 = vmatpush2.bf16.msra.mxu0 0
      %4553 = vmatprep.subr.bf16.mxu0 0
      %4554 = vmatpush2.bf16.msra.mxu0 0
      %4555 = vmatprep.subr.bf16.mxu0 0
      %4556 = vmatpush2.bf16.msra.mxu0 0
      %4557 = vmatprep.subr.bf16.mxu0 0
      %4558 = vmatpush2.bf16.msra.mxu0 0
      %4559 = vmatprep.subr.bf16.mxu0 0
      %4560 = vmatpush2.bf16.msra.mxu0 0
      %4561 = vmatprep.subr.bf16.mxu0 0
      %4562 = vmatpush2.bf16.msra.mxu0 0
      %4563 = vmatprep.subr.bf16.mxu0 0
      %4564 = vmatpush2.bf16.msra.mxu0 0
      %4565 = vmatprep.subr.bf16.mxu0 0
      %4566 = vmatpush2.bf16.msra.mxu0 0
      %4567 = vmatprep.mubr.bf16.mxu0 0
      %4568 = vmatmul.mubr.bf16.gmra.mxu0 %v4485
      %v4569 = vpop.f32.mrf.mxu0
      %v4570 = vadd.f32 %v4434, %v4569
      %v4571 = vpop.f32.mrf.mxu0
      %v4572 = vpop.f32.mrf.mxu0
      %v4573 = vadd.f32 %v4434, %v4572
      %v4574 = vpop.f32.mrf.mxu0
      %4575 = vmatprep.mubr.bf16.mxu0 0
      %4576 = vmatmul.mubr.bf16.gmra.mxu0 %v4488
      %v4577 = vpop.f32.mrf.mxu0
      %v4578 = vadd.f32 %v4434, %v4577
      %v4579 = vpop.f32.mrf.mxu0
      %v4580 = vpop.f32.mrf.mxu0
      %v4581 = vadd.f32 %v4434, %v4580
      %v4582 = vpop.f32.mrf.mxu0
      %4583 = vmatprep.mubr.bf16.mxu0 0
      %4584 = vmatmul.mubr.bf16.gmra.mxu0 %v4491
      %v4585 = vpop.f32.mrf.mxu0
      %v4586 = vadd.f32 %v4434, %v4585
      %v4587 = vpop.f32.mrf.mxu0
      %v4588 = vpop.f32.mrf.mxu0
      %v4589 = vadd.f32 %v4434, %v4588
      %v4590 = vpop.f32.mrf.mxu0
      %4591 = vmatprep.mubr.bf16.mxu0 0
      %4592 = vmatmul.mubr.bf16.gmra.mxu0 %v4494
      %v4593 = vpop.f32.mrf.mxu0
      %v4594 = vadd.f32 %v4434, %v4593
      %v4595 = vpop.f32.mrf.mxu0
      %v4596 = vpop.f32.mrf.mxu0
      %v4597 = vadd.f32 %v4434, %v4596
      %v4598 = vpop.f32.mrf.mxu0
      %4599 = vmatprep.mubr.bf16.mxu0 0
      %4600 = vmatmul.mubr.bf16.gmra.mxu0 %v4497
      %v4601 = vpop.f32.mrf.mxu0
      %v4602 = vadd.f32 %v4434, %v4601
      %v4603 = vpop.f32.mrf.mxu0
      %v4604 = vpop.f32.mrf.mxu0
      %v4605 = vadd.f32 %v4434, %v4604
      %v4606 = vpop.f32.mrf.mxu0
      %4607 = vmatprep.mubr.bf16.mxu0 0
      %4608 = vmatmul.mubr.bf16.gmra.mxu0 %v4500
      %v4609 = vpop.f32.mrf.mxu0
      %v4610 = vadd.f32 %v4434, %v4609
      %v4611 = vpop.f32.mrf.mxu0
      %v4612 = vpop.f32.mrf.mxu0
      %v4613 = vadd.f32 %v4434, %v4612
      %v4614 = vpop.f32.mrf.mxu0
      %4615 = vmatprep.mubr.bf16.mxu0 0
      %4616 = vmatmul.mubr.bf16.gmra.mxu0 %v4503
      %v4617 = vpop.f32.mrf.mxu0
      %v4618 = vadd.f32 %v4434, %v4617
      %v4619 = vpop.f32.mrf.mxu0
      %v4620 = vpop.f32.mrf.mxu0
      %v4621 = vadd.f32 %v4434, %v4620
      %v4622 = vpop.f32.mrf.mxu0
      %4623 = vmatprep.mubr.bf16.mxu0 0
      %4624 = vmatmul.mubr.bf16.gmra.mxu0 %v4506
      %v4625 = vpop.f32.mrf.mxu0
      %v4626 = vadd.f32 %v4434, %v4625
      %v4627 = vpop.f32.mrf.mxu0
      %v4628 = vpop.f32.mrf.mxu0
      %v4629 = vadd.f32 %v4434, %v4628
      %v4630 = vpop.f32.mrf.mxu0
      %4631 = vmatprep.mubr.bf16.mxu0 0
      %4632 = vmatmul.mubr.bf16.gmra.mxu0 %v4509
      %v4633 = vpop.f32.mrf.mxu0
      %v4634 = vadd.f32 %v4434, %v4633
      %v4635 = vpop.f32.mrf.mxu0
      %v4636 = vpop.f32.mrf.mxu0
      %v4637 = vadd.f32 %v4434, %v4636
      %v4638 = vpop.f32.mrf.mxu0
      %4639 = vmatprep.mubr.bf16.mxu0 0
      %4640 = vmatmul.mubr.bf16.gmra.mxu0 %v4512
      %v4641 = vpop.f32.mrf.mxu0
      %v4642 = vadd.f32 %v4434, %v4641
      %v4643 = vpop.f32.mrf.mxu0
      %v4644 = vpop.f32.mrf.mxu0
      %v4645 = vadd.f32 %v4434, %v4644
      %v4646 = vpop.f32.mrf.mxu0
      %4647 = vmatprep.mubr.bf16.mxu0 0
      %4648 = vmatmul.mubr.bf16.gmra.mxu0 %v4515
      %v4649 = vpop.f32.mrf.mxu0
      %v4650 = vadd.f32 %v4434, %v4649
      %v4651 = vpop.f32.mrf.mxu0
      %v4652 = vpop.f32.mrf.mxu0
      %v4653 = vadd.f32 %v4434, %v4652
      %v4654 = vpop.f32.mrf.mxu0
      %4655 = vmatprep.mubr.bf16.mxu0 0
      %4656 = vmatmul.mubr.bf16.gmra.mxu0 %v4518
      %v4657 = vpop.f32.mrf.mxu0
      %v4658 = vadd.f32 %v4434, %v4657
      %v4659 = vpop.f32.mrf.mxu0
      %v4660 = vpop.f32.mrf.mxu0
      %v4661 = vadd.f32 %v4434, %v4660
      %v4662 = vpop.f32.mrf.mxu0
      %4663 = vmatprep.mubr.bf16.mxu0 0
      %4664 = vmatmul.mubr.bf16.gmra.mxu0 %v4521
      %v4665 = vpop.f32.mrf.mxu0
      %v4666 = vadd.f32 %v4434, %v4665
      %v4667 = vpop.f32.mrf.mxu0
      %v4668 = vpop.f32.mrf.mxu0
      %v4669 = vadd.f32 %v4434, %v4668
      %v4670 = vpop.f32.mrf.mxu0
      %4671 = vmatprep.mubr.bf16.mxu0 0
      %4672 = vmatmul.mubr.bf16.gmra.mxu0 %v4524
      %v4673 = vpop.f32.mrf.mxu0
      %v4674 = vadd.f32 %v4434, %v4673
      %v4675 = vpop.f32.mrf.mxu0
      %v4676 = vpop.f32.mrf.mxu0
      %v4677 = vadd.f32 %v4434, %v4676
      %v4678 = vpop.f32.mrf.mxu0
      %4679 = vmatprep.mubr.bf16.mxu0 0
      %4680 = vmatmul.mubr.bf16.gmra.mxu0 %v4527
      %v4681 = vpop.f32.mrf.mxu0
      %v4682 = vadd.f32 %v4434, %v4681
      %v4683 = vpop.f32.mrf.mxu0
      %v4684 = vpop.f32.mrf.mxu0
      %v4685 = vadd.f32 %v4434, %v4684
      %v4686 = vpop.f32.mrf.mxu0
      %4687 = vmatprep.mubr.bf16.mxu0 0
      %4688 = vmatmul.mubr.bf16.gmra.mxu0 %v4530
      %v4689 = vpop.f32.mrf.mxu0
      %v4690 = vadd.f32 %v4434, %v4689
      %v4691 = vpop.f32.mrf.mxu0
      %v4692 = vpop.f32.mrf.mxu0
      %v4693 = vadd.f32 %v4434, %v4692
      %v4694 = vpop.f32.mrf.mxu0
      %4695 = vdwg.mxu0
      %v4696 = vadd.f32 %v4396, %v4570
      %v4697 = vadd.f32 %v4397, %v4573
      %v4698 = vadd.f32 %v4398, %v4578
      %v4699 = vadd.f32 %v4399, %v4581
      %v4700 = vadd.f32 %v4400, %v4586
      %v4701 = vadd.f32 %v4401, %v4589
      %v4702 = vadd.f32 %v4402, %v4594
      %v4703 = vadd.f32 %v4403, %v4597
      %v4704 = vadd.f32 %v4404, %v4602
      %v4705 = vadd.f32 %v4405, %v4605
      %v4706 = vadd.f32 %v4406, %v4610
      %v4707 = vadd.f32 %v4407, %v4613
      %v4708 = vadd.f32 %v4408, %v4618
      %v4709 = vadd.f32 %v4409, %v4621
      %v4710 = vadd.f32 %v4410, %v4626
      %v4711 = vadd.f32 %v4411, %v4629
      %v4712 = vadd.f32 %v4412, %v4634
      %v4713 = vadd.f32 %v4413, %v4637
      %v4714 = vadd.f32 %v4414, %v4642
      %v4715 = vadd.f32 %v4415, %v4645
      %v4716 = vadd.f32 %v4416, %v4650
      %v4717 = vadd.f32 %v4417, %v4653
      %v4718 = vadd.f32 %v4418, %v4658
      %v4719 = vadd.f32 %v4419, %v4661
      %v4720 = vadd.f32 %v4420, %v4666
      %v4721 = vadd.f32 %v4421, %v4669
      %v4722 = vadd.f32 %v4422, %v4674
      %v4723 = vadd.f32 %v4423, %v4677
      %v4724 = vadd.f32 %v4424, %v4682
      %v4725 = vadd.f32 %v4425, %v4685
      %v4726 = vadd.f32 %v4426, %v4690
      %v4727 = vadd.f32 %v4427, %v4693
      %4728 = vst.msk [vmem:[%s278] sm:$0xff] %vm3306, %v4696
      %4729 = vst.msk [vmem:[%s278 + $0x8] sm:$0xff] %vm3306, %v4697
      %4730 = vst.msk [vmem:[%s278 + $0x10] sm:$0xff] %vm3306, %v4698
      %4731 = vst.msk [vmem:[%s278 + $0x18] sm:$0xff] %vm3306, %v4699
      %4732 = vst.msk [vmem:[%s278 + $0x20] sm:$0xff] %vm3306, %v4700
      %4733 = vst.msk [vmem:[%s278 + $0x28] sm:$0xff] %vm3306, %v4701
      %4734 = vst.msk [vmem:[%s278 + $0x30] sm:$0xff] %vm3306, %v4702
      %4735 = vst.msk [vmem:[%s278 + $0x38] sm:$0xff] %vm3306, %v4703
      %4736 = vst.msk [vmem:[%s278 + $0x40] sm:$0xff] %vm3306, %v4704
      %4737 = vst.msk [vmem:[%s278 + $0x48] sm:$0xff] %vm3306, %v4705
      %4738 = vst.msk [vmem:[%s278 + $0x50] sm:$0xff] %vm3306, %v4706
      %4739 = vst.msk [vmem:[%s278 + $0x58] sm:$0xff] %vm3306, %v4707
      %4740 = vst.msk [vmem:[%s278 + $0x60] sm:$0xff] %vm3306, %v4708
      %4741 = vst.msk [vmem:[%s278 + $0x68] sm:$0xff] %vm3306, %v4709
      %4742 = vst.msk [vmem:[%s278 + $0x70] sm:$0xff] %vm3306, %v4710
      %4743 = vst.msk [vmem:[%s278 + $0x78] sm:$0xff] %vm3306, %v4711
      %4744 = vst.msk [vmem:[%s278 + $0x80] sm:$0xff] %vm3306, %v4712
      %4745 = vst.msk [vmem:[%s278 + $0x88] sm:$0xff] %vm3306, %v4713
      %4746 = vst.msk [vmem:[%s278 + $0x90] sm:$0xff] %vm3306, %v4714
      %4747 = vst.msk [vmem:[%s278 + $0x98] sm:$0xff] %vm3306, %v4715
      %4748 = vst.msk [vmem:[%s278 + $0xa0] sm:$0xff] %vm3306, %v4716
      %4749 = vst.msk [vmem:[%s278 + $0xa8] sm:$0xff] %vm3306, %v4717
      %4750 = vst.msk [vmem:[%s278 + $0xb0] sm:$0xff] %vm3306, %v4718
      %4751 = vst.msk [vmem:[%s278 + $0xb8] sm:$0xff] %vm3306, %v4719
      %4752 = vst.msk [vmem:[%s278 + $0xc0] sm:$0xff] %vm3306, %v4720
      %4753 = vst.msk [vmem:[%s278 + $0xc8] sm:$0xff] %vm3306, %v4721
      %4754 = vst.msk [vmem:[%s278 + $0xd0] sm:$0xff] %vm3306, %v4722
      %4755 = vst.msk [vmem:[%s278 + $0xd8] sm:$0xff] %vm3306, %v4723
      %4756 = vst.msk [vmem:[%s278 + $0xe0] sm:$0xff] %vm3306, %v4724
      %4757 = vst.msk [vmem:[%s278 + $0xe8] sm:$0xff] %vm3306, %v4725
      %4758 = vst.msk [vmem:[%s278 + $0xf0] sm:$0xff] %vm3306, %v4726
      %4759 = vst.msk [vmem:[%s278 + $0xf8] sm:$0xff] %vm3306, %v4727
      %p4760 = scmp.lt.s32.totalorder %s18, 1
      %s4761 = scalar_select %p4760, %s18, 1
      %s4762 = smul.addr %s4761, 32
      %s4763 = smul.addr %s4762, 8
      %s4764 = scalar_lea.vmem %s7, %s4763
      // Predicated region
      $region49: #{unet_up_block.1} parent=47 // pred_check
        %p4765 = pneg %p188
      $region50: #{unet_up_block.1} parent=47 // pred_check_branch
        %4767 = sbr.rel (%p4765) target = $region52
      $region51: #{unet_up_block.1} parent=47 // pred_region
        _
      $region52: #{unet_up_block.1} parent=47 // pred_fallthru
        _
    $region48: #{unet_up_block.1} parent=5 // pred_fallthru
      _
    %p4768 = scmp.le.s32.totalorder 2, %s13
    // Predicated region
    $region53: #{unet_up_block.1} parent=5 // pred_check
      %p4769 = pneg %p4768
    $region54: #{unet_up_block.1} parent=5 // pred_check_branch
      %4771 = sbr.rel (%p4769) target = $region56
    $region55: #{unet_up_block.1} parent=5 // pred_region
      %s4772 = ssub.s32 %s13, 2
      // Predicated region
      $region57: #{unet_up_block.1} parent=55 // pred_check
        %p4773 = pneg %p194
      $region58: #{unet_up_block.1} parent=55 // pred_check_branch
        %4775 = sbr.rel (%p4773) target = $region60
      $region59: #{unet_up_block.1} parent=55 // pred_region
        %p4776 = scmp.lt.s32.totalorder %s19, 1
        %s4777 = scalar_select %p4776, %s19, 1
        %s4778 = smul.addr %s4777, 32
        %s4779 = smul.addr %s4778, 8
        %s4780 = scalar_lea.vmem %s7, %s4779
      $region60: #{unet_up_block.1} parent=55 // pred_fallthru
        _
    $region56: #{unet_up_block.1} parent=5 // pred_fallthru
      _
  $region6: #{unet_up_block.1} parent=0 // loop_footer
    %s17 = sadd.s32 1, %s13
  $region7: #{unet_up_block.1} parent=0 // loop_footer_branch
    %12 = sbr.rel target = $region3
  $region8: #{unet_up_block.1} parent=0 // loop_exit
    _

</llo_original>
